<compile_context>
chip_gen: v6e
topology: v6e:2x2x1
jax: 0.10.0
libtpu: 0.0.40
codegen_flags: <defaults>
</compile_context>

<pallas_src>
import functools

import jax
import jax.numpy as jnp
from jax.experimental import pallas as pl
from jax.experimental.pallas import tpu as pltpu

LANE = 128


def _round_up(x, m):
    return ((x + m - 1) // m) * m


def _cdiv(a, b):
    return (a + b - 1) // b


def _sublane(dtype):
    # Sublane (second-to-last dim) alignment: 8 for 4-byte, 16 for bf16, 32 for int8.
    return max(8, 32 // jnp.dtype(dtype).itemsize)


def _vmem_capacity_bytes():
    """Chip-aware VMEM capacity (64 MiB on v7x, 128 MiB on v5e/v6e)."""
    try:
        return int(pltpu.get_tpu_info().vmem_capacity_bytes)
    except Exception:
        return 64 << 20  # conservative default (v7x per-core VMEM)


# Feature probe: single-buffered resident-weight BlockSpecs (saves half the
# fused-path weight VMEM; weights have a constant index_map so double-buffering
# them is pure waste).
def _probe_buffered_one():
    try:
        mode = pl.Buffered(1)
        pl.BlockSpec((8, LANE), lambda i: (0, 0), pipeline_mode=mode)
        return mode
    except Exception:
        return None


_BUFFERED_ONE = _probe_buffered_one()


def _choose_tile(dim, t_max, align):
    """Largest tile (multiple of `align`, <= t_max) that minimizes padding of `dim`
    plus a small per-grid-step cost.  Pads only to hardware alignment, never up to
    the tile size, so awkward shapes (e.g. K=1100 -> 1152) waste no MXU work."""
    dim = _round_up(dim, align)
    if dim <= t_max:
        return dim
    best_t, best_score = align, None
    for t in range(align, t_max + 1, align):
        score = _round_up(dim, t) + align * _cdiv(dim, t)
        if best_score is None or score <= best_score:
            best_t, best_score = t, score
    return best_t


# ----------------------------------------------------------------------------
# Path 3: tiled GEMM  y = relu?(x @ W + b)
# ----------------------------------------------------------------------------
def _linear_kernel_f32out(x_ref, w_ref, b_ref, o_ref, *, apply_relu):
    """f32 output block doubles as the K accumulator (no scratch, fewer VMEM bytes)."""
    k = pl.program_id(2)

    @pl.when(k == 0)
    def _():
        o_ref[...] = jnp.zeros_like(o_ref)

    o_ref[...] += jnp.dot(x_ref[...], w_ref[...], preferred_element_type=jnp.float32)

    @pl.when(k == pl.num_programs(2) - 1)
    def _():
        y = o_ref[...] + b_ref[...]
        if apply_relu:
            y = jnp.maximum(y, 0.0)
        o_ref[...] = y


def _linear_kernel_acc(x_ref, w_ref, b_ref, o_ref, acc_ref, *, apply_relu):
    """Same, but with an f32 VMEM scratch accumulator for non-f32 outputs."""
    k = pl.program_id(2)

    @pl.when(k == 0)
    def _():
        acc_ref[...] = jnp.zeros_like(acc_ref)

    acc_ref[...] += jnp.dot(x_ref[...], w_ref[...], preferred_element_type=jnp.float32)

    @pl.when(k == pl.num_programs(2) - 1)
    def _():
        y = acc_ref[...] + b_ref[...]
        if apply_relu:
            y = jnp.maximum(y, 0.0)
        o_ref[...] = y.astype(o_ref.dtype)


def _linear_tiled_padded(xp, wp, bp, *, apply_relu, out_dtype,
                         tm_max=256, tn_max=1024, tk_max=1024):
    """xp: (Mp, Kp) hw-aligned, wp: (Kp, Np), bp: (1, Np) f32.  Returns (Mp, Np)."""
    Mp, Kp = xp.shape
    Np = wp.shape[1]
    sub = _sublane(xp.dtype)

    tm = _choose_tile(Mp, tm_max, sub)
    tn = _choose_tile(Np, tn_max, LANE)
    tk = _choose_tile(Kp, tk_max, LANE)
    M_t, N_t, K_t = _round_up(Mp, tm), _round_up(Np, tn), _round_up(Kp, tk)

    # v7x has 2 TensorCores: ensure the parallel (i, j) grid has >= 2 blocks so both
    # cores get work (costs one ~0.35us extra grid step on 1-TC v5e/v6e — negligible).
    if (M_t // tm) * (N_t // tn) == 1:
        if tn >= 2 * LANE and (tn // 2) % LANE == 0:
            tn //= 2
        elif tm >= 2 * sub and (tm // 2) % sub == 0:
            tm //= 2

    # Usually a no-op: tiles are chosen to divide the hw-padded dims.
    x_t = xp if (M_t, K_t) == (Mp, Kp) else jnp.pad(xp, ((0, M_t - Mp), (0, K_t - Kp)))
    w_t = wp if (K_t, N_t) == (Kp, Np) else jnp.pad(wp, ((0, K_t - Kp), (0, N_t - Np)))
    b_t = bp if N_t == Np else jnp.pad(bp, ((0, 0), (0, N_t - Np)))

    use_scratch = jnp.dtype(out_dtype) != jnp.dtype(jnp.float32)
    in_item = x_t.dtype.itemsize
    out_item = jnp.dtype(out_dtype).itemsize
    est = (2 * (tm * tk + tk * tn) * in_item      # double-buffered x / W tiles
           + 2 * tn * 4                           # bias tile
           + 2 * tm * tn * out_item               # output block
           + (tm * tn * 4 if use_scratch else 0))
    cap = _vmem_capacity_bytes()
    vmem_limit = min(max(int(est * 1.5) + (4 << 20), 16 << 20), int(cap * 0.85))

    if use_scratch:
        kernel = functools.partial(_linear_kernel_acc, apply_relu=apply_relu)
        scratch = [pltpu.VMEM((tm, tn), jnp.float32)]
    else:
        kernel = functools.partial(_linear_kernel_f32out, apply_relu=apply_relu)
        scratch = []

    # NOTE: on v5e, if profiling shows the per-k W DMA exposed, add
    # pipeline_mode=pl.Buffered(3) to the W BlockSpec below (VMEM is plentiful there).
    out = pl.pallas_call(
        kernel,
        out_shape=jax.ShapeDtypeStruct((M_t, N_t), out_dtype),
        grid_spec=pltpu.PrefetchScalarGridSpec(
            num_scalar_prefetch=0,
            grid=(M_t // tm, N_t // tn, K_t // tk),
            in_specs=[
                pl.BlockSpec((tm, tk), lambda i, j, k: (i, k)),
                pl.BlockSpec((tk, tn), lambda i, j, k: (k, j)),
                pl.BlockSpec((1, tn), lambda i, j, k: (0, j)),
            ],
            out_specs=pl.BlockSpec((tm, tn), lambda i, j, k: (i, j)),
            scratch_shapes=scratch,
        ),
        compiler_params=pltpu.CompilerParams(
            dimension_semantics=("parallel", "parallel", "arbitrary"),
            vmem_limit_bytes=vmem_limit,
        ),
    )(x_t, w_t, b_t)
    if (M_t, N_t) != (Mp, Np):
        out = out[:Mp, :Np]
    return out


def pallas_linear(x2d, w, b, *, apply_relu=False, stream_dtype=None, out_dtype=None):
    """Single linear layer y = relu?(x @ W + b) via the tiled kernel (pads + slices)."""
    M, K = x2d.shape
    N = w.shape[1]
    cdt = jnp.dtype(stream_dtype) if stream_dtype is not None else jnp.dtype(x2d.dtype)
    odt = jnp.dtype(out_dtype) if out_dtype is not None else jnp.dtype(x2d.dtype)
    sub = _sublane(cdt)
    Mp, Kp, Np = _round_up(M, sub), _round_up(K, LANE), _round_up(N, LANE)
    xp = jnp.pad(x2d.astype(cdt), ((0, Mp - M), (0, Kp - K)))
    wp = jnp.pad(w.astype(cdt), ((0, Kp - K), (0, Np - N)))
    bp = jnp.pad(b.astype(jnp.float32), (0, Np - N)).reshape(1, Np)
    out = _linear_tiled_padded(xp, wp, bp, apply_relu=apply_relu, out_dtype=odt)
    return out[:M, :N]


# ----------------------------------------------------------------------------
# Paths 1 & 2: weight-resident stack / single layer (grid over M only)
# ----------------------------------------------------------------------------
def _resident_mlp_kernel(x_ref, *refs, num_layers, relu_last):
    o_ref = refs[-1]
    wb = refs[:-1]
    cdt = x_ref.dtype
    h = x_ref[...]
    for i in range(num_layers):
        w = wb[2 * i][...]
        b = wb[2 * i + 1][...]                                  # f32 bias
        y = jnp.dot(h, w, preferred_element_type=jnp.float32) + b
        if i < num_layers - 1 or relu_last:
            y = jnp.maximum(y, 0.0)
        h = y if i == num_layers - 1 else y.astype(cdt)
    o_ref[...] = h.astype(o_ref.dtype)


def _resident_vmem_bytes(dims_pad, tm, act_item, w_bufs):
    w = sum(dims_pad[i] * dims_pad[i + 1] for i in range(len(dims_pad) - 1)) * act_item
    b = sum(dims_pad[1:]) * 4
    io = 2 * tm * (dims_pad[0] * act_item + dims_pad[-1] * 4)
    inter = 3 * tm * max(dims_pad) * 4
    return w_bufs * (w + b) + io + inter


def _mlp_resident_padded(xp, wb_flat, dims_pad, *, out_dtype, relu_last,
                         tm_max=256, single_buffer=True):
    """xp: (Mp, dims_pad[0]); wb_flat: [W0, b0, W1, b1, ...] already padded."""
    Mp = xp.shape[0]
    sub = _sublane(xp.dtype)
    tm = _choose_tile(Mp, tm_max, sub)
    M_t = _round_up(Mp, tm)
    # Keep both v7x TensorCores busy when possible.
    if M_t // tm == 1 and tm >= 2 * sub and (tm // 2) % sub == 0:
        tm //= 2
    x_t = xp if M_t == Mp else jnp.pad(xp, ((0, M_t - Mp), (0, 0)))

    num_layers = len(dims_pad) - 1
    use_single = single_buffer and _BUFFERED_ONE is not None

    def resident_spec(shape):
        if use_single:
            return pl.BlockSpec(shape, lambda m: (0, 0), pipeline_mode=_BUFFERED_ONE)
        return pl.BlockSpec(shape, lambda m: (0, 0))

    in_specs = [pl.BlockSpec((tm, dims_pad[0]), lambda m: (m, 0))]
    for i in range(num_layers):
        in_specs.append(resident_spec((dims_pad[i], dims_pad[i + 1])))
        in_specs.append(resident_spec((1, dims_pad[i + 1])))

    act_item = jnp.dtype(xp.dtype).itemsize
    cap = _vmem_capacity_bytes()
    est = _resident_vmem_bytes(dims_pad, tm, act_item, w_bufs=2)  # generous for the limit
    vmem_limit = min(max(int(est * 1.25) + (4 << 20), 16 << 20), int(cap * 0.85))

    kernel = functools.partial(_resident_mlp_kernel,
                               num_layers=num_layers, relu_last=relu_last)
    out = pl.pallas_call(
        kernel,
        out_shape=jax.ShapeDtypeStruct((M_t, dims_pad[-1]), out_dtype),
        grid_spec=pltpu.PrefetchScalarGridSpec(
            num_scalar_prefetch=0,
            grid=(M_t // tm,),
            in_specs=in_specs,
            out_specs=pl.BlockSpec((tm, dims_pad[-1]), lambda m: (m, 0)),
        ),
        compiler_params=pltpu.CompilerParams(
            dimension_semantics=("parallel",),
            vmem_limit_bytes=vmem_limit,
        ),
    )(x_t, *wb_flat)
    return out if M_t == Mp else out[:Mp]


def _run_resident(h, wb_flat, dims_pad, out_dtype, relu_last):
    """Try single-buffered resident weights, then double-buffered; None on failure."""
    for single in (True, False):
        try:
            return _mlp_resident_padded(h, wb_flat, dims_pad, out_dtype=out_dtype,
                                        relu_last=relu_last, single_buffer=single)
        except Exception:
            continue
    return None


# ----------------------------------------------------------------------------
# Parameter preparation + dispatcher
# ----------------------------------------------------------------------------
def prepare_mlp_params(params, input_dim, *, stream_dtype=None):
    """Pad/cast weights & biases once (hoisted out of the per-forward path)."""
    w_dtype = (jnp.dtype(stream_dtype) if stream_dtype is not None
               else jnp.dtype(params[0][0].dtype))
    dims = [input_dim] + [w.shape[1] for (w, _) in params]
    dims_pad = [_round_up(d, LANE) for d in dims]
    wb = []
    for i, (w, b) in enumerate(params):
        wp = jnp.pad(w.astype(w_dtype),
                     ((0, dims_pad[i] - dims[i]), (0, dims_pad[i + 1] - dims[i + 1])))
        bp = jnp.pad(b.astype(jnp.float32),
                     (0, dims_pad[i + 1] - dims[i + 1])).reshape(1, dims_pad[i + 1])
        wb.extend((wp, bp))
    return {"dims": dims, "dims_pad": dims_pad, "wb": wb, "wdtype": w_dtype}


def mlp_forward(x, params=None, *, prepared=None, stream_dtype=None,
                force_per_layer=False, tm_max=256):
    """MLP forward: relu(Linear) for all but the last layer, Linear for the last.

    x: (..., input_dim).  params: list of (W:(in,out), b:(out,)).
    stream_dtype: optional narrower streaming dtype (e.g. jnp.bfloat16); matmul
      accumulation, bias add and ReLU remain in f32.
    """
    if prepared is None:
        prepared = prepare_mlp_params(params, x.shape[-1], stream_dtype=stream_dtype)
    dims, dims_pad, wb = prepared["dims"], prepared["dims_pad"], prepared["wb"]
    cdt = prepared["wdtype"]
    num_layers = len(dims) - 1

    orig_shape = x.shape
    out_dtype = jnp.dtype(x.dtype)
    x2 = x.reshape(-1, dims[0])
    M = x2.shape[0]
    sub = _sublane(cdt)
    Mp = _round_up(M, sub)

    # Pad activations ONCE; they stay padded (lane/sublane aligned) across all layers.
    if (Mp, dims_pad[0]) != (M, dims[0]):
        h = jnp.pad(x2.astype(cdt), ((0, Mp - M), (0, dims_pad[0] - dims[0])))
    else:
        h = x2.astype(cdt)

    cap = _vmem_capacity_bytes()
    budget = int(cap * 0.6)           # ~38 MiB on v7x, ~76 MiB on v5e/v6e
    act_item = jnp.dtype(cdt).itemsize
    tm_guess = _choose_tile(Mp, tm_max, sub)
    w_bufs = 1 if _BUFFERED_ONE is not None else 2

    out_p = None
    if (not force_per_layer
            and _resident_vmem_bytes(dims_pad, tm_guess, act_item, w_bufs) <= budget):
        # Path 1: whole stack fused — weights resident, activations stay on-chip.
        out_p = _run_resident(h, wb, dims_pad, out_dtype, relu_last=False)

    if out_p is None:
        # Path 2/3 per layer (activations kept padded; sliced only once at the end).
        for i in range(num_layers):
            relu = i < num_layers - 1
            layer_out_dtype = cdt if relu else out_dtype
            dp = dims_pad[i:i + 2]
            layer_wb = wb[2 * i:2 * i + 2]
            nxt = None
            if _resident_vmem_bytes(dp, tm_guess, act_item, w_bufs) <= budget:
                nxt = _run_resident(h, layer_wb, dp, layer_out_dtype, relu_last=relu)
            if nxt is None:
                nxt = _linear_tiled_padded(h, layer_wb[0], layer_wb[1],
                                           apply_relu=relu, out_dtype=layer_out_dtype)
            h = nxt
        out_p = h

    out = out_p[:M, :dims[-1]]
    return out.reshape(*orig_shape[:-1], dims[-1])


def init_mlp_params(key, input_dim, hidden_dim, output_dim, num_layers,
                    dtype=jnp.float32):
    """Deterministic init mirroring the layer shapes of the PyTorch module."""
    hs = [hidden_dim] * (num_layers - 1)
    in_dims = [input_dim] + hs
    out_dims = hs + [output_dim]
    params = []
    for n, k in zip(in_dims, out_dims):
        key, kw, kb = jax.random.split(key, 3)
        bound = 1.0 / (n ** 0.5)  # matches nn.Linear uniform(-1/sqrt(in), 1/sqrt(in))
        w = jax.random.uniform(kw, (n, k), dtype, minval=-bound, maxval=bound)
        b = jax.random.uniform(kb, (k,), dtype, minval=-bound, maxval=bound)
        params.append((w, b))
    return params


if __name__ == "__main__":
    key = jax.random.PRNGKey(0)
    key, kx, kp, kt, kw2, kb2 = jax.random.split(key, 6)

    # --- small MLP matching the PyTorch module (fused, weight-resident path) ---
    batch, seq = 2, 8
    input_dim, hidden_dim, output_dim, num_layers = 32, 32, 16, 3

    x = jax.random.normal(kx, (batch, seq, input_dim), dtype=jnp.float32)
    params = init_mlp_params(kp, input_dim, hidden_dim, output_dim, num_layers)

    out = mlp_forward(x, params)
    jax.block_until_ready(out)

    ref = x.reshape(-1, input_dim)
    for i, (w, b) in enumerate(params):
        ref = jnp.dot(ref, w, precision=jax.lax.Precision.HIGHEST) + b
        if i < num_layers - 1:
            ref = jnp.maximum(ref, 0.0)
    ref = ref.reshape(batch, seq, output_dim)
    assert out.shape == (batch, seq, output_dim)
    assert jnp.allclose(out, ref, atol=1e-4, rtol=1e-4)

    # --- same MLP through the per-layer (weight-resident single layer) path ---
    out_pl = mlp_forward(x, params, force_per_layer=True)
    jax.block_until_ready(out_pl)
    assert jnp.allclose(out_pl, ref, atol=1e-4, rtol=1e-4)

    # --- bf16 streaming (f32 accumulation/bias/ReLU kept), weights padded once ---
    prep_bf16 = prepare_mlp_params(params, input_dim, stream_dtype=jnp.bfloat16)
    out_bf16 = mlp_forward(x, prepared=prep_bf16)
    jax.block_until_ready(out_bf16)
    assert out_bf16.dtype == x.dtype
    assert jnp.allclose(out_bf16, ref, atol=5e-2, rtol=5e-2)

    # --- tiled GEMM path on awkward (non power-of-two) shapes, f32 ---
    M2, K2, N2 = 300, 1100, 200
    xt = jax.random.normal(kt, (M2, K2), dtype=jnp.float32)
    wt = jax.random.normal(kw2, (K2, N2), dtype=jnp.float32) * 0.02
    bt = jax.random.normal(kb2, (N2,), dtype=jnp.float32)
    yt = pallas_linear(xt, wt, bt, apply_relu=True)
    jax.block_until_ready(yt)
    ref_t = jnp.maximum(
        jnp.dot(xt, wt, precision=jax.lax.Precision.HIGHEST) + bt, 0.0)
    assert yt.shape == (M2, N2)
    assert jnp.allclose(yt, ref_t, atol=1e-3, rtol=1e-3)

    # --- tiled GEMM with bf16 operands + bf16 output (f32 scratch accumulator) ---
    yt_bf16 = pallas_linear(xt, wt, bt, apply_relu=True,
                            stream_dtype=jnp.bfloat16, out_dtype=jnp.bfloat16)
    jax.block_until_ready(yt_bf16)
    assert yt_bf16.dtype == jnp.bfloat16
    assert jnp.allclose(yt_bf16.astype(jnp.float32), ref_t, atol=1e-1, rtol=1e-1)

    print("KERNEL_OK")
</pallas_src>

<mosaic_0001>
module attributes {stable_mosaic.version = 11 : i64} {
  func.func @_resident_mlp_kernel(%arg0: i32, %arg1: memref<8x128xf32, #tpu.memory_space<vmem>>, %arg2: memref<128x128xf32, #tpu.memory_space<vmem>>, %arg3: memref<1x128xf32, #tpu.memory_space<vmem>>, %arg4: memref<128x128xf32, #tpu.memory_space<vmem>>, %arg5: memref<1x128xf32, #tpu.memory_space<vmem>>, %arg6: memref<128x128xf32, #tpu.memory_space<vmem>>, %arg7: memref<1x128xf32, #tpu.memory_space<vmem>>, %arg8: memref<8x128xf32, #tpu.memory_space<vmem>>) attributes {dimension_semantics = [#tpu.dimension_semantics<parallel>], iteration_bounds = array<i64: 2>, scalar_prefetch = 0 : i64, scratch_operands = 0 : i64, tpu.core_type = #tpu.core_type<tc>, window_params = [{transform_indices = @transform_0, window_bounds = array<i64: 8, 128>}, {pipeline_mode = #tpu.pipeline_mode<synchronous>, transform_indices = @transform_1, window_bounds = array<i64: 128, 128>}, {pipeline_mode = #tpu.pipeline_mode<synchronous>, transform_indices = @transform_2, window_bounds = array<i64: 1, 128>}, {pipeline_mode = #tpu.pipeline_mode<synchronous>, transform_indices = @transform_3, window_bounds = array<i64: 128, 128>}, {pipeline_mode = #tpu.pipeline_mode<synchronous>, transform_indices = @transform_4, window_bounds = array<i64: 1, 128>}, {pipeline_mode = #tpu.pipeline_mode<synchronous>, transform_indices = @transform_5, window_bounds = array<i64: 128, 128>}, {pipeline_mode = #tpu.pipeline_mode<synchronous>, transform_indices = @transform_6, window_bounds = array<i64: 1, 128>}, {transform_indices = @transform_7, window_bounds = array<i64: 8, 128>}]} {
    %c0 = arith.constant 0 : index
    %c0_0 = arith.constant 0 : index
    %0 = vector.load %arg1[%c0, %c0_0] : memref<8x128xf32, #tpu.memory_space<vmem>>, vector<8x128xf32>
    %c0_1 = arith.constant 0 : index
    %c0_2 = arith.constant 0 : index
    %1 = vector.load %arg2[%c0_1, %c0_2] : memref<128x128xf32, #tpu.memory_space<vmem>>, vector<128x128xf32>
    %c0_3 = arith.constant 0 : index
    %c0_4 = arith.constant 0 : index
    %2 = vector.load %arg3[%c0_3, %c0_4] : memref<1x128xf32, #tpu.memory_space<vmem>>, vector<1x128xf32>
    %cst = arith.constant dense<0.000000e+00> : vector<8x128xf32>
    %3 = tpu.matmul %0, %1, %cst {dimension_numbers = #tpu.dot_dimension_numbers<[1], [0], [0], [1], [0, 0, 1, 1], [], []>} : vector<8x128xf32>, vector<128x128xf32>, vector<8x128xf32> -> vector<8x128xf32>
    %4 = vector.broadcast %2 : vector<1x128xf32> to vector<8x128xf32>
    %5 = arith.addf %3, %4 : vector<8x128xf32>
    %cst_5 = arith.constant 0.000000e+00 : f32
    %6 = vector.broadcast %cst_5 : f32 to vector<8x128xf32>
    %7 = arith.maximumf %5, %6 : vector<8x128xf32>
    %c0_6 = arith.constant 0 : index
    %c0_7 = arith.constant 0 : index
    %8 = vector.load %arg4[%c0_6, %c0_7] : memref<128x128xf32, #tpu.memory_space<vmem>>, vector<128x128xf32>
    %c0_8 = arith.constant 0 : index
    %c0_9 = arith.constant 0 : index
    %9 = vector.load %arg5[%c0_8, %c0_9] : memref<1x128xf32, #tpu.memory_space<vmem>>, vector<1x128xf32>
    %cst_10 = arith.constant dense<0.000000e+00> : vector<8x128xf32>
    %10 = tpu.matmul %7, %8, %cst_10 {dimension_numbers = #tpu.dot_dimension_numbers<[1], [0], [0], [1], [0, 0, 1, 1], [], []>} : vector<8x128xf32>, vector<128x128xf32>, vector<8x128xf32> -> vector<8x128xf32>
    %11 = vector.broadcast %9 : vector<1x128xf32> to vector<8x128xf32>
    %12 = arith.addf %10, %11 : vector<8x128xf32>
    %cst_11 = arith.constant 0.000000e+00 : f32
    %13 = vector.broadcast %cst_11 : f32 to vector<8x128xf32>
    %14 = arith.maximumf %12, %13 : vector<8x128xf32>
    %c0_12 = arith.constant 0 : index
    %c0_13 = arith.constant 0 : index
    %15 = vector.load %arg6[%c0_12, %c0_13] : memref<128x128xf32, #tpu.memory_space<vmem>>, vector<128x128xf32>
    %c0_14 = arith.constant 0 : index
    %c0_15 = arith.constant 0 : index
    %16 = vector.load %arg7[%c0_14, %c0_15] : memref<1x128xf32, #tpu.memory_space<vmem>>, vector<1x128xf32>
    %cst_16 = arith.constant dense<0.000000e+00> : vector<8x128xf32>
    %17 = tpu.matmul %14, %15, %cst_16 {dimension_numbers = #tpu.dot_dimension_numbers<[1], [0], [0], [1], [0, 0, 1, 1], [], []>} : vector<8x128xf32>, vector<128x128xf32>, vector<8x128xf32> -> vector<8x128xf32>
    %18 = vector.broadcast %16 : vector<1x128xf32> to vector<8x128xf32>
    %19 = arith.addf %17, %18 : vector<8x128xf32>
    %c0_17 = arith.constant 0 : index
    %c0_18 = arith.constant 0 : index
    %20 = vector.load %arg8[%c0_17, %c0_18] : memref<8x128xf32, #tpu.memory_space<vmem>>, vector<8x128xf32>
    tpu.vector_store %arg8[%c0_17, %c0_18], %19 {strides = array<i32>} : memref<8x128xf32, #tpu.memory_space<vmem>>, vector<8x128xf32>,
    return
  }
  func.func @transform_0(%arg0: i32) -> (i32, i32) {
    %c0_i32 = arith.constant 0 : i32
    %c0_i32_0 = arith.constant 0 : i32
    return %arg0, %c0_i32 : i32, i32
  }
  func.func @transform_1(%arg0: i32) -> (i32, i32) {
    %c0_i32 = arith.constant 0 : i32
    %c0_i32_0 = arith.constant 0 : i32
    %c0_i32_1 = arith.constant 0 : i32
    return %c0_i32, %c0_i32_0 : i32, i32
  }
  func.func @transform_2(%arg0: i32) -> (i32, i32) {
    %c0_i32 = arith.constant 0 : i32
    %c0_i32_0 = arith.constant 0 : i32
    %c0_i32_1 = arith.constant 0 : i32
    return %c0_i32, %c0_i32_0 : i32, i32
  }
  func.func @transform_3(%arg0: i32) -> (i32, i32) {
    %c0_i32 = arith.constant 0 : i32
    %c0_i32_0 = arith.constant 0 : i32
    %c0_i32_1 = arith.constant 0 : i32
    return %c0_i32, %c0_i32_0 : i32, i32
  }
  func.func @transform_4(%arg0: i32) -> (i32, i32) {
    %c0_i32 = arith.constant 0 : i32
    %c0_i32_0 = arith.constant 0 : i32
    %c0_i32_1 = arith.constant 0 : i32
    return %c0_i32, %c0_i32_0 : i32, i32
  }
  func.func @transform_5(%arg0: i32) -> (i32, i32) {
    %c0_i32 = arith.constant 0 : i32
    %c0_i32_0 = arith.constant 0 : i32
    %c0_i32_1 = arith.constant 0 : i32
    return %c0_i32, %c0_i32_0 : i32, i32
  }
  func.func @transform_6(%arg0: i32) -> (i32, i32) {
    %c0_i32 = arith.constant 0 : i32
    %c0_i32_0 = arith.constant 0 : i32
    %c0_i32_1 = arith.constant 0 : i32
    return %c0_i32, %c0_i32_0 : i32, i32
  }
  func.func @transform_7(%arg0: i32) -> (i32, i32) {
    %c0_i32 = arith.constant 0 : i32
    %c0_i32_0 = arith.constant 0 : i32
    return %arg0, %c0_i32 : i32, i32
  }
}

module attributes {stable_mosaic.version = 11 : i64} {
  func.func @_resident_mlp_kernel(%arg0: i32, %arg1: memref<8x128xf32, #tpu.memory_space<vmem>>, %arg2: memref<128x128xf32, #tpu.memory_space<vmem>>, %arg3: memref<1x128xf32, #tpu.memory_space<vmem>>, %arg4: memref<128x128xf32, #tpu.memory_space<vmem>>, %arg5: memref<1x128xf32, #tpu.memory_space<vmem>>, %arg6: memref<128x128xf32, #tpu.memory_space<vmem>>, %arg7: memref<1x128xf32, #tpu.memory_space<vmem>>, %arg8: memref<8x128xf32, #tpu.memory_space<vmem>>) attributes {dimension_semantics = [#tpu.dimension_semantics<parallel>], iteration_bounds = array<i64: 2>, scalar_prefetch = 0 : i64, scratch_operands = 0 : i64, tpu.core_type = #tpu.core_type<tc>, window_params = [{transform_indices = @transform_0, window_bounds = array<i64: 8, 128>}, {pipeline_mode = #tpu.pipeline_mode<synchronous>, transform_indices = @transform_1, window_bounds = array<i64: 128, 128>}, {pipeline_mode = #tpu.pipeline_mode<synchronous>, transform_indices = @transform_2, window_bounds = array<i64: 1, 128>}, {pipeline_mode = #tpu.pipeline_mode<synchronous>, transform_indices = @transform_3, window_bounds = array<i64: 128, 128>}, {pipeline_mode = #tpu.pipeline_mode<synchronous>, transform_indices = @transform_4, window_bounds = array<i64: 1, 128>}, {pipeline_mode = #tpu.pipeline_mode<synchronous>, transform_indices = @transform_5, window_bounds = array<i64: 128, 128>}, {pipeline_mode = #tpu.pipeline_mode<synchronous>, transform_indices = @transform_6, window_bounds = array<i64: 1, 128>}, {transform_indices = @transform_7, window_bounds = array<i64: 8, 128>}]} {
    %c0 = arith.constant 0 : index
    %c0_0 = arith.constant 0 : index
    %0 = vector.load %arg1[%c0, %c0_0] : memref<8x128xf32, #tpu.memory_space<vmem>>, vector<8x128xf32>
    %c0_1 = arith.constant 0 : index
    %c0_2 = arith.constant 0 : index
    %1 = vector.load %arg2[%c0_1, %c0_2] : memref<128x128xf32, #tpu.memory_space<vmem>>, vector<128x128xf32>
    %c0_3 = arith.constant 0 : index
    %c0_4 = arith.constant 0 : index
    %2 = vector.load %arg3[%c0_3, %c0_4] : memref<1x128xf32, #tpu.memory_space<vmem>>, vector<1x128xf32>
    %cst = arith.constant dense<0.000000e+00> : vector<8x128xf32>
    %3 = tpu.matmul %0, %1, %cst {dimension_numbers = #tpu.dot_dimension_numbers<[1], [0], [0], [1], [0, 0, 1, 1], [], []>} : vector<8x128xf32>, vector<128x128xf32>, vector<8x128xf32> -> vector<8x128xf32>
    %4 = vector.broadcast %2 : vector<1x128xf32> to vector<8x128xf32>
    %5 = arith.addf %3, %4 : vector<8x128xf32>
    %cst_5 = arith.constant 0.000000e+00 : f32
    %6 = vector.broadcast %cst_5 : f32 to vector<8x128xf32>
    %7 = arith.maximumf %5, %6 : vector<8x128xf32>
    %c0_6 = arith.constant 0 : index
    %c0_7 = arith.constant 0 : index
    %8 = vector.load %arg4[%c0_6, %c0_7] : memref<128x128xf32, #tpu.memory_space<vmem>>, vector<128x128xf32>
    %c0_8 = arith.constant 0 : index
    %c0_9 = arith.constant 0 : index
    %9 = vector.load %arg5[%c0_8, %c0_9] : memref<1x128xf32, #tpu.memory_space<vmem>>, vector<1x128xf32>
    %cst_10 = arith.constant dense<0.000000e+00> : vector<8x128xf32>
    %10 = tpu.matmul %7, %8, %cst_10 {dimension_numbers = #tpu.dot_dimension_numbers<[1], [0], [0], [1], [0, 0, 1, 1], [], []>} : vector<8x128xf32>, vector<128x128xf32>, vector<8x128xf32> -> vector<8x128xf32>
    %11 = vector.broadcast %9 : vector<1x128xf32> to vector<8x128xf32>
    %12 = arith.addf %10, %11 : vector<8x128xf32>
    %cst_11 = arith.constant 0.000000e+00 : f32
    %13 = vector.broadcast %cst_11 : f32 to vector<8x128xf32>
    %14 = arith.maximumf %12, %13 : vector<8x128xf32>
    %c0_12 = arith.constant 0 : index
    %c0_13 = arith.constant 0 : index
    %15 = vector.load %arg6[%c0_12, %c0_13] : memref<128x128xf32, #tpu.memory_space<vmem>>, vector<128x128xf32>
    %c0_14 = arith.constant 0 : index
    %c0_15 = arith.constant 0 : index
    %16 = vector.load %arg7[%c0_14, %c0_15] : memref<1x128xf32, #tpu.memory_space<vmem>>, vector<1x128xf32>
    %cst_16 = arith.constant dense<0.000000e+00> : vector<8x128xf32>
    %17 = tpu.matmul %14, %15, %cst_16 {dimension_numbers = #tpu.dot_dimension_numbers<[1], [0], [0], [1], [0, 0, 1, 1], [], []>} : vector<8x128xf32>, vector<128x128xf32>, vector<8x128xf32> -> vector<8x128xf32>
    %18 = vector.broadcast %16 : vector<1x128xf32> to vector<8x128xf32>
    %19 = arith.addf %17, %18 : vector<8x128xf32>
    %c0_17 = arith.constant 0 : index
    %c0_18 = arith.constant 0 : index
    %20 = vector.load %arg8[%c0_17, %c0_18] : memref<8x128xf32, #tpu.memory_space<vmem>>, vector<8x128xf32>
    tpu.vector_store %arg8[%c0_17, %c0_18], %19 {strides = array<i32>} : memref<8x128xf32, #tpu.memory_space<vmem>>, vector<8x128xf32>,
    return
  }
  func.func @transform_0(%arg0: i32) -> (i32, i32) {
    %c0_i32 = arith.constant 0 : i32
    %c0_i32_0 = arith.constant 0 : i32
    return %arg0, %c0_i32 : i32, i32
  }
  func.func @transform_1(%arg0: i32) -> (i32, i32) {
    %c0_i32 = arith.constant 0 : i32
    %c0_i32_0 = arith.constant 0 : i32
    %c0_i32_1 = arith.constant 0 : i32
    return %c0_i32, %c0_i32_0 : i32, i32
  }
  func.func @transform_2(%arg0: i32) -> (i32, i32) {
    %c0_i32 = arith.constant 0 : i32
    %c0_i32_0 = arith.constant 0 : i32
    %c0_i32_1 = arith.constant 0 : i32
    return %c0_i32, %c0_i32_0 : i32, i32
  }
  func.func @transform_3(%arg0: i32) -> (i32, i32) {
    %c0_i32 = arith.constant 0 : i32
    %c0_i32_0 = arith.constant 0 : i32
    %c0_i32_1 = arith.constant 0 : i32
    return %c0_i32, %c0_i32_0 : i32, i32
  }
  func.func @transform_4(%arg0: i32) -> (i32, i32) {
    %c0_i32 = arith.constant 0 : i32
    %c0_i32_0 = arith.constant 0 : i32
    %c0_i32_1 = arith.constant 0 : i32
    return %c0_i32, %c0_i32_0 : i32, i32
  }
  func.func @transform_5(%arg0: i32) -> (i32, i32) {
    %c0_i32 = arith.constant 0 : i32
    %c0_i32_0 = arith.constant 0 : i32
    %c0_i32_1 = arith.constant 0 : i32
    return %c0_i32, %c0_i32_0 : i32, i32
  }
  func.func @transform_6(%arg0: i32) -> (i32, i32) {
    %c0_i32 = arith.constant 0 : i32
    %c0_i32_0 = arith.constant 0 : i32
    %c0_i32_1 = arith.constant 0 : i32
    return %c0_i32, %c0_i32_0 : i32, i32
  }
  func.func @transform_7(%arg0: i32) -> (i32, i32) {
    %c0_i32 = arith.constant 0 : i32
    %c0_i32_0 = arith.constant 0 : i32
    return %arg0, %c0_i32 : i32, i32
  }
}

module attributes {stable_mosaic.version = 11 : i64} {
  func.func @_resident_mlp_kernel(%arg0: i32, %arg1: memref<8x128xf32, #tpu.memory_space<vmem>>, %arg2: memref<128x128xf32, #tpu.memory_space<vmem>>, %arg3: memref<1x128xf32, #tpu.memory_space<vmem>>, %arg4: memref<8x128xf32, #tpu.memory_space<vmem>>) attributes {dimension_semantics = [#tpu.dimension_semantics<parallel>], iteration_bounds = array<i64: 2>, scalar_prefetch = 0 : i64, scratch_operands = 0 : i64, tpu.core_type = #tpu.core_type<tc>, window_params = [{transform_indices = @transform_0, window_bounds = array<i64: 8, 128>}, {pipeline_mode = #tpu.pipeline_mode<synchronous>, transform_indices = @transform_1, window_bounds = array<i64: 128, 128>}, {pipeline_mode = #tpu.pipeline_mode<synchronous>, transform_indices = @transform_2, window_bounds = array<i64: 1, 128>}, {transform_indices = @transform_3, window_bounds = array<i64: 8, 128>}]} {
    %c0 = arith.constant 0 : index
    %c0_0 = arith.constant 0 : index
    %0 = vector.load %arg1[%c0, %c0_0] : memref<8x128xf32, #tpu.memory_space<vmem>>, vector<8x128xf32>
    %c0_1 = arith.constant 0 : index
    %c0_2 = arith.constant 0 : index
    %1 = vector.load %arg2[%c0_1, %c0_2] : memref<128x128xf32, #tpu.memory_space<vmem>>, vector<128x128xf32>
    %c0_3 = arith.constant 0 : index
    %c0_4 = arith.constant 0 : index
    %2 = vector.load %arg3[%c0_3, %c0_4] : memref<1x128xf32, #tpu.memory_space<vmem>>, vector<1x128xf32>
    %cst = arith.constant dense<0.000000e+00> : vector<8x128xf32>
    %3 = tpu.matmul %0, %1, %cst {dimension_numbers = #tpu.dot_dimension_numbers<[1], [0], [0], [1], [0, 0, 1, 1], [], []>} : vector<8x128xf32>, vector<128x128xf32>, vector<8x128xf32> -> vector<8x128xf32>
    %4 = vector.broadcast %2 : vector<1x128xf32> to vector<8x128xf32>
    %5 = arith.addf %3, %4 : vector<8x128xf32>
    %cst_5 = arith.constant 0.000000e+00 : f32
    %6 = vector.broadcast %cst_5 : f32 to vector<8x128xf32>
    %7 = arith.maximumf %5, %6 : vector<8x128xf32>
    %c0_6 = arith.constant 0 : index
    %c0_7 = arith.constant 0 : index
    %8 = vector.load %arg4[%c0_6, %c0_7] : memref<8x128xf32, #tpu.memory_space<vmem>>, vector<8x128xf32>
    tpu.vector_store %arg4[%c0_6, %c0_7], %7 {strides = array<i32>} : memref<8x128xf32, #tpu.memory_space<vmem>>, vector<8x128xf32>,
    return
  }
  func.func @transform_0(%arg0: i32) -> (i32, i32) {
    %c0_i32 = arith.constant 0 : i32
    %c0_i32_0 = arith.constant 0 : i32
    return %arg0, %c0_i32 : i32, i32
  }
  func.func @transform_1(%arg0: i32) -> (i32, i32) {
    %c0_i32 = arith.constant 0 : i32
    %c0_i32_0 = arith.constant 0 : i32
    %c0_i32_1 = arith.constant 0 : i32
    return %c0_i32, %c0_i32_0 : i32, i32
  }
  func.func @transform_2(%arg0: i32) -> (i32, i32) {
    %c0_i32 = arith.constant 0 : i32
    %c0_i32_0 = arith.constant 0 : i32
    %c0_i32_1 = arith.constant 0 : i32
    return %c0_i32, %c0_i32_0 : i32, i32
  }
  func.func @transform_3(%arg0: i32) -> (i32, i32) {
    %c0_i32 = arith.constant 0 : i32
    %c0_i32_0 = arith.constant 0 : i32
    return %arg0, %c0_i32 : i32, i32
  }
}

module attributes {stable_mosaic.version = 11 : i64} {
  func.func @_resident_mlp_kernel(%arg0: i32, %arg1: memref<8x128xf32, #tpu.memory_space<vmem>>, %arg2: memref<128x128xf32, #tpu.memory_space<vmem>>, %arg3: memref<1x128xf32, #tpu.memory_space<vmem>>, %arg4: memref<8x128xf32, #tpu.memory_space<vmem>>) attributes {dimension_semantics = [#tpu.dimension_semantics<parallel>], iteration_bounds = array<i64: 2>, scalar_prefetch = 0 : i64, scratch_operands = 0 : i64, tpu.core_type = #tpu.core_type<tc>, window_params = [{transform_indices = @transform_0, window_bounds = array<i64: 8, 128>}, {pipeline_mode = #tpu.pipeline_mode<synchronous>, transform_indices = @transform_1, window_bounds = array<i64: 128, 128>}, {pipeline_mode = #tpu.pipeline_mode<synchronous>, transform_indices = @transform_2, window_bounds = array<i64: 1, 128>}, {transform_indices = @transform_3, window_bounds = array<i64: 8, 128>}]} {
    %c0 = arith.constant 0 : index
    %c0_0 = arith.constant 0 : index
    %0 = vector.load %arg1[%c0, %c0_0] : memref<8x128xf32, #tpu.memory_space<vmem>>, vector<8x128xf32>
    %c0_1 = arith.constant 0 : index
    %c0_2 = arith.constant 0 : index
    %1 = vector.load %arg2[%c0_1, %c0_2] : memref<128x128xf32, #tpu.memory_space<vmem>>, vector<128x128xf32>
    %c0_3 = arith.constant 0 : index
    %c0_4 = arith.constant 0 : index
    %2 = vector.load %arg3[%c0_3, %c0_4] : memref<1x128xf32, #tpu.memory_space<vmem>>, vector<1x128xf32>
    %cst = arith.constant dense<0.000000e+00> : vector<8x128xf32>
    %3 = tpu.matmul %0, %1, %cst {dimension_numbers = #tpu.dot_dimension_numbers<[1], [0], [0], [1], [0, 0, 1, 1], [], []>} : vector<8x128xf32>, vector<128x128xf32>, vector<8x128xf32> -> vector<8x128xf32>
    %4 = vector.broadcast %2 : vector<1x128xf32> to vector<8x128xf32>
    %5 = arith.addf %3, %4 : vector<8x128xf32>
    %cst_5 = arith.constant 0.000000e+00 : f32
    %6 = vector.broadcast %cst_5 : f32 to vector<8x128xf32>
    %7 = arith.maximumf %5, %6 : vector<8x128xf32>
    %c0_6 = arith.constant 0 : index
    %c0_7 = arith.constant 0 : index
    %8 = vector.load %arg4[%c0_6, %c0_7] : memref<8x128xf32, #tpu.memory_space<vmem>>, vector<8x128xf32>
    tpu.vector_store %arg4[%c0_6, %c0_7], %7 {strides = array<i32>} : memref<8x128xf32, #tpu.memory_space<vmem>>, vector<8x128xf32>,
    return
  }
  func.func @transform_0(%arg0: i32) -> (i32, i32) {
    %c0_i32 = arith.constant 0 : i32
    %c0_i32_0 = arith.constant 0 : i32
    return %arg0, %c0_i32 : i32, i32
  }
  func.func @transform_1(%arg0: i32) -> (i32, i32) {
    %c0_i32 = arith.constant 0 : i32
    %c0_i32_0 = arith.constant 0 : i32
    %c0_i32_1 = arith.constant 0 : i32
    return %c0_i32, %c0_i32_0 : i32, i32
  }
  func.func @transform_2(%arg0: i32) -> (i32, i32) {
    %c0_i32 = arith.constant 0 : i32
    %c0_i32_0 = arith.constant 0 : i32
    %c0_i32_1 = arith.constant 0 : i32
    return %c0_i32, %c0_i32_0 : i32, i32
  }
  func.func @transform_3(%arg0: i32) -> (i32, i32) {
    %c0_i32 = arith.constant 0 : i32
    %c0_i32_0 = arith.constant 0 : i32
    return %arg0, %c0_i32 : i32, i32
  }
}

module attributes {stable_mosaic.version = 11 : i64} {
  func.func @_linear_kernel_f32out(%arg0: i32, %arg1: i32, %arg2: i32, %arg3: memref<8x128xf32, #tpu.memory_space<vmem>>, %arg4: memref<128x128xf32, #tpu.memory_space<vmem>>, %arg5: memref<1x128xf32, #tpu.memory_space<vmem>>, %arg6: memref<8x128xf32, #tpu.memory_space<vmem>>) attributes {dimension_semantics = [#tpu.dimension_semantics<parallel>, #tpu.dimension_semantics<parallel>, #tpu.dimension_semantics<arbitrary>], iteration_bounds = array<i64: 2, 1, 1>, scalar_prefetch = 0 : i64, scratch_operands = 0 : i64, tpu.core_type = #tpu.core_type<tc>, window_params = [{transform_indices = @transform_0, window_bounds = array<i64: 8, 128>}, {transform_indices = @transform_1, window_bounds = array<i64: 128, 128>}, {transform_indices = @transform_2, window_bounds = array<i64: 1, 128>}, {transform_indices = @transform_3, window_bounds = array<i64: 8, 128>}]} {
    %c0_i32 = arith.constant 0 : i32
    %0 = arith.cmpi eq, %arg2, %c0_i32 : i32
    %1 = arith.extui %0 : i1 to i32
    %c0_i32_0 = arith.constant 0 : i32
    %2 = arith.cmpi ne, %1, %c0_i32_0 : i32
    scf.if %2 {
      %cst_10 = arith.constant 0.000000e+00 : f32
      %12 = vector.broadcast %cst_10 : f32 to vector<8x128xf32>
      %c0_11 = arith.constant 0 : index
      %c0_12 = arith.constant 0 : index
      %13 = vector.load %arg6[%c0_11, %c0_12] : memref<8x128xf32, #tpu.memory_space<vmem>>, vector<8x128xf32>
      tpu.vector_store %arg6[%c0_11, %c0_12], %12 {strides = array<i32>} : memref<8x128xf32, #tpu.memory_space<vmem>>, vector<8x128xf32>,
    } else {
    }
    %c0 = arith.constant 0 : index
    %c0_1 = arith.constant 0 : index
    %3 = vector.load %arg6[%c0, %c0_1] : memref<8x128xf32, #tpu.memory_space<vmem>>, vector<8x128xf32>
    %c0_2 = arith.constant 0 : index
    %c0_3 = arith.constant 0 : index
    %4 = vector.load %arg3[%c0_2, %c0_3] : memref<8x128xf32, #tpu.memory_space<vmem>>, vector<8x128xf32>
    %c0_4 = arith.constant 0 : index
    %c0_5 = arith.constant 0 : index
    %5 = vector.load %arg4[%c0_4, %c0_5] : memref<128x128xf32, #tpu.memory_space<vmem>>, vector<128x128xf32>
    %cst = arith.constant dense<0.000000e+00> : vector<8x128xf32>
    %6 = tpu.matmul %4, %5, %cst {dimension_numbers = #tpu.dot_dimension_numbers<[1], [0], [0], [1], [0, 0, 1, 1], [], []>} : vector<8x128xf32>, vector<128x128xf32>, vector<8x128xf32> -> vector<8x128xf32>
    %7 = arith.addf %3, %6 : vector<8x128xf32>
    %c0_6 = arith.constant 0 : index
    %c0_7 = arith.constant 0 : index
    %8 = vector.load %arg6[%c0_6, %c0_7] : memref<8x128xf32, #tpu.memory_space<vmem>>, vector<8x128xf32>
    tpu.vector_store %arg6[%c0_6, %c0_7], %7 {strides = array<i32>} : memref<8x128xf32, #tpu.memory_space<vmem>>, vector<8x128xf32>,
    %c0_i32_8 = arith.constant 0 : i32
    %9 = arith.cmpi eq, %arg2, %c0_i32_8 : i32
    %10 = arith.extui %9 : i1 to i32
    %c0_i32_9 = arith.constant 0 : i32
    %11 = arith.cmpi ne, %10, %c0_i32_9 : i32
    scf.if %11 {
      %c0_10 = arith.constant 0 : index
      %c0_11 = arith.constant 0 : index
      %12 = vector.load %arg6[%c0_10, %c0_11] : memref<8x128xf32, #tpu.memory_space<vmem>>, vector<8x128xf32>
      %c0_12 = arith.constant 0 : index
      %c0_13 = arith.constant 0 : index
      %13 = vector.load %arg5[%c0_12, %c0_13] : memref<1x128xf32, #tpu.memory_space<vmem>>, vector<1x128xf32>
      %14 = vector.broadcast %13 : vector<1x128xf32> to vector<8x128xf32>
      %15 = arith.addf %12, %14 : vector<8x128xf32>
      %cst_14 = arith.constant 0.000000e+00 : f32
      %16 = vector.broadcast %cst_14 : f32 to vector<8x128xf32>
      %17 = arith.maximumf %15, %16 : vector<8x128xf32>
      %c0_15 = arith.constant 0 : index
      %c0_16 = arith.constant 0 : index
      %18 = vector.load %arg6[%c0_15, %c0_16] : memref<8x128xf32, #tpu.memory_space<vmem>>, vector<8x128xf32>
      tpu.vector_store %arg6[%c0_15, %c0_16], %17 {strides = array<i32>} : memref<8x128xf32, #tpu.memory_space<vmem>>, vector<8x128xf32>,
    } else {
    }
    return
  }
  func.func @transform_0(%arg0: i32, %arg1: i32, %arg2: i32) -> (i32, i32) {
    %c0_i32 = arith.constant 0 : i32
    return %arg0, %arg2 : i32, i32
  }
  func.func @transform_1(%arg0: i32, %arg1: i32, %arg2: i32) -> (i32, i32) {
    %c0_i32 = arith.constant 0 : i32
    return %arg2, %arg1 : i32, i32
  }
  func.func @transform_2(%arg0: i32, %arg1: i32, %arg2: i32) -> (i32, i32) {
    %c0_i32 = arith.constant 0 : i32
    %c0_i32_0 = arith.constant 0 : i32
    return %c0_i32, %arg1 : i32, i32
  }
  func.func @transform_3(%arg0: i32, %arg1: i32, %arg2: i32) -> (i32, i32) {
    %c0_i32 = arith.constant 0 : i32
    return %arg0, %arg1 : i32, i32
  }
}

</mosaic_0001>

<llo_original>
// kernel: tpu_custom_call.1
$region0: #{tpu_custom_call.1}
  #allocation0 [shape = 'u32[]', space=smem, size = 0x4, offset = 0x4, fixed_abs, tag = 'smem constant byte address 0x4 - core index']
  #allocation1 [shape = 'u32[144,128]{1,0:T(1,128)}', space=vmem, size = 0x12000, scoped, tag = 'internal scratch']
  %s0 = inlined_call_operand.hbm [shape: f32[16,128], index: 0, kind: input, shape index: {}]
  %s1 = inlined_call_operand.hbm [shape: f32[128,128], index: 1, kind: input, shape index: {}]
  %s2 = inlined_call_operand.vmem [shape: f32[1,128], index: 2, kind: input, shape index: {}]
  %s3 = inlined_call_operand.hbm [shape: f32[128,128], index: 3, kind: input, shape index: {}]
  %s4 = inlined_call_operand.vmem [shape: f32[1,128], index: 4, kind: input, shape index: {}]
  %s5 = inlined_call_operand.hbm [shape: f32[128,128], index: 5, kind: input, shape index: {}]
  %s6 = inlined_call_operand.vmem [shape: f32[1,128], index: 6, kind: input, shape index: {}]
  %s7 = inlined_call_operand.hbm [shape: f32[16,128], index: 7, kind: output, shape index: {}]
  %s8 = sld [smem:[#allocation0]]
  $region77: #{tpu_custom_call.1} parent=0
    _
  %s10 = ssub.s32 1, %s8
  %s11 = scalar_select 0, %s10, %s8
  $region1: #{tpu_custom_call.1} parent=0
    #allocation2 [shape = 'u8[8192]{0}', space=vmem, size = 0x2000, scoped, tag = 'input window, operand 0']
    #allocation3 [shape = 's32[2]{0}', space=sflag, size = 0x8, scoped, tag = 'scoped memory for tpu_custom_call.1']
    #allocation4 [shape = 's32[2]{0}', space=sflag, size = 0x8, scoped, tag = 'scoped memory for tpu_custom_call.1']
    #allocation5 [shape = 'u8[65536]{0}', space=vmem, size = 0x10000, scoped, tag = 'input window, operand 1, single buffered']
    #allocation6 [shape = 's32[1]{0}', space=sflag, size = 0x4, scoped, tag = 'scoped memory for tpu_custom_call.1']
    #allocation7 [shape = 'u8[65536]{0}', space=vmem, size = 0x10000, scoped, tag = 'input window, operand 3, single buffered']
    #allocation8 [shape = 'u8[65536]{0}', space=vmem, size = 0x10000, scoped, tag = 'input window, operand 5, single buffered']
    #allocation9 [shape = 's32[1]{0}', space=sflag, size = 0x4, scoped, tag = 'scoped memory for tpu_custom_call.1']
    #allocation10 [shape = 'u8[8192]{0}', space=vmem, size = 0x2000, scoped, tag = 'output window, operand 0']
    %12 = vsyncpa [#allocation3], 0
    %s13 = scalar_lea.sflag [#allocation3], 1
    %14 = vsyncpa %s13, 0
    %15 = vsyncpa [#allocation6], 0
    %16 = vsyncpa [#allocation9], 0
    %17 = vsyncpa [#allocation4], 0
    %s18 = scalar_lea.sflag [#allocation4], 1
    %19 = vsyncpa %s18, 0
    loop: start=0, step=1, limit=4
    $region2: #{tpu_custom_call.1} parent=1 // loop_pre_header
      _
    $region3: #{tpu_custom_call.1} parent=1 // loop_header
      %s21 = sphi 0, %s25
      %p22 = scmp.ge.s32.totalorder %s21, 4
      %s31 = sphi 0, %s33
      %s34 = sphi 0, %s31
      %s35 = sphi 0, %s34
      %s51 = sphi 0, %s35
      %s55 = sphi 0, %s55
      %s57 = sphi 0, %s55
      %s58 = sphi 0, %s57
      %s72 = sphi 0, %s58
      %s76 = sphi 0, %s76
      %s78 = sphi 0, %s76
      %s79 = sphi 0, %s78
      %s93 = sphi 0, %s79
      %s97 = sphi 0, %s97
      %s99 = sphi 0, %s97
      %s100 = sphi 0, %s99
      %s114 = sphi 0, %s100
      %s118 = sphi 0, %s118
      %s120 = sphi 0, %s118
      %s121 = sphi 0, %s120
      %s135 = sphi 0, %s121
      %s139 = sphi 0, %s139
      %s141 = sphi 0, %s139
      %s142 = sphi 0, %s141
      %s156 = sphi 0, %s142
      %s160 = sphi 0, %s160
      %s162 = sphi 0, %s160
      %s163 = sphi 0, %s162
      %s177 = sphi 0, %s163
      %s183 = sphi 0, %s185
      %s186 = sphi 0, %s183
      %s187 = sphi 0, %s186
      %s203 = sphi 0, %s187
    $region4: #{tpu_custom_call.1} parent=1 // loop_header_branch
      %24 = sbr.rel (%p22) target = $region8
    $region5: #{tpu_custom_call.1} parent=1 // loop_body
      %s26 = ssub.s32 %s21, 1
      %s27 = ssub.s32 %s21, 2
      %s28 = sadd.s32 %s21, 1
      %s29 = ssub.s32 %s21, %s28
      %p30 = scmp.eq.s32.totalorder %s29, 0
      %s32 = sadd.s32 %s31, 1
      %s33 = scalar_select %p30, %s31, %s32
      %p36 = pneg %p30
      %p37 = scmp.eq.s32.totalorder %s21, 1
      %p38 = por %p36, %p37
      %p39 = scmp.ne.s32.totalorder %s31, %s34
      %p40 = scmp.eq.s32.totalorder %s21, 0
      %p41 = por %p39, %p40
      %p42 = scmp.ne.s32.totalorder %s31, %s34
      %p43 = scmp.eq.s32.totalorder %s26, 1
      %p44 = por %p42, %p43
      %p45 = scmp.ne.s32.totalorder %s34, %s35
      %p46 = scmp.eq.s32.totalorder %s26, 0
      %p47 = por %p45, %p46
      %p48 = scmp.ne.s32.totalorder %s34, %s35
      %p49 = scmp.eq.s32.totalorder %s27, 1
      %p50 = por %p48, %p49
      %p52 = scmp.ne.s32.totalorder %s35, %s51
      %p53 = scmp.eq.s32.totalorder %s27, 0
      %p54 = por %p52, %p53
      %s56 = sadd.s32 %s55, 1
      %p59 = scmp.eq.s32.totalorder %s21, 1
      %p60 = scmp.ne.s32.totalorder %s55, %s57
      %p61 = scmp.eq.s32.totalorder %s21, 0
      %p62 = por %p60, %p61
      %p63 = scmp.ne.s32.totalorder %s55, %s57
      %p64 = scmp.eq.s32.totalorder %s26, 1
      %p65 = por %p63, %p64
      %p66 = scmp.ne.s32.totalorder %s57, %s58
      %p67 = scmp.eq.s32.totalorder %s26, 0
      %p68 = por %p66, %p67
      %p69 = scmp.ne.s32.totalorder %s57, %s58
      %p70 = scmp.eq.s32.totalorder %s27, 1
      %p71 = por %p69, %p70
      %p73 = scmp.ne.s32.totalorder %s58, %s72
      %p74 = scmp.eq.s32.totalorder %s27, 0
      %p75 = por %p73, %p74
      %s77 = sadd.s32 %s76, 1
      %p80 = scmp.eq.s32.totalorder %s21, 1
      %p81 = scmp.ne.s32.totalorder %s76, %s78
      %p82 = scmp.eq.s32.totalorder %s21, 0
      %p83 = por %p81, %p82
      %p84 = scmp.ne.s32.totalorder %s76, %s78
      %p85 = scmp.eq.s32.totalorder %s26, 1
      %p86 = por %p84, %p85
      %p87 = scmp.ne.s32.totalorder %s78, %s79
      %p88 = scmp.eq.s32.totalorder %s26, 0
      %p89 = por %p87, %p88
      %p90 = scmp.ne.s32.totalorder %s78, %s79
      %p91 = scmp.eq.s32.totalorder %s27, 1
      %p92 = por %p90, %p91
      %p94 = scmp.ne.s32.totalorder %s79, %s93
      %p95 = scmp.eq.s32.totalorder %s27, 0
      %p96 = por %p94, %p95
      %s98 = sadd.s32 %s97, 1
      %p101 = scmp.eq.s32.totalorder %s21, 1
      %p102 = scmp.ne.s32.totalorder %s97, %s99
      %p103 = scmp.eq.s32.totalorder %s21, 0
      %p104 = por %p102, %p103
      %p105 = scmp.ne.s32.totalorder %s97, %s99
      %p106 = scmp.eq.s32.totalorder %s26, 1
      %p107 = por %p105, %p106
      %p108 = scmp.ne.s32.totalorder %s99, %s100
      %p109 = scmp.eq.s32.totalorder %s26, 0
      %p110 = por %p108, %p109
      %p111 = scmp.ne.s32.totalorder %s99, %s100
      %p112 = scmp.eq.s32.totalorder %s27, 1
      %p113 = por %p111, %p112
      %p115 = scmp.ne.s32.totalorder %s100, %s114
      %p116 = scmp.eq.s32.totalorder %s27, 0
      %p117 = por %p115, %p116
      %s119 = sadd.s32 %s118, 1
      %p122 = scmp.eq.s32.totalorder %s21, 1
      %p123 = scmp.ne.s32.totalorder %s118, %s120
      %p124 = scmp.eq.s32.totalorder %s21, 0
      %p125 = por %p123, %p124
      %p126 = scmp.ne.s32.totalorder %s118, %s120
      %p127 = scmp.eq.s32.totalorder %s26, 1
      %p128 = por %p126, %p127
      %p129 = scmp.ne.s32.totalorder %s120, %s121
      %p130 = scmp.eq.s32.totalorder %s26, 0
      %p131 = por %p129, %p130
      %p132 = scmp.ne.s32.totalorder %s120, %s121
      %p133 = scmp.eq.s32.totalorder %s27, 1
      %p134 = por %p132, %p133
      %p136 = scmp.ne.s32.totalorder %s121, %s135
      %p137 = scmp.eq.s32.totalorder %s27, 0
      %p138 = por %p136, %p137
      %s140 = sadd.s32 %s139, 1
      %p143 = scmp.eq.s32.totalorder %s21, 1
      %p144 = scmp.ne.s32.totalorder %s139, %s141
      %p145 = scmp.eq.s32.totalorder %s21, 0
      %p146 = por %p144, %p145
      %p147 = scmp.ne.s32.totalorder %s139, %s141
      %p148 = scmp.eq.s32.totalorder %s26, 1
      %p149 = por %p147, %p148
      %p150 = scmp.ne.s32.totalorder %s141, %s142
      %p151 = scmp.eq.s32.totalorder %s26, 0
      %p152 = por %p150, %p151
      %p153 = scmp.ne.s32.totalorder %s141, %s142
      %p154 = scmp.eq.s32.totalorder %s27, 1
      %p155 = por %p153, %p154
      %p157 = scmp.ne.s32.totalorder %s142, %s156
      %p158 = scmp.eq.s32.totalorder %s27, 0
      %p159 = por %p157, %p158
      %s161 = sadd.s32 %s160, 1
      %p164 = scmp.eq.s32.totalorder %s21, 1
      %p165 = scmp.ne.s32.totalorder %s160, %s162
      %p166 = scmp.eq.s32.totalorder %s21, 0
      %p167 = por %p165, %p166
      %p168 = scmp.ne.s32.totalorder %s160, %s162
      %p169 = scmp.eq.s32.totalorder %s26, 1
      %p170 = por %p168, %p169
      %p171 = scmp.ne.s32.totalorder %s162, %s163
      %p172 = scmp.eq.s32.totalorder %s26, 0
      %p173 = por %p171, %p172
      %p174 = scmp.ne.s32.totalorder %s162, %s163
      %p175 = scmp.eq.s32.totalorder %s27, 1
      %p176 = por %p174, %p175
      %p178 = scmp.ne.s32.totalorder %s163, %s177
      %p179 = scmp.eq.s32.totalorder %s27, 0
      %p180 = por %p178, %p179
      %s181 = ssub.s32 %s21, %s28
      %p182 = scmp.eq.s32.totalorder %s181, 0
      %s184 = sadd.s32 %s183, 1
      %s185 = scalar_select %p182, %s183, %s184
      %p188 = pneg %p182
      %p189 = scmp.eq.s32.totalorder %s21, 1
      %p190 = por %p188, %p189
      %p191 = scmp.ne.s32.totalorder %s183, %s186
      %p192 = scmp.eq.s32.totalorder %s21, 0
      %p193 = por %p191, %p192
      %p194 = scmp.ne.s32.totalorder %s183, %s186
      %p195 = scmp.eq.s32.totalorder %s26, 1
      %p196 = por %p194, %p195
      %p197 = scmp.ne.s32.totalorder %s186, %s187
      %p198 = scmp.eq.s32.totalorder %s26, 0
      %p199 = por %p197, %p198
      %p200 = scmp.ne.s32.totalorder %s186, %s187
      %p201 = scmp.eq.s32.totalorder %s27, 1
      %p202 = por %p200, %p201
      %p204 = scmp.ne.s32.totalorder %s187, %s203
      %p205 = scmp.eq.s32.totalorder %s27, 0
      %p206 = por %p204, %p205
      %p207 = scmp.le.s32.totalorder 1, %s21
      %p208 = scmp.lt.s32.totalorder %s21, 3
      %p209 = pnand %p207, %p208
      %p210 = pneg %p209
      // Predicated region
      $region9: #{tpu_custom_call.1} parent=5 // pred_check
        _
      $region10: #{tpu_custom_call.1} parent=5 // pred_check_branch
        %212 = sbr.rel (%p209) target = $region12
      $region11: #{tpu_custom_call.1} parent=5 // pred_region
        %s213 = ssub.s32 %s21, 1
        // Predicated region
        $region13: #{tpu_custom_call.1} parent=11 // pred_check
          %p214 = pneg %p68
        $region14: #{tpu_custom_call.1} parent=11 // pred_check_branch
          %216 = sbr.rel (%p214) target = $region16
        $region15: #{tpu_custom_call.1} parent=11 // pred_region
          %s218 = ssub.s32 2048, 2048
          %219 = vsyncadd [#allocation6], %s218
          %s220 = sshll.u32 [#allocation5], 4
          %s221 = int_to_ptr.vmem [resolvable:$true] %s220
          %226 = dma.hbm_to_vmem [thread:$0]  %s1, 2048, %s221, [#allocation6], 128, 128, 8
        $region16: #{tpu_custom_call.1} parent=11 // pred_fallthru
          _
        // Predicated region
        $region17: #{tpu_custom_call.1} parent=11 // pred_check
          %p227 = pneg %p89
        $region18: #{tpu_custom_call.1} parent=11 // pred_check_branch
          %229 = sbr.rel (%p227) target = $region20
        $region19: #{tpu_custom_call.1} parent=11 // pred_region
          _
        $region20: #{tpu_custom_call.1} parent=11 // pred_fallthru
          _
        // Predicated region
        $region21: #{tpu_custom_call.1} parent=11 // pred_check
          %p230 = pneg %p110
        $region22: #{tpu_custom_call.1} parent=11 // pred_check_branch
          %232 = sbr.rel (%p230) target = $region24
        $region23: #{tpu_custom_call.1} parent=11 // pred_region
          %s234 = ssub.s32 2048, 2048
          %235 = vsyncadd [#allocation6], %s234
          %s236 = sshll.u32 [#allocation7], 4
          %s237 = int_to_ptr.vmem [resolvable:$true] %s236
          %242 = dma.hbm_to_vmem [thread:$0]  %s3, 2048, %s237, [#allocation6], 128, 128, 8
        $region24: #{tpu_custom_call.1} parent=11 // pred_fallthru
          _
        // Predicated region
        $region25: #{tpu_custom_call.1} parent=11 // pred_check
          %p243 = pneg %p131
        $region26: #{tpu_custom_call.1} parent=11 // pred_check_branch
          %245 = sbr.rel (%p243) target = $region28
        $region27: #{tpu_custom_call.1} parent=11 // pred_region
          _
        $region28: #{tpu_custom_call.1} parent=11 // pred_fallthru
          _
        // Predicated region
        $region29: #{tpu_custom_call.1} parent=11 // pred_check
          %p246 = pneg %p152
        $region30: #{tpu_custom_call.1} parent=11 // pred_check_branch
          %248 = sbr.rel (%p246) target = $region32
        $region31: #{tpu_custom_call.1} parent=11 // pred_region
          %s250 = ssub.s32 2048, 2048
          %251 = vsyncadd [#allocation9], %s250
          %s252 = sshll.u32 [#allocation8], 4
          %s253 = int_to_ptr.vmem [resolvable:$true] %s252
          %258 = dma.hbm_to_vmem [thread:$0]  %s5, 2048, %s253, [#allocation9], 128, 128, 8
        $region32: #{tpu_custom_call.1} parent=11 // pred_fallthru
          _
        // Predicated region
        $region33: #{tpu_custom_call.1} parent=11 // pred_check
          %p259 = pneg %p173
        $region34: #{tpu_custom_call.1} parent=11 // pred_check_branch
          %261 = sbr.rel (%p259) target = $region36
        $region35: #{tpu_custom_call.1} parent=11 // pred_region
          _
        $region36: #{tpu_custom_call.1} parent=11 // pred_fallthru
          _
      $region12: #{tpu_custom_call.1} parent=5 // pred_fallthru
        _
      %p262 = scmp.lt.s32.totalorder %s21, 2
      // Predicated region
      $region37: #{tpu_custom_call.1} parent=5 // pred_check
        %p263 = pneg %p262
      $region38: #{tpu_custom_call.1} parent=5 // pred_check_branch
        %265 = sbr.rel (%p263) target = $region40
      $region39: #{tpu_custom_call.1} parent=5 // pred_region
        // Predicated region
        $region41: #{tpu_custom_call.1} parent=39 // pred_check
          %p266 = pneg %p41
        $region42: #{tpu_custom_call.1} parent=39 // pred_check_branch
          %268 = sbr.rel (%p266) target = $region44
        $region43: #{tpu_custom_call.1} parent=39 // pred_region
          %s269 = sand.u32 %s31, 1
          %s270 = scalar_lea.sflag [#allocation3], %s269
          %s271 = sand.u32 %s31, 1
          %s272 = smul.addr %s271, 8
          %s273 = scalar_lea.vmem [#allocation2], %s272
          %s275 = ssub.s32 128, 128
          %276 = vsyncadd %s270, %s275
          %s277 = smul.addr %s21, 128
          %s278 = scalar_lea.hbm %s0, %s277
          %s280 = sshll.u32 %s273, 4
          %s281 = int_to_ptr.vmem [resolvable:$true] %s280
          %283 = dma.hbm_to_vmem [thread:$0]  %s278, 128, %s281, %s270
        $region44: #{tpu_custom_call.1} parent=39 // pred_fallthru
          _
      $region40: #{tpu_custom_call.1} parent=5 // pred_fallthru
        _
      %p284 = scmp.le.s32.totalorder 1, %s21
      %p285 = scmp.lt.s32.totalorder %s21, 3
      %p286 = pnand %p284, %p285
      %p287 = pneg %p286
      // Predicated region
      $region45: #{tpu_custom_call.1} parent=5 // pred_check
        _
      $region46: #{tpu_custom_call.1} parent=5 // pred_check_branch
        %289 = sbr.rel (%p286) target = $region48
      $region47: #{tpu_custom_call.1} parent=5 // pred_region
        %s290 = ssub.s32 %s21, 1
        %s291 = sand.u32 %s34, 1
        %s292 = scalar_lea.sflag [#allocation3], %s291
        %s293 = sand.u32 %s34, 1
        %s294 = smul.addr %s293, 8
        %s295 = scalar_lea.vmem [#allocation2], %s294
        // Predicated region
        $region49: #{tpu_custom_call.1} parent=47 // pred_check
          %p296 = pneg %p47
        $region50: #{tpu_custom_call.1} parent=47 // pred_check_branch
          %298 = sbr.rel (%p296) target = $region52
        $region51: #{tpu_custom_call.1} parent=47 // pred_region
          %299 = dma.done %s292, 128
        $region52: #{tpu_custom_call.1} parent=47 // pred_fallthru
          _
        // Predicated region
        $region53: #{tpu_custom_call.1} parent=47 // pred_check
          %p300 = pneg %p68
        $region54: #{tpu_custom_call.1} parent=47 // pred_check_branch
          %302 = sbr.rel (%p300) target = $region56
        $region55: #{tpu_custom_call.1} parent=47 // pred_region
          %303 = dma.done [#allocation6], 2048
        $region56: #{tpu_custom_call.1} parent=47 // pred_fallthru
          _
        // Predicated region
        $region57: #{tpu_custom_call.1} parent=47 // pred_check
          %p304 = pneg %p110
        $region58: #{tpu_custom_call.1} parent=47 // pred_check_branch
          %306 = sbr.rel (%p304) target = $region60
        $region59: #{tpu_custom_call.1} parent=47 // pred_region
          %307 = dma.done [#allocation6], 2048
        $region60: #{tpu_custom_call.1} parent=47 // pred_fallthru
          _
        // Predicated region
        $region61: #{tpu_custom_call.1} parent=47 // pred_check
          %p308 = pneg %p152
        $region62: #{tpu_custom_call.1} parent=47 // pred_check_branch
          %310 = sbr.rel (%p308) target = $region64
        $region63: #{tpu_custom_call.1} parent=47 // pred_region
          %311 = dma.done [#allocation9], 2048
        $region64: #{tpu_custom_call.1} parent=47 // pred_fallthru
          _
        %s312 = sand.u32 %s34, 1
        %s313 = scalar_lea.sflag [#allocation3], %s312
        %s314 = sand.u32 %s34, 1
        %s315 = smul.addr %s314, 8
        %s316 = scalar_lea.vmem [#allocation2], %s315
        %p317 = pneg %p47
        %p318 = pneg %p44
        %p319 = pneg %p68
        %p320 = pneg %p65
        %p321 = pneg %p89
        %p322 = pneg %p86
        %p323 = pneg %p110
        %p324 = pneg %p107
        %p325 = pneg %p131
        %p326 = pneg %p128
        %p327 = pneg %p152
        %p328 = pneg %p149
        %p329 = pneg %p173
        %p330 = pneg %p170
        %p331 = pneg %p199
        %p332 = pneg %p196
        %s333 = sand.u32 %s186, 1
        %s334 = scalar_lea.sflag [#allocation4], %s333
        %s335 = sand.u32 %s186, 1
        %s336 = smul.addr %s335, 8
        %s337 = scalar_lea.vmem [#allocation10], %s336
        %v338 = vld [vmem:[%s295] sm:$0xff]
        %v339 = vld [vmem:[#allocation5] sm:$0xff]
        %v340 = vld [vmem:[#allocation5 + $0x8] sm:$0xff]
        %v341 = vld [vmem:[#allocation5 + $0x10] sm:$0xff]
        %v342 = vld [vmem:[#allocation5 + $0x18] sm:$0xff]
        %v343 = vld [vmem:[#allocation5 + $0x20] sm:$0xff]
        %v344 = vld [vmem:[#allocation5 + $0x28] sm:$0xff]
        %v345 = vld [vmem:[#allocation5 + $0x30] sm:$0xff]
        %v346 = vld [vmem:[#allocation5 + $0x38] sm:$0xff]
        %v347 = vld [vmem:[#allocation5 + $0x40] sm:$0xff]
        %v348 = vld [vmem:[#allocation5 + $0x48] sm:$0xff]
        %v349 = vld [vmem:[#allocation5 + $0x50] sm:$0xff]
        %v350 = vld [vmem:[#allocation5 + $0x58] sm:$0xff]
        %v351 = vld [vmem:[#allocation5 + $0x60] sm:$0xff]
        %v352 = vld [vmem:[#allocation5 + $0x68] sm:$0xff]
        %v353 = vld [vmem:[#allocation5 + $0x70] sm:$0xff]
        %v354 = vld [vmem:[#allocation5 + $0x78] sm:$0xff]
        %v355 = vld [vmem:[%s2] sm:$0x1]
        %v357 = vlaneseq
        %v358 = vshrl.u32 %v357, 7
        %v359 = vsub.s32 0, %v358
        %v360 = vrot.slane %v355, %v359
        %362 = vmatprep.subr.mxu0 0.0
        %363 = vmatpush1.msra.mxu0 %v354
        %364 = vmatprep.subr.mxu0 0.0
        %365 = vmatpush1.msra.mxu0 %v353
        %366 = vmatprep.subr.mxu0 0.0
        %367 = vmatpush1.msra.mxu0 %v352
        %368 = vmatprep.subr.mxu0 0.0
        %369 = vmatpush1.msra.mxu0 %v351
        %370 = vmatprep.subr.mxu0 0.0
        %371 = vmatpush1.msra.mxu0 %v350
        %372 = vmatprep.subr.mxu0 0.0
        %373 = vmatpush1.msra.mxu0 %v349
        %374 = vmatprep.subr.mxu0 0.0
        %375 = vmatpush1.msra.mxu0 %v348
        %376 = vmatprep.subr.mxu0 0.0
        %377 = vmatpush1.msra.mxu0 %v347
        %378 = vmatprep.subr.mxu0 0.0
        %379 = vmatpush1.msra.mxu0 %v346
        %380 = vmatprep.subr.mxu0 0.0
        %381 = vmatpush1.msra.mxu0 %v345
        %382 = vmatprep.subr.mxu0 0.0
        %383 = vmatpush1.msra.mxu0 %v344
        %384 = vmatprep.subr.mxu0 0.0
        %385 = vmatpush1.msra.mxu0 %v343
        %386 = vmatprep.subr.mxu0 0.0
        %387 = vmatpush1.msra.mxu0 %v342
        %388 = vmatprep.subr.mxu0 0.0
        %389 = vmatpush1.msra.mxu0 %v341
        %390 = vmatprep.subr.mxu0 0.0
        %391 = vmatpush1.msra.mxu0 %v340
        %392 = vmatprep.subr.mxu0 0.0
        %393 = vmatpush1.msra.mxu0 %v339
        %394 = vmatprep.subr.mxu0 0.0
        %395 = vmatpush2.msra.mxu0 0.0
        %396 = vmatprep.subr.mxu0 0.0
        %397 = vmatpush2.msra.mxu0 0.0
        %398 = vmatprep.subr.mxu0 0.0
        %399 = vmatpush2.msra.mxu0 0.0
        %400 = vmatprep.subr.mxu0 0.0
        %401 = vmatpush2.msra.mxu0 0.0
        %402 = vmatprep.subr.mxu0 0.0
        %403 = vmatpush2.msra.mxu0 0.0
        %404 = vmatprep.subr.mxu0 0.0
        %405 = vmatpush2.msra.mxu0 0.0
        %406 = vmatprep.subr.mxu0 0.0
        %407 = vmatpush2.msra.mxu0 0.0
        %408 = vmatprep.subr.mxu0 0.0
        %409 = vmatpush2.msra.mxu0 0.0
        %410 = vmatprep.subr.mxu0 0.0
        %411 = vmatpush2.msra.mxu0 0.0
        %412 = vmatprep.subr.mxu0 0.0
        %413 = vmatpush2.msra.mxu0 0.0
        %414 = vmatprep.subr.mxu0 0.0
        %415 = vmatpush2.msra.mxu0 0.0
        %416 = vmatprep.subr.mxu0 0.0
        %417 = vmatpush2.msra.mxu0 0.0
        %418 = vmatprep.subr.mxu0 0.0
        %419 = vmatpush2.msra.mxu0 0.0
        %420 = vmatprep.subr.mxu0 0.0
        %421 = vmatpush2.msra.mxu0 0.0
        %422 = vmatprep.subr.mxu0 0.0
        %423 = vmatpush2.msra.mxu0 0.0
        %424 = vmatprep.subr.mxu0 0.0
        %425 = vmatpush2.msra.mxu0 0.0
        %426 = vmatprep.mubr.f32.mxu0 0.0
        %427 = vmatmul.mubr.f32.gmra.mxu0 %v338
        %v428 = vpop.f32.mrf.mxu0
        %v429 = vadd.f32 %v360, %v428
        %v430 = vpop.f32.mrf.mxu0
        %431 = vdwg.mxu0
        %v432 = vmax.f32 %v429, 0.0
        %v433 = vld [vmem:[#allocation7] sm:$0xff]
        %v434 = vld [vmem:[#allocation7 + $0x8] sm:$0xff]
        %v435 = vld [vmem:[#allocation7 + $0x10] sm:$0xff]
        %v436 = vld [vmem:[#allocation7 + $0x18] sm:$0xff]
        %v437 = vld [vmem:[#allocation7 + $0x20] sm:$0xff]
        %v438 = vld [vmem:[#allocation7 + $0x28] sm:$0xff]
        %v439 = vld [vmem:[#allocation7 + $0x30] sm:$0xff]
        %v440 = vld [vmem:[#allocation7 + $0x38] sm:$0xff]
        %v441 = vld [vmem:[#allocation7 + $0x40] sm:$0xff]
        %v442 = vld [vmem:[#allocation7 + $0x48] sm:$0xff]
        %v443 = vld [vmem:[#allocation7 + $0x50] sm:$0xff]
        %v444 = vld [vmem:[#allocation7 + $0x58] sm:$0xff]
        %v445 = vld [vmem:[#allocation7 + $0x60] sm:$0xff]
        %v446 = vld [vmem:[#allocation7 + $0x68] sm:$0xff]
        %v447 = vld [vmem:[#allocation7 + $0x70] sm:$0xff]
        %v448 = vld [vmem:[#allocation7 + $0x78] sm:$0xff]
        %v449 = vld [vmem:[%s4] sm:$0x1]
        %v451 = vlaneseq
        %v452 = vshrl.u32 %v451, 7
        %v453 = vsub.s32 0, %v452
        %v454 = vrot.slane %v449, %v453
        %456 = vmatprep.subr.mxu0 0.0
        %457 = vmatpush1.msra.mxu0 %v448
        %458 = vmatprep.subr.mxu0 0.0
        %459 = vmatpush1.msra.mxu0 %v447
        %460 = vmatprep.subr.mxu0 0.0
        %461 = vmatpush1.msra.mxu0 %v446
        %462 = vmatprep.subr.mxu0 0.0
        %463 = vmatpush1.msra.mxu0 %v445
        %464 = vmatprep.subr.mxu0 0.0
        %465 = vmatpush1.msra.mxu0 %v444
        %466 = vmatprep.subr.mxu0 0.0
        %467 = vmatpush1.msra.mxu0 %v443
        %468 = vmatprep.subr.mxu0 0.0
        %469 = vmatpush1.msra.mxu0 %v442
        %470 = vmatprep.subr.mxu0 0.0
        %471 = vmatpush1.msra.mxu0 %v441
        %472 = vmatprep.subr.mxu0 0.0
        %473 = vmatpush1.msra.mxu0 %v440
        %474 = vmatprep.subr.mxu0 0.0
        %475 = vmatpush1.msra.mxu0 %v439
        %476 = vmatprep.subr.mxu0 0.0
        %477 = vmatpush1.msra.mxu0 %v438
        %478 = vmatprep.subr.mxu0 0.0
        %479 = vmatpush1.msra.mxu0 %v437
        %480 = vmatprep.subr.mxu0 0.0
        %481 = vmatpush1.msra.mxu0 %v436
        %482 = vmatprep.subr.mxu0 0.0
        %483 = vmatpush1.msra.mxu0 %v435
        %484 = vmatprep.subr.mxu0 0.0
        %485 = vmatpush1.msra.mxu0 %v434
        %486 = vmatprep.subr.mxu0 0.0
        %487 = vmatpush1.msra.mxu0 %v433
        %488 = vmatprep.subr.mxu0 0.0
        %489 = vmatpush2.msra.mxu0 0.0
        %490 = vmatprep.subr.mxu0 0.0
        %491 = vmatpush2.msra.mxu0 0.0
        %492 = vmatprep.subr.mxu0 0.0
        %493 = vmatpush2.msra.mxu0 0.0
        %494 = vmatprep.subr.mxu0 0.0
        %495 = vmatpush2.msra.mxu0 0.0
        %496 = vmatprep.subr.mxu0 0.0
        %497 = vmatpush2.msra.mxu0 0.0
        %498 = vmatprep.subr.mxu0 0.0
        %499 = vmatpush2.msra.mxu0 0.0
        %500 = vmatprep.subr.mxu0 0.0
        %501 = vmatpush2.msra.mxu0 0.0
        %502 = vmatprep.subr.mxu0 0.0
        %503 = vmatpush2.msra.mxu0 0.0
        %504 = vmatprep.subr.mxu0 0.0
        %505 = vmatpush2.msra.mxu0 0.0
        %506 = vmatprep.subr.mxu0 0.0
        %507 = vmatpush2.msra.mxu0 0.0
        %508 = vmatprep.subr.mxu0 0.0
        %509 = vmatpush2.msra.mxu0 0.0
        %510 = vmatprep.subr.mxu0 0.0
        %511 = vmatpush2.msra.mxu0 0.0
        %512 = vmatprep.subr.mxu0 0.0
        %513 = vmatpush2.msra.mxu0 0.0
        %514 = vmatprep.subr.mxu0 0.0
        %515 = vmatpush2.msra.mxu0 0.0
        %516 = vmatprep.subr.mxu0 0.0
        %517 = vmatpush2.msra.mxu0 0.0
        %518 = vmatprep.subr.mxu0 0.0
        %519 = vmatpush2.msra.mxu0 0.0
        %520 = vmatprep.mubr.f32.mxu0 0.0
        %521 = vmatmul.mubr.f32.gmra.mxu0 %v432
        %v522 = vpop.f32.mrf.mxu0
        %v523 = vadd.f32 %v454, %v522
        %v524 = vpop.f32.mrf.mxu0
        %525 = vdwg.mxu0
        %v526 = vmax.f32 %v523, 0.0
        %v527 = vld [vmem:[#allocation8] sm:$0xff]
        %v528 = vld [vmem:[#allocation8 + $0x8] sm:$0xff]
        %v529 = vld [vmem:[#allocation8 + $0x10] sm:$0xff]
        %v530 = vld [vmem:[#allocation8 + $0x18] sm:$0xff]
        %v531 = vld [vmem:[#allocation8 + $0x20] sm:$0xff]
        %v532 = vld [vmem:[#allocation8 + $0x28] sm:$0xff]
        %v533 = vld [vmem:[#allocation8 + $0x30] sm:$0xff]
        %v534 = vld [vmem:[#allocation8 + $0x38] sm:$0xff]
        %v535 = vld [vmem:[#allocation8 + $0x40] sm:$0xff]
        %v536 = vld [vmem:[#allocation8 + $0x48] sm:$0xff]
        %v537 = vld [vmem:[#allocation8 + $0x50] sm:$0xff]
        %v538 = vld [vmem:[#allocation8 + $0x58] sm:$0xff]
        %v539 = vld [vmem:[#allocation8 + $0x60] sm:$0xff]
        %v540 = vld [vmem:[#allocation8 + $0x68] sm:$0xff]
        %v541 = vld [vmem:[#allocation8 + $0x70] sm:$0xff]
        %v542 = vld [vmem:[#allocation8 + $0x78] sm:$0xff]
        %v543 = vld [vmem:[%s6] sm:$0x1]
        %v545 = vlaneseq
        %v546 = vshrl.u32 %v545, 7
        %v547 = vsub.s32 0, %v546
        %v548 = vrot.slane %v543, %v547
        %550 = vmatprep.subr.mxu0 0.0
        %551 = vmatpush1.msra.mxu0 %v542
        %552 = vmatprep.subr.mxu0 0.0
        %553 = vmatpush1.msra.mxu0 %v541
        %554 = vmatprep.subr.mxu0 0.0
        %555 = vmatpush1.msra.mxu0 %v540
        %556 = vmatprep.subr.mxu0 0.0
        %557 = vmatpush1.msra.mxu0 %v539
        %558 = vmatprep.subr.mxu0 0.0
        %559 = vmatpush1.msra.mxu0 %v538
        %560 = vmatprep.subr.mxu0 0.0
        %561 = vmatpush1.msra.mxu0 %v537
        %562 = vmatprep.subr.mxu0 0.0
        %563 = vmatpush1.msra.mxu0 %v536
        %564 = vmatprep.subr.mxu0 0.0
        %565 = vmatpush1.msra.mxu0 %v535
        %566 = vmatprep.subr.mxu0 0.0
        %567 = vmatpush1.msra.mxu0 %v534
        %568 = vmatprep.subr.mxu0 0.0
        %569 = vmatpush1.msra.mxu0 %v533
        %570 = vmatprep.subr.mxu0 0.0
        %571 = vmatpush1.msra.mxu0 %v532
        %572 = vmatprep.subr.mxu0 0.0
        %573 = vmatpush1.msra.mxu0 %v531
        %574 = vmatprep.subr.mxu0 0.0
        %575 = vmatpush1.msra.mxu0 %v530
        %576 = vmatprep.subr.mxu0 0.0
        %577 = vmatpush1.msra.mxu0 %v529
        %578 = vmatprep.subr.mxu0 0.0
        %579 = vmatpush1.msra.mxu0 %v528
        %580 = vmatprep.subr.mxu0 0.0
        %581 = vmatpush1.msra.mxu0 %v527
        %582 = vmatprep.subr.mxu0 0.0
        %583 = vmatpush2.msra.mxu0 0.0
        %584 = vmatprep.subr.mxu0 0.0
        %585 = vmatpush2.msra.mxu0 0.0
        %586 = vmatprep.subr.mxu0 0.0
        %587 = vmatpush2.msra.mxu0 0.0
        %588 = vmatprep.subr.mxu0 0.0
        %589 = vmatpush2.msra.mxu0 0.0
        %590 = vmatprep.subr.mxu0 0.0
        %591 = vmatpush2.msra.mxu0 0.0
        %592 = vmatprep.subr.mxu0 0.0
        %593 = vmatpush2.msra.mxu0 0.0
        %594 = vmatprep.subr.mxu0 0.0
        %595 = vmatpush2.msra.mxu0 0.0
        %596 = vmatprep.subr.mxu0 0.0
        %597 = vmatpush2.msra.mxu0 0.0
        %598 = vmatprep.subr.mxu0 0.0
        %599 = vmatpush2.msra.mxu0 0.0
        %600 = vmatprep.subr.mxu0 0.0
        %601 = vmatpush2.msra.mxu0 0.0
        %602 = vmatprep.subr.mxu0 0.0
        %603 = vmatpush2.msra.mxu0 0.0
        %604 = vmatprep.subr.mxu0 0.0
        %605 = vmatpush2.msra.mxu0 0.0
        %606 = vmatprep.subr.mxu0 0.0
        %607 = vmatpush2.msra.mxu0 0.0
        %608 = vmatprep.subr.mxu0 0.0
        %609 = vmatpush2.msra.mxu0 0.0
        %610 = vmatprep.subr.mxu0 0.0
        %611 = vmatpush2.msra.mxu0 0.0
        %612 = vmatprep.subr.mxu0 0.0
        %613 = vmatpush2.msra.mxu0 0.0
        %614 = vmatprep.mubr.f32.mxu0 0.0
        %615 = vmatmul.mubr.f32.gmra.mxu0 %v526
        %v616 = vpop.f32.mrf.mxu0
        %v617 = vadd.f32 %v548, %v616
        %v618 = vpop.f32.mrf.mxu0
        %619 = vdwg.mxu0
        %620 = vst [vmem:[%s337] sm:$0xff] %v617
        %s621 = sand.u32 %s186, 1
        %s622 = scalar_lea.sflag [#allocation4], %s621
        %s623 = sand.u32 %s186, 1
        %s624 = smul.addr %s623, 8
        %s625 = scalar_lea.vmem [#allocation10], %s624
        // Predicated region
        $region65: #{tpu_custom_call.1} parent=47 // pred_check
          %p626 = pneg %p196
        $region66: #{tpu_custom_call.1} parent=47 // pred_check_branch
          %628 = sbr.rel (%p626) target = $region68
        $region67: #{tpu_custom_call.1} parent=47 // pred_region
          %s630 = ssub.s32 128, 128
          %631 = vsyncadd %s622, %s630
          %s632 = smul.addr %s26, 128
          %s633 = scalar_lea.hbm %s7, %s632
          %s635 = sshll.u32 %s625, 4
          %s636 = int_to_ptr.vmem [resolvable:$true] %s635
          %638 = dma.vmem_to_hbm [thread:$0]  %s636, 128, %s633, %s622
        $region68: #{tpu_custom_call.1} parent=47 // pred_fallthru
          _
      $region48: #{tpu_custom_call.1} parent=5 // pred_fallthru
        _
      %p639 = scmp.le.s32.totalorder 2, %s21
      // Predicated region
      $region69: #{tpu_custom_call.1} parent=5 // pred_check
        %p640 = pneg %p639
      $region70: #{tpu_custom_call.1} parent=5 // pred_check_branch
        %642 = sbr.rel (%p640) target = $region72
      $region71: #{tpu_custom_call.1} parent=5 // pred_region
        %s643 = ssub.s32 %s21, 2
        // Predicated region
        $region73: #{tpu_custom_call.1} parent=71 // pred_check
          %p644 = pneg %p202
        $region74: #{tpu_custom_call.1} parent=71 // pred_check_branch
          %646 = sbr.rel (%p644) target = $region76
        $region75: #{tpu_custom_call.1} parent=71 // pred_region
          %s647 = sand.u32 %s187, 1
          %s648 = scalar_lea.sflag [#allocation4], %s647
          %s649 = sand.u32 %s187, 1
          %s650 = smul.addr %s649, 8
          %s651 = scalar_lea.vmem [#allocation10], %s650
          %652 = dma.done %s648, 128
        $region76: #{tpu_custom_call.1} parent=71 // pred_fallthru
          _
      $region72: #{tpu_custom_call.1} parent=5 // pred_fallthru
        _
    $region6: #{tpu_custom_call.1} parent=1 // loop_footer
      %s25 = sadd.s32 1, %s21
    $region7: #{tpu_custom_call.1} parent=1 // loop_footer_branch
      %20 = sbr.rel target = $region3
    $region8: #{tpu_custom_call.1} parent=1 // loop_exit
      _
    %653 = vsyncpa [#allocation3], 1
    %s654 = scalar_lea.sflag [#allocation3], 1
    %655 = vsyncpa %s654, 1
    %656 = vsyncpa [#allocation6], 1
    %657 = vsyncpa [#allocation9], 1
    %658 = vsyncpa [#allocation4], 1
    %s659 = scalar_lea.sflag [#allocation4], 1
    %660 = vsyncpa %s659, 1

// kernel: tpu_custom_call.1
$region0: #{tpu_custom_call.1}
  #allocation0 [shape = 'u32[]', space=smem, size = 0x4, offset = 0x4, fixed_abs, tag = 'smem constant byte address 0x4 - core index']
  #allocation1 [shape = 'u32[144,128]{1,0:T(1,128)}', space=vmem, size = 0x12000, scoped, tag = 'internal scratch']
  %s0 = inlined_call_operand.hbm [shape: f32[16,128], index: 0, kind: input, shape index: {}]
  %s1 = inlined_call_operand.hbm [shape: f32[128,128], index: 1, kind: input, shape index: {}]
  %s2 = inlined_call_operand.vmem [shape: f32[1,128], index: 2, kind: input, shape index: {}]
  %s3 = inlined_call_operand.hbm [shape: f32[128,128], index: 3, kind: input, shape index: {}]
  %s4 = inlined_call_operand.vmem [shape: f32[1,128], index: 4, kind: input, shape index: {}]
  %s5 = inlined_call_operand.hbm [shape: f32[128,128], index: 5, kind: input, shape index: {}]
  %s6 = inlined_call_operand.vmem [shape: f32[1,128], index: 6, kind: input, shape index: {}]
  %s7 = inlined_call_operand.hbm [shape: f32[16,128], index: 7, kind: output, shape index: {}]
  %s8 = sld [smem:[#allocation0]]
  $region77: #{tpu_custom_call.1} parent=0
    _
  %s10 = ssub.s32 1, %s8
  %s11 = scalar_select 0, %s10, %s8
  $region1: #{tpu_custom_call.1} parent=0
    #allocation2 [shape = 'u8[8192]{0}', space=vmem, size = 0x2000, scoped, tag = 'input window, operand 0']
    #allocation3 [shape = 's32[2]{0}', space=sflag, size = 0x8, scoped, tag = 'scoped memory for tpu_custom_call.1']
    #allocation4 [shape = 's32[2]{0}', space=sflag, size = 0x8, scoped, tag = 'scoped memory for tpu_custom_call.1']
    #allocation5 [shape = 'u8[65536]{0}', space=vmem, size = 0x10000, scoped, tag = 'input window, operand 1, single buffered']
    #allocation6 [shape = 's32[1]{0}', space=sflag, size = 0x4, scoped, tag = 'scoped memory for tpu_custom_call.1']
    #allocation7 [shape = 'u8[65536]{0}', space=vmem, size = 0x10000, scoped, tag = 'input window, operand 3, single buffered']
    #allocation8 [shape = 'u8[65536]{0}', space=vmem, size = 0x10000, scoped, tag = 'input window, operand 5, single buffered']
    #allocation9 [shape = 's32[1]{0}', space=sflag, size = 0x4, scoped, tag = 'scoped memory for tpu_custom_call.1']
    #allocation10 [shape = 'u8[8192]{0}', space=vmem, size = 0x2000, scoped, tag = 'output window, operand 0']
    %12 = vsyncpa [#allocation3], 0
    %s13 = scalar_lea.sflag [#allocation3], 1
    %14 = vsyncpa %s13, 0
    %15 = vsyncpa [#allocation6], 0
    %16 = vsyncpa [#allocation9], 0
    %17 = vsyncpa [#allocation4], 0
    %s18 = scalar_lea.sflag [#allocation4], 1
    %19 = vsyncpa %s18, 0
    loop: start=0, step=1, limit=4
    $region2: #{tpu_custom_call.1} parent=1 // loop_pre_header
      _
    $region3: #{tpu_custom_call.1} parent=1 // loop_header
      %s21 = sphi 0, %s25
      %p22 = scmp.ge.s32.totalorder %s21, 4
      %s31 = sphi 0, %s33
      %s34 = sphi 0, %s31
      %s35 = sphi 0, %s34
      %s51 = sphi 0, %s35
      %s55 = sphi 0, %s55
      %s57 = sphi 0, %s55
      %s58 = sphi 0, %s57
      %s72 = sphi 0, %s58
      %s76 = sphi 0, %s76
      %s78 = sphi 0, %s76
      %s79 = sphi 0, %s78
      %s93 = sphi 0, %s79
      %s97 = sphi 0, %s97
      %s99 = sphi 0, %s97
      %s100 = sphi 0, %s99
      %s114 = sphi 0, %s100
      %s118 = sphi 0, %s118
      %s120 = sphi 0, %s118
      %s121 = sphi 0, %s120
      %s135 = sphi 0, %s121
      %s139 = sphi 0, %s139
      %s141 = sphi 0, %s139
      %s142 = sphi 0, %s141
      %s156 = sphi 0, %s142
      %s160 = sphi 0, %s160
      %s162 = sphi 0, %s160
      %s163 = sphi 0, %s162
      %s177 = sphi 0, %s163
      %s183 = sphi 0, %s185
      %s186 = sphi 0, %s183
      %s187 = sphi 0, %s186
      %s203 = sphi 0, %s187
    $region4: #{tpu_custom_call.1} parent=1 // loop_header_branch
      %24 = sbr.rel (%p22) target = $region8
    $region5: #{tpu_custom_call.1} parent=1 // loop_body
      %s26 = ssub.s32 %s21, 1
      %s27 = ssub.s32 %s21, 2
      %s28 = sadd.s32 %s21, 1
      %s29 = ssub.s32 %s21, %s28
      %p30 = scmp.eq.s32.totalorder %s29, 0
      %s32 = sadd.s32 %s31, 1
      %s33 = scalar_select %p30, %s31, %s32
      %p36 = pneg %p30
      %p37 = scmp.eq.s32.totalorder %s21, 1
      %p38 = por %p36, %p37
      %p39 = scmp.ne.s32.totalorder %s31, %s34
      %p40 = scmp.eq.s32.totalorder %s21, 0
      %p41 = por %p39, %p40
      %p42 = scmp.ne.s32.totalorder %s31, %s34
      %p43 = scmp.eq.s32.totalorder %s26, 1
      %p44 = por %p42, %p43
      %p45 = scmp.ne.s32.totalorder %s34, %s35
      %p46 = scmp.eq.s32.totalorder %s26, 0
      %p47 = por %p45, %p46
      %p48 = scmp.ne.s32.totalorder %s34, %s35
      %p49 = scmp.eq.s32.totalorder %s27, 1
      %p50 = por %p48, %p49
      %p52 = scmp.ne.s32.totalorder %s35, %s51
      %p53 = scmp.eq.s32.totalorder %s27, 0
      %p54 = por %p52, %p53
      %s56 = sadd.s32 %s55, 1
      %p59 = scmp.eq.s32.totalorder %s21, 1
      %p60 = scmp.ne.s32.totalorder %s55, %s57
      %p61 = scmp.eq.s32.totalorder %s21, 0
      %p62 = por %p60, %p61
      %p63 = scmp.ne.s32.totalorder %s55, %s57
      %p64 = scmp.eq.s32.totalorder %s26, 1
      %p65 = por %p63, %p64
      %p66 = scmp.ne.s32.totalorder %s57, %s58
      %p67 = scmp.eq.s32.totalorder %s26, 0
      %p68 = por %p66, %p67
      %p69 = scmp.ne.s32.totalorder %s57, %s58
      %p70 = scmp.eq.s32.totalorder %s27, 1
      %p71 = por %p69, %p70
      %p73 = scmp.ne.s32.totalorder %s58, %s72
      %p74 = scmp.eq.s32.totalorder %s27, 0
      %p75 = por %p73, %p74
      %s77 = sadd.s32 %s76, 1
      %p80 = scmp.eq.s32.totalorder %s21, 1
      %p81 = scmp.ne.s32.totalorder %s76, %s78
      %p82 = scmp.eq.s32.totalorder %s21, 0
      %p83 = por %p81, %p82
      %p84 = scmp.ne.s32.totalorder %s76, %s78
      %p85 = scmp.eq.s32.totalorder %s26, 1
      %p86 = por %p84, %p85
      %p87 = scmp.ne.s32.totalorder %s78, %s79
      %p88 = scmp.eq.s32.totalorder %s26, 0
      %p89 = por %p87, %p88
      %p90 = scmp.ne.s32.totalorder %s78, %s79
      %p91 = scmp.eq.s32.totalorder %s27, 1
      %p92 = por %p90, %p91
      %p94 = scmp.ne.s32.totalorder %s79, %s93
      %p95 = scmp.eq.s32.totalorder %s27, 0
      %p96 = por %p94, %p95
      %s98 = sadd.s32 %s97, 1
      %p101 = scmp.eq.s32.totalorder %s21, 1
      %p102 = scmp.ne.s32.totalorder %s97, %s99
      %p103 = scmp.eq.s32.totalorder %s21, 0
      %p104 = por %p102, %p103
      %p105 = scmp.ne.s32.totalorder %s97, %s99
      %p106 = scmp.eq.s32.totalorder %s26, 1
      %p107 = por %p105, %p106
      %p108 = scmp.ne.s32.totalorder %s99, %s100
      %p109 = scmp.eq.s32.totalorder %s26, 0
      %p110 = por %p108, %p109
      %p111 = scmp.ne.s32.totalorder %s99, %s100
      %p112 = scmp.eq.s32.totalorder %s27, 1
      %p113 = por %p111, %p112
      %p115 = scmp.ne.s32.totalorder %s100, %s114
      %p116 = scmp.eq.s32.totalorder %s27, 0
      %p117 = por %p115, %p116
      %s119 = sadd.s32 %s118, 1
      %p122 = scmp.eq.s32.totalorder %s21, 1
      %p123 = scmp.ne.s32.totalorder %s118, %s120
      %p124 = scmp.eq.s32.totalorder %s21, 0
      %p125 = por %p123, %p124
      %p126 = scmp.ne.s32.totalorder %s118, %s120
      %p127 = scmp.eq.s32.totalorder %s26, 1
      %p128 = por %p126, %p127
      %p129 = scmp.ne.s32.totalorder %s120, %s121
      %p130 = scmp.eq.s32.totalorder %s26, 0
      %p131 = por %p129, %p130
      %p132 = scmp.ne.s32.totalorder %s120, %s121
      %p133 = scmp.eq.s32.totalorder %s27, 1
      %p134 = por %p132, %p133
      %p136 = scmp.ne.s32.totalorder %s121, %s135
      %p137 = scmp.eq.s32.totalorder %s27, 0
      %p138 = por %p136, %p137
      %s140 = sadd.s32 %s139, 1
      %p143 = scmp.eq.s32.totalorder %s21, 1
      %p144 = scmp.ne.s32.totalorder %s139, %s141
      %p145 = scmp.eq.s32.totalorder %s21, 0
      %p146 = por %p144, %p145
      %p147 = scmp.ne.s32.totalorder %s139, %s141
      %p148 = scmp.eq.s32.totalorder %s26, 1
      %p149 = por %p147, %p148
      %p150 = scmp.ne.s32.totalorder %s141, %s142
      %p151 = scmp.eq.s32.totalorder %s26, 0
      %p152 = por %p150, %p151
      %p153 = scmp.ne.s32.totalorder %s141, %s142
      %p154 = scmp.eq.s32.totalorder %s27, 1
      %p155 = por %p153, %p154
      %p157 = scmp.ne.s32.totalorder %s142, %s156
      %p158 = scmp.eq.s32.totalorder %s27, 0
      %p159 = por %p157, %p158
      %s161 = sadd.s32 %s160, 1
      %p164 = scmp.eq.s32.totalorder %s21, 1
      %p165 = scmp.ne.s32.totalorder %s160, %s162
      %p166 = scmp.eq.s32.totalorder %s21, 0
      %p167 = por %p165, %p166
      %p168 = scmp.ne.s32.totalorder %s160, %s162
      %p169 = scmp.eq.s32.totalorder %s26, 1
      %p170 = por %p168, %p169
      %p171 = scmp.ne.s32.totalorder %s162, %s163
      %p172 = scmp.eq.s32.totalorder %s26, 0
      %p173 = por %p171, %p172
      %p174 = scmp.ne.s32.totalorder %s162, %s163
      %p175 = scmp.eq.s32.totalorder %s27, 1
      %p176 = por %p174, %p175
      %p178 = scmp.ne.s32.totalorder %s163, %s177
      %p179 = scmp.eq.s32.totalorder %s27, 0
      %p180 = por %p178, %p179
      %s181 = ssub.s32 %s21, %s28
      %p182 = scmp.eq.s32.totalorder %s181, 0
      %s184 = sadd.s32 %s183, 1
      %s185 = scalar_select %p182, %s183, %s184
      %p188 = pneg %p182
      %p189 = scmp.eq.s32.totalorder %s21, 1
      %p190 = por %p188, %p189
      %p191 = scmp.ne.s32.totalorder %s183, %s186
      %p192 = scmp.eq.s32.totalorder %s21, 0
      %p193 = por %p191, %p192
      %p194 = scmp.ne.s32.totalorder %s183, %s186
      %p195 = scmp.eq.s32.totalorder %s26, 1
      %p196 = por %p194, %p195
      %p197 = scmp.ne.s32.totalorder %s186, %s187
      %p198 = scmp.eq.s32.totalorder %s26, 0
      %p199 = por %p197, %p198
      %p200 = scmp.ne.s32.totalorder %s186, %s187
      %p201 = scmp.eq.s32.totalorder %s27, 1
      %p202 = por %p200, %p201
      %p204 = scmp.ne.s32.totalorder %s187, %s203
      %p205 = scmp.eq.s32.totalorder %s27, 0
      %p206 = por %p204, %p205
      %p207 = scmp.le.s32.totalorder 1, %s21
      %p208 = scmp.lt.s32.totalorder %s21, 3
      %p209 = pnand %p207, %p208
      %p210 = pneg %p209
      // Predicated region
      $region9: #{tpu_custom_call.1} parent=5 // pred_check
        _
      $region10: #{tpu_custom_call.1} parent=5 // pred_check_branch
        %212 = sbr.rel (%p209) target = $region12
      $region11: #{tpu_custom_call.1} parent=5 // pred_region
        %s213 = ssub.s32 %s21, 1
        // Predicated region
        $region13: #{tpu_custom_call.1} parent=11 // pred_check
          %p214 = pneg %p68
        $region14: #{tpu_custom_call.1} parent=11 // pred_check_branch
          %216 = sbr.rel (%p214) target = $region16
        $region15: #{tpu_custom_call.1} parent=11 // pred_region
          %s218 = ssub.s32 2048, 2048
          %219 = vsyncadd [#allocation6], %s218
          %s220 = sshll.u32 [#allocation5], 4
          %s221 = int_to_ptr.vmem [resolvable:$true] %s220
          %226 = dma.hbm_to_vmem [thread:$0]  %s1, 2048, %s221, [#allocation6], 128, 128, 8
        $region16: #{tpu_custom_call.1} parent=11 // pred_fallthru
          _
        // Predicated region
        $region17: #{tpu_custom_call.1} parent=11 // pred_check
          %p227 = pneg %p89
        $region18: #{tpu_custom_call.1} parent=11 // pred_check_branch
          %229 = sbr.rel (%p227) target = $region20
        $region19: #{tpu_custom_call.1} parent=11 // pred_region
          _
        $region20: #{tpu_custom_call.1} parent=11 // pred_fallthru
          _
        // Predicated region
        $region21: #{tpu_custom_call.1} parent=11 // pred_check
          %p230 = pneg %p110
        $region22: #{tpu_custom_call.1} parent=11 // pred_check_branch
          %232 = sbr.rel (%p230) target = $region24
        $region23: #{tpu_custom_call.1} parent=11 // pred_region
          %s234 = ssub.s32 2048, 2048
          %235 = vsyncadd [#allocation6], %s234
          %s236 = sshll.u32 [#allocation7], 4
          %s237 = int_to_ptr.vmem [resolvable:$true] %s236
          %242 = dma.hbm_to_vmem [thread:$0]  %s3, 2048, %s237, [#allocation6], 128, 128, 8
        $region24: #{tpu_custom_call.1} parent=11 // pred_fallthru
          _
        // Predicated region
        $region25: #{tpu_custom_call.1} parent=11 // pred_check
          %p243 = pneg %p131
        $region26: #{tpu_custom_call.1} parent=11 // pred_check_branch
          %245 = sbr.rel (%p243) target = $region28
        $region27: #{tpu_custom_call.1} parent=11 // pred_region
          _
        $region28: #{tpu_custom_call.1} parent=11 // pred_fallthru
          _
        // Predicated region
        $region29: #{tpu_custom_call.1} parent=11 // pred_check
          %p246 = pneg %p152
        $region30: #{tpu_custom_call.1} parent=11 // pred_check_branch
          %248 = sbr.rel (%p246) target = $region32
        $region31: #{tpu_custom_call.1} parent=11 // pred_region
          %s250 = ssub.s32 2048, 2048
          %251 = vsyncadd [#allocation9], %s250
          %s252 = sshll.u32 [#allocation8], 4
          %s253 = int_to_ptr.vmem [resolvable:$true] %s252
          %258 = dma.hbm_to_vmem [thread:$0]  %s5, 2048, %s253, [#allocation9], 128, 128, 8
        $region32: #{tpu_custom_call.1} parent=11 // pred_fallthru
          _
        // Predicated region
        $region33: #{tpu_custom_call.1} parent=11 // pred_check
          %p259 = pneg %p173
        $region34: #{tpu_custom_call.1} parent=11 // pred_check_branch
          %261 = sbr.rel (%p259) target = $region36
        $region35: #{tpu_custom_call.1} parent=11 // pred_region
          _
        $region36: #{tpu_custom_call.1} parent=11 // pred_fallthru
          _
      $region12: #{tpu_custom_call.1} parent=5 // pred_fallthru
        _
      %p262 = scmp.lt.s32.totalorder %s21, 2
      // Predicated region
      $region37: #{tpu_custom_call.1} parent=5 // pred_check
        %p263 = pneg %p262
      $region38: #{tpu_custom_call.1} parent=5 // pred_check_branch
        %265 = sbr.rel (%p263) target = $region40
      $region39: #{tpu_custom_call.1} parent=5 // pred_region
        // Predicated region
        $region41: #{tpu_custom_call.1} parent=39 // pred_check
          %p266 = pneg %p41
        $region42: #{tpu_custom_call.1} parent=39 // pred_check_branch
          %268 = sbr.rel (%p266) target = $region44
        $region43: #{tpu_custom_call.1} parent=39 // pred_region
          %s269 = sand.u32 %s31, 1
          %s270 = scalar_lea.sflag [#allocation3], %s269
          %s271 = sand.u32 %s31, 1
          %s272 = smul.addr %s271, 8
          %s273 = scalar_lea.vmem [#allocation2], %s272
          %s275 = ssub.s32 128, 128
          %276 = vsyncadd %s270, %s275
          %s277 = smul.addr %s21, 128
          %s278 = scalar_lea.hbm %s0, %s277
          %s280 = sshll.u32 %s273, 4
          %s281 = int_to_ptr.vmem [resolvable:$true] %s280
          %283 = dma.hbm_to_vmem [thread:$0]  %s278, 128, %s281, %s270
        $region44: #{tpu_custom_call.1} parent=39 // pred_fallthru
          _
      $region40: #{tpu_custom_call.1} parent=5 // pred_fallthru
        _
      %p284 = scmp.le.s32.totalorder 1, %s21
      %p285 = scmp.lt.s32.totalorder %s21, 3
      %p286 = pnand %p284, %p285
      %p287 = pneg %p286
      // Predicated region
      $region45: #{tpu_custom_call.1} parent=5 // pred_check
        _
      $region46: #{tpu_custom_call.1} parent=5 // pred_check_branch
        %289 = sbr.rel (%p286) target = $region48
      $region47: #{tpu_custom_call.1} parent=5 // pred_region
        %s290 = ssub.s32 %s21, 1
        %s291 = sand.u32 %s34, 1
        %s292 = scalar_lea.sflag [#allocation3], %s291
        %s293 = sand.u32 %s34, 1
        %s294 = smul.addr %s293, 8
        %s295 = scalar_lea.vmem [#allocation2], %s294
        // Predicated region
        $region49: #{tpu_custom_call.1} parent=47 // pred_check
          %p296 = pneg %p47
        $region50: #{tpu_custom_call.1} parent=47 // pred_check_branch
          %298 = sbr.rel (%p296) target = $region52
        $region51: #{tpu_custom_call.1} parent=47 // pred_region
          %299 = dma.done %s292, 128
        $region52: #{tpu_custom_call.1} parent=47 // pred_fallthru
          _
        // Predicated region
        $region53: #{tpu_custom_call.1} parent=47 // pred_check
          %p300 = pneg %p68
        $region54: #{tpu_custom_call.1} parent=47 // pred_check_branch
          %302 = sbr.rel (%p300) target = $region56
        $region55: #{tpu_custom_call.1} parent=47 // pred_region
          %303 = dma.done [#allocation6], 2048
        $region56: #{tpu_custom_call.1} parent=47 // pred_fallthru
          _
        // Predicated region
        $region57: #{tpu_custom_call.1} parent=47 // pred_check
          %p304 = pneg %p110
        $region58: #{tpu_custom_call.1} parent=47 // pred_check_branch
          %306 = sbr.rel (%p304) target = $region60
        $region59: #{tpu_custom_call.1} parent=47 // pred_region
          %307 = dma.done [#allocation6], 2048
        $region60: #{tpu_custom_call.1} parent=47 // pred_fallthru
          _
        // Predicated region
        $region61: #{tpu_custom_call.1} parent=47 // pred_check
          %p308 = pneg %p152
        $region62: #{tpu_custom_call.1} parent=47 // pred_check_branch
          %310 = sbr.rel (%p308) target = $region64
        $region63: #{tpu_custom_call.1} parent=47 // pred_region
          %311 = dma.done [#allocation9], 2048
        $region64: #{tpu_custom_call.1} parent=47 // pred_fallthru
          _
        %s312 = sand.u32 %s34, 1
        %s313 = scalar_lea.sflag [#allocation3], %s312
        %s314 = sand.u32 %s34, 1
        %s315 = smul.addr %s314, 8
        %s316 = scalar_lea.vmem [#allocation2], %s315
        %p317 = pneg %p47
        %p318 = pneg %p44
        %p319 = pneg %p68
        %p320 = pneg %p65
        %p321 = pneg %p89
        %p322 = pneg %p86
        %p323 = pneg %p110
        %p324 = pneg %p107
        %p325 = pneg %p131
        %p326 = pneg %p128
        %p327 = pneg %p152
        %p328 = pneg %p149
        %p329 = pneg %p173
        %p330 = pneg %p170
        %p331 = pneg %p199
        %p332 = pneg %p196
        %s333 = sand.u32 %s186, 1
        %s334 = scalar_lea.sflag [#allocation4], %s333
        %s335 = sand.u32 %s186, 1
        %s336 = smul.addr %s335, 8
        %s337 = scalar_lea.vmem [#allocation10], %s336
        %v338 = vld [vmem:[%s295] sm:$0xff]
        %v339 = vld [vmem:[#allocation5] sm:$0xff]
        %v340 = vld [vmem:[#allocation5 + $0x8] sm:$0xff]
        %v341 = vld [vmem:[#allocation5 + $0x10] sm:$0xff]
        %v342 = vld [vmem:[#allocation5 + $0x18] sm:$0xff]
        %v343 = vld [vmem:[#allocation5 + $0x20] sm:$0xff]
        %v344 = vld [vmem:[#allocation5 + $0x28] sm:$0xff]
        %v345 = vld [vmem:[#allocation5 + $0x30] sm:$0xff]
        %v346 = vld [vmem:[#allocation5 + $0x38] sm:$0xff]
        %v347 = vld [vmem:[#allocation5 + $0x40] sm:$0xff]
        %v348 = vld [vmem:[#allocation5 + $0x48] sm:$0xff]
        %v349 = vld [vmem:[#allocation5 + $0x50] sm:$0xff]
        %v350 = vld [vmem:[#allocation5 + $0x58] sm:$0xff]
        %v351 = vld [vmem:[#allocation5 + $0x60] sm:$0xff]
        %v352 = vld [vmem:[#allocation5 + $0x68] sm:$0xff]
        %v353 = vld [vmem:[#allocation5 + $0x70] sm:$0xff]
        %v354 = vld [vmem:[#allocation5 + $0x78] sm:$0xff]
        %v355 = vld [vmem:[%s2] sm:$0x1]
        %v357 = vlaneseq
        %v358 = vshrl.u32 %v357, 7
        %v359 = vsub.s32 0, %v358
        %v360 = vrot.slane %v355, %v359
        %362 = vmatprep.subr.mxu0 0.0
        %363 = vmatpush1.msra.mxu0 %v354
        %364 = vmatprep.subr.mxu0 0.0
        %365 = vmatpush1.msra.mxu0 %v353
        %366 = vmatprep.subr.mxu0 0.0
        %367 = vmatpush1.msra.mxu0 %v352
        %368 = vmatprep.subr.mxu0 0.0
        %369 = vmatpush1.msra.mxu0 %v351
        %370 = vmatprep.subr.mxu0 0.0
        %371 = vmatpush1.msra.mxu0 %v350
        %372 = vmatprep.subr.mxu0 0.0
        %373 = vmatpush1.msra.mxu0 %v349
        %374 = vmatprep.subr.mxu0 0.0
        %375 = vmatpush1.msra.mxu0 %v348
        %376 = vmatprep.subr.mxu0 0.0
        %377 = vmatpush1.msra.mxu0 %v347
        %378 = vmatprep.subr.mxu0 0.0
        %379 = vmatpush1.msra.mxu0 %v346
        %380 = vmatprep.subr.mxu0 0.0
        %381 = vmatpush1.msra.mxu0 %v345
        %382 = vmatprep.subr.mxu0 0.0
        %383 = vmatpush1.msra.mxu0 %v344
        %384 = vmatprep.subr.mxu0 0.0
        %385 = vmatpush1.msra.mxu0 %v343
        %386 = vmatprep.subr.mxu0 0.0
        %387 = vmatpush1.msra.mxu0 %v342
        %388 = vmatprep.subr.mxu0 0.0
        %389 = vmatpush1.msra.mxu0 %v341
        %390 = vmatprep.subr.mxu0 0.0
        %391 = vmatpush1.msra.mxu0 %v340
        %392 = vmatprep.subr.mxu0 0.0
        %393 = vmatpush1.msra.mxu0 %v339
        %394 = vmatprep.subr.mxu0 0.0
        %395 = vmatpush2.msra.mxu0 0.0
        %396 = vmatprep.subr.mxu0 0.0
        %397 = vmatpush2.msra.mxu0 0.0
        %398 = vmatprep.subr.mxu0 0.0
        %399 = vmatpush2.msra.mxu0 0.0
        %400 = vmatprep.subr.mxu0 0.0
        %401 = vmatpush2.msra.mxu0 0.0
        %402 = vmatprep.subr.mxu0 0.0
        %403 = vmatpush2.msra.mxu0 0.0
        %404 = vmatprep.subr.mxu0 0.0
        %405 = vmatpush2.msra.mxu0 0.0
        %406 = vmatprep.subr.mxu0 0.0
        %407 = vmatpush2.msra.mxu0 0.0
        %408 = vmatprep.subr.mxu0 0.0
        %409 = vmatpush2.msra.mxu0 0.0
        %410 = vmatprep.subr.mxu0 0.0
        %411 = vmatpush2.msra.mxu0 0.0
        %412 = vmatprep.subr.mxu0 0.0
        %413 = vmatpush2.msra.mxu0 0.0
        %414 = vmatprep.subr.mxu0 0.0
        %415 = vmatpush2.msra.mxu0 0.0
        %416 = vmatprep.subr.mxu0 0.0
        %417 = vmatpush2.msra.mxu0 0.0
        %418 = vmatprep.subr.mxu0 0.0
        %419 = vmatpush2.msra.mxu0 0.0
        %420 = vmatprep.subr.mxu0 0.0
        %421 = vmatpush2.msra.mxu0 0.0
        %422 = vmatprep.subr.mxu0 0.0
        %423 = vmatpush2.msra.mxu0 0.0
        %424 = vmatprep.subr.mxu0 0.0
        %425 = vmatpush2.msra.mxu0 0.0
        %426 = vmatprep.mubr.f32.mxu0 0.0
        %427 = vmatmul.mubr.f32.gmra.mxu0 %v338
        %v428 = vpop.f32.mrf.mxu0
        %v429 = vadd.f32 %v360, %v428
        %v430 = vpop.f32.mrf.mxu0
        %431 = vdwg.mxu0
        %v432 = vmax.f32 %v429, 0.0
        %v433 = vld [vmem:[#allocation7] sm:$0xff]
        %v434 = vld [vmem:[#allocation7 + $0x8] sm:$0xff]
        %v435 = vld [vmem:[#allocation7 + $0x10] sm:$0xff]
        %v436 = vld [vmem:[#allocation7 + $0x18] sm:$0xff]
        %v437 = vld [vmem:[#allocation7 + $0x20] sm:$0xff]
        %v438 = vld [vmem:[#allocation7 + $0x28] sm:$0xff]
        %v439 = vld [vmem:[#allocation7 + $0x30] sm:$0xff]
        %v440 = vld [vmem:[#allocation7 + $0x38] sm:$0xff]
        %v441 = vld [vmem:[#allocation7 + $0x40] sm:$0xff]
        %v442 = vld [vmem:[#allocation7 + $0x48] sm:$0xff]
        %v443 = vld [vmem:[#allocation7 + $0x50] sm:$0xff]
        %v444 = vld [vmem:[#allocation7 + $0x58] sm:$0xff]
        %v445 = vld [vmem:[#allocation7 + $0x60] sm:$0xff]
        %v446 = vld [vmem:[#allocation7 + $0x68] sm:$0xff]
        %v447 = vld [vmem:[#allocation7 + $0x70] sm:$0xff]
        %v448 = vld [vmem:[#allocation7 + $0x78] sm:$0xff]
        %v449 = vld [vmem:[%s4] sm:$0x1]
        %v451 = vlaneseq
        %v452 = vshrl.u32 %v451, 7
        %v453 = vsub.s32 0, %v452
        %v454 = vrot.slane %v449, %v453
        %456 = vmatprep.subr.mxu0 0.0
        %457 = vmatpush1.msra.mxu0 %v448
        %458 = vmatprep.subr.mxu0 0.0
        %459 = vmatpush1.msra.mxu0 %v447
        %460 = vmatprep.subr.mxu0 0.0
        %461 = vmatpush1.msra.mxu0 %v446
        %462 = vmatprep.subr.mxu0 0.0
        %463 = vmatpush1.msra.mxu0 %v445
        %464 = vmatprep.subr.mxu0 0.0
        %465 = vmatpush1.msra.mxu0 %v444
        %466 = vmatprep.subr.mxu0 0.0
        %467 = vmatpush1.msra.mxu0 %v443
        %468 = vmatprep.subr.mxu0 0.0
        %469 = vmatpush1.msra.mxu0 %v442
        %470 = vmatprep.subr.mxu0 0.0
        %471 = vmatpush1.msra.mxu0 %v441
        %472 = vmatprep.subr.mxu0 0.0
        %473 = vmatpush1.msra.mxu0 %v440
        %474 = vmatprep.subr.mxu0 0.0
        %475 = vmatpush1.msra.mxu0 %v439
        %476 = vmatprep.subr.mxu0 0.0
        %477 = vmatpush1.msra.mxu0 %v438
        %478 = vmatprep.subr.mxu0 0.0
        %479 = vmatpush1.msra.mxu0 %v437
        %480 = vmatprep.subr.mxu0 0.0
        %481 = vmatpush1.msra.mxu0 %v436
        %482 = vmatprep.subr.mxu0 0.0
        %483 = vmatpush1.msra.mxu0 %v435
        %484 = vmatprep.subr.mxu0 0.0
        %485 = vmatpush1.msra.mxu0 %v434
        %486 = vmatprep.subr.mxu0 0.0
        %487 = vmatpush1.msra.mxu0 %v433
        %488 = vmatprep.subr.mxu0 0.0
        %489 = vmatpush2.msra.mxu0 0.0
        %490 = vmatprep.subr.mxu0 0.0
        %491 = vmatpush2.msra.mxu0 0.0
        %492 = vmatprep.subr.mxu0 0.0
        %493 = vmatpush2.msra.mxu0 0.0
        %494 = vmatprep.subr.mxu0 0.0
        %495 = vmatpush2.msra.mxu0 0.0
        %496 = vmatprep.subr.mxu0 0.0
        %497 = vmatpush2.msra.mxu0 0.0
        %498 = vmatprep.subr.mxu0 0.0
        %499 = vmatpush2.msra.mxu0 0.0
        %500 = vmatprep.subr.mxu0 0.0
        %501 = vmatpush2.msra.mxu0 0.0
        %502 = vmatprep.subr.mxu0 0.0
        %503 = vmatpush2.msra.mxu0 0.0
        %504 = vmatprep.subr.mxu0 0.0
        %505 = vmatpush2.msra.mxu0 0.0
        %506 = vmatprep.subr.mxu0 0.0
        %507 = vmatpush2.msra.mxu0 0.0
        %508 = vmatprep.subr.mxu0 0.0
        %509 = vmatpush2.msra.mxu0 0.0
        %510 = vmatprep.subr.mxu0 0.0
        %511 = vmatpush2.msra.mxu0 0.0
        %512 = vmatprep.subr.mxu0 0.0
        %513 = vmatpush2.msra.mxu0 0.0
        %514 = vmatprep.subr.mxu0 0.0
        %515 = vmatpush2.msra.mxu0 0.0
        %516 = vmatprep.subr.mxu0 0.0
        %517 = vmatpush2.msra.mxu0 0.0
        %518 = vmatprep.subr.mxu0 0.0
        %519 = vmatpush2.msra.mxu0 0.0
        %520 = vmatprep.mubr.f32.mxu0 0.0
        %521 = vmatmul.mubr.f32.gmra.mxu0 %v432
        %v522 = vpop.f32.mrf.mxu0
        %v523 = vadd.f32 %v454, %v522
        %v524 = vpop.f32.mrf.mxu0
        %525 = vdwg.mxu0
        %v526 = vmax.f32 %v523, 0.0
        %v527 = vld [vmem:[#allocation8] sm:$0xff]
        %v528 = vld [vmem:[#allocation8 + $0x8] sm:$0xff]
        %v529 = vld [vmem:[#allocation8 + $0x10] sm:$0xff]
        %v530 = vld [vmem:[#allocation8 + $0x18] sm:$0xff]
        %v531 = vld [vmem:[#allocation8 + $0x20] sm:$0xff]
        %v532 = vld [vmem:[#allocation8 + $0x28] sm:$0xff]
        %v533 = vld [vmem:[#allocation8 + $0x30] sm:$0xff]
        %v534 = vld [vmem:[#allocation8 + $0x38] sm:$0xff]
        %v535 = vld [vmem:[#allocation8 + $0x40] sm:$0xff]
        %v536 = vld [vmem:[#allocation8 + $0x48] sm:$0xff]
        %v537 = vld [vmem:[#allocation8 + $0x50] sm:$0xff]
        %v538 = vld [vmem:[#allocation8 + $0x58] sm:$0xff]
        %v539 = vld [vmem:[#allocation8 + $0x60] sm:$0xff]
        %v540 = vld [vmem:[#allocation8 + $0x68] sm:$0xff]
        %v541 = vld [vmem:[#allocation8 + $0x70] sm:$0xff]
        %v542 = vld [vmem:[#allocation8 + $0x78] sm:$0xff]
        %v543 = vld [vmem:[%s6] sm:$0x1]
        %v545 = vlaneseq
        %v546 = vshrl.u32 %v545, 7
        %v547 = vsub.s32 0, %v546
        %v548 = vrot.slane %v543, %v547
        %550 = vmatprep.subr.mxu0 0.0
        %551 = vmatpush1.msra.mxu0 %v542
        %552 = vmatprep.subr.mxu0 0.0
        %553 = vmatpush1.msra.mxu0 %v541
        %554 = vmatprep.subr.mxu0 0.0
        %555 = vmatpush1.msra.mxu0 %v540
        %556 = vmatprep.subr.mxu0 0.0
        %557 = vmatpush1.msra.mxu0 %v539
        %558 = vmatprep.subr.mxu0 0.0
        %559 = vmatpush1.msra.mxu0 %v538
        %560 = vmatprep.subr.mxu0 0.0
        %561 = vmatpush1.msra.mxu0 %v537
        %562 = vmatprep.subr.mxu0 0.0
        %563 = vmatpush1.msra.mxu0 %v536
        %564 = vmatprep.subr.mxu0 0.0
        %565 = vmatpush1.msra.mxu0 %v535
        %566 = vmatprep.subr.mxu0 0.0
        %567 = vmatpush1.msra.mxu0 %v534
        %568 = vmatprep.subr.mxu0 0.0
        %569 = vmatpush1.msra.mxu0 %v533
        %570 = vmatprep.subr.mxu0 0.0
        %571 = vmatpush1.msra.mxu0 %v532
        %572 = vmatprep.subr.mxu0 0.0
        %573 = vmatpush1.msra.mxu0 %v531
        %574 = vmatprep.subr.mxu0 0.0
        %575 = vmatpush1.msra.mxu0 %v530
        %576 = vmatprep.subr.mxu0 0.0
        %577 = vmatpush1.msra.mxu0 %v529
        %578 = vmatprep.subr.mxu0 0.0
        %579 = vmatpush1.msra.mxu0 %v528
        %580 = vmatprep.subr.mxu0 0.0
        %581 = vmatpush1.msra.mxu0 %v527
        %582 = vmatprep.subr.mxu0 0.0
        %583 = vmatpush2.msra.mxu0 0.0
        %584 = vmatprep.subr.mxu0 0.0
        %585 = vmatpush2.msra.mxu0 0.0
        %586 = vmatprep.subr.mxu0 0.0
        %587 = vmatpush2.msra.mxu0 0.0
        %588 = vmatprep.subr.mxu0 0.0
        %589 = vmatpush2.msra.mxu0 0.0
        %590 = vmatprep.subr.mxu0 0.0
        %591 = vmatpush2.msra.mxu0 0.0
        %592 = vmatprep.subr.mxu0 0.0
        %593 = vmatpush2.msra.mxu0 0.0
        %594 = vmatprep.subr.mxu0 0.0
        %595 = vmatpush2.msra.mxu0 0.0
        %596 = vmatprep.subr.mxu0 0.0
        %597 = vmatpush2.msra.mxu0 0.0
        %598 = vmatprep.subr.mxu0 0.0
        %599 = vmatpush2.msra.mxu0 0.0
        %600 = vmatprep.subr.mxu0 0.0
        %601 = vmatpush2.msra.mxu0 0.0
        %602 = vmatprep.subr.mxu0 0.0
        %603 = vmatpush2.msra.mxu0 0.0
        %604 = vmatprep.subr.mxu0 0.0
        %605 = vmatpush2.msra.mxu0 0.0
        %606 = vmatprep.subr.mxu0 0.0
        %607 = vmatpush2.msra.mxu0 0.0
        %608 = vmatprep.subr.mxu0 0.0
        %609 = vmatpush2.msra.mxu0 0.0
        %610 = vmatprep.subr.mxu0 0.0
        %611 = vmatpush2.msra.mxu0 0.0
        %612 = vmatprep.subr.mxu0 0.0
        %613 = vmatpush2.msra.mxu0 0.0
        %614 = vmatprep.mubr.f32.mxu0 0.0
        %615 = vmatmul.mubr.f32.gmra.mxu0 %v526
        %v616 = vpop.f32.mrf.mxu0
        %v617 = vadd.f32 %v548, %v616
        %v618 = vpop.f32.mrf.mxu0
        %619 = vdwg.mxu0
        %620 = vst [vmem:[%s337] sm:$0xff] %v617
        %s621 = sand.u32 %s186, 1
        %s622 = scalar_lea.sflag [#allocation4], %s621
        %s623 = sand.u32 %s186, 1
        %s624 = smul.addr %s623, 8
        %s625 = scalar_lea.vmem [#allocation10], %s624
        // Predicated region
        $region65: #{tpu_custom_call.1} parent=47 // pred_check
          %p626 = pneg %p196
        $region66: #{tpu_custom_call.1} parent=47 // pred_check_branch
          %628 = sbr.rel (%p626) target = $region68
        $region67: #{tpu_custom_call.1} parent=47 // pred_region
          %s630 = ssub.s32 128, 128
          %631 = vsyncadd %s622, %s630
          %s632 = smul.addr %s26, 128
          %s633 = scalar_lea.hbm %s7, %s632
          %s635 = sshll.u32 %s625, 4
          %s636 = int_to_ptr.vmem [resolvable:$true] %s635
          %638 = dma.vmem_to_hbm [thread:$0]  %s636, 128, %s633, %s622
        $region68: #{tpu_custom_call.1} parent=47 // pred_fallthru
          _
      $region48: #{tpu_custom_call.1} parent=5 // pred_fallthru
        _
      %p639 = scmp.le.s32.totalorder 2, %s21
      // Predicated region
      $region69: #{tpu_custom_call.1} parent=5 // pred_check
        %p640 = pneg %p639
      $region70: #{tpu_custom_call.1} parent=5 // pred_check_branch
        %642 = sbr.rel (%p640) target = $region72
      $region71: #{tpu_custom_call.1} parent=5 // pred_region
        %s643 = ssub.s32 %s21, 2
        // Predicated region
        $region73: #{tpu_custom_call.1} parent=71 // pred_check
          %p644 = pneg %p202
        $region74: #{tpu_custom_call.1} parent=71 // pred_check_branch
          %646 = sbr.rel (%p644) target = $region76
        $region75: #{tpu_custom_call.1} parent=71 // pred_region
          %s647 = sand.u32 %s187, 1
          %s648 = scalar_lea.sflag [#allocation4], %s647
          %s649 = sand.u32 %s187, 1
          %s650 = smul.addr %s649, 8
          %s651 = scalar_lea.vmem [#allocation10], %s650
          %652 = dma.done %s648, 128
        $region76: #{tpu_custom_call.1} parent=71 // pred_fallthru
          _
      $region72: #{tpu_custom_call.1} parent=5 // pred_fallthru
        _
    $region6: #{tpu_custom_call.1} parent=1 // loop_footer
      %s25 = sadd.s32 1, %s21
    $region7: #{tpu_custom_call.1} parent=1 // loop_footer_branch
      %20 = sbr.rel target = $region3
    $region8: #{tpu_custom_call.1} parent=1 // loop_exit
      _
    %653 = vsyncpa [#allocation3], 1
    %s654 = scalar_lea.sflag [#allocation3], 1
    %655 = vsyncpa %s654, 1
    %656 = vsyncpa [#allocation6], 1
    %657 = vsyncpa [#allocation9], 1
    %658 = vsyncpa [#allocation4], 1
    %s659 = scalar_lea.sflag [#allocation4], 1
    %660 = vsyncpa %s659, 1

// kernel: tpu_custom_call.1
$region0: #{tpu_custom_call.1}
  #allocation0 [shape = 'u32[]', space=smem, size = 0x4, offset = 0x4, fixed_abs, tag = 'smem constant byte address 0x4 - core index']
  #allocation1 [shape = 'u32[144,128]{1,0:T(1,128)}', space=vmem, size = 0x12000, scoped, tag = 'internal scratch']
  %s0 = inlined_call_operand.hbm [shape: f32[16,128], index: 0, kind: input, shape index: {}]
  %s1 = inlined_call_operand.hbm [shape: f32[128,128], index: 1, kind: input, shape index: {}]
  %s2 = inlined_call_operand.vmem [shape: f32[1,128], index: 2, kind: input, shape index: {}]
  %s3 = inlined_call_operand.hbm [shape: f32[16,128], index: 3, kind: output, shape index: {}]
  %s4 = sld [smem:[#allocation0]]
  $region53: #{tpu_custom_call.1} parent=0
    _
  %s6 = ssub.s32 1, %s4
  %s7 = scalar_select 0, %s6, %s4
  $region1: #{tpu_custom_call.1} parent=0
    #allocation2 [shape = 'u8[8192]{0}', space=vmem, size = 0x2000, scoped, tag = 'input window, operand 0']
    #allocation3 [shape = 's32[2]{0}', space=sflag, size = 0x8, scoped, tag = 'scoped memory for tpu_custom_call.1']
    #allocation4 [shape = 's32[2]{0}', space=sflag, size = 0x8, scoped, tag = 'scoped memory for tpu_custom_call.1']
    #allocation5 [shape = 'u8[65536]{0}', space=vmem, size = 0x10000, scoped, tag = 'input window, operand 1, single buffered']
    #allocation6 [shape = 's32[1]{0}', space=sflag, size = 0x4, scoped, tag = 'scoped memory for tpu_custom_call.1']
    #allocation7 [shape = 'u8[8192]{0}', space=vmem, size = 0x2000, scoped, tag = 'output window, operand 0']
    %8 = vsyncpa [#allocation3], 0
    %s9 = scalar_lea.sflag [#allocation3], 1
    %10 = vsyncpa %s9, 0
    %11 = vsyncpa [#allocation6], 0
    %12 = vsyncpa [#allocation4], 0
    %s13 = scalar_lea.sflag [#allocation4], 1
    %14 = vsyncpa %s13, 0
    loop: start=0, step=1, limit=4
    $region2: #{tpu_custom_call.1} parent=1 // loop_pre_header
      _
    $region3: #{tpu_custom_call.1} parent=1 // loop_header
      %s16 = sphi 0, %s20
      %p17 = scmp.ge.s32.totalorder %s16, 4
      %s26 = sphi 0, %s28
      %s29 = sphi 0, %s26
      %s30 = sphi 0, %s29
      %s46 = sphi 0, %s30
      %s50 = sphi 0, %s50
      %s52 = sphi 0, %s50
      %s53 = sphi 0, %s52
      %s67 = sphi 0, %s53
      %s71 = sphi 0, %s71
      %s73 = sphi 0, %s71
      %s74 = sphi 0, %s73
      %s88 = sphi 0, %s74
      %s94 = sphi 0, %s96
      %s97 = sphi 0, %s94
      %s98 = sphi 0, %s97
      %s114 = sphi 0, %s98
    $region4: #{tpu_custom_call.1} parent=1 // loop_header_branch
      %19 = sbr.rel (%p17) target = $region8
    $region5: #{tpu_custom_call.1} parent=1 // loop_body
      %s21 = ssub.s32 %s16, 1
      %s22 = ssub.s32 %s16, 2
      %s23 = sadd.s32 %s16, 1
      %s24 = ssub.s32 %s16, %s23
      %p25 = scmp.eq.s32.totalorder %s24, 0
      %s27 = sadd.s32 %s26, 1
      %s28 = scalar_select %p25, %s26, %s27
      %p31 = pneg %p25
      %p32 = scmp.eq.s32.totalorder %s16, 1
      %p33 = por %p31, %p32
      %p34 = scmp.ne.s32.totalorder %s26, %s29
      %p35 = scmp.eq.s32.totalorder %s16, 0
      %p36 = por %p34, %p35
      %p37 = scmp.ne.s32.totalorder %s26, %s29
      %p38 = scmp.eq.s32.totalorder %s21, 1
      %p39 = por %p37, %p38
      %p40 = scmp.ne.s32.totalorder %s29, %s30
      %p41 = scmp.eq.s32.totalorder %s21, 0
      %p42 = por %p40, %p41
      %p43 = scmp.ne.s32.totalorder %s29, %s30
      %p44 = scmp.eq.s32.totalorder %s22, 1
      %p45 = por %p43, %p44
      %p47 = scmp.ne.s32.totalorder %s30, %s46
      %p48 = scmp.eq.s32.totalorder %s22, 0
      %p49 = por %p47, %p48
      %s51 = sadd.s32 %s50, 1
      %p54 = scmp.eq.s32.totalorder %s16, 1
      %p55 = scmp.ne.s32.totalorder %s50, %s52
      %p56 = scmp.eq.s32.totalorder %s16, 0
      %p57 = por %p55, %p56
      %p58 = scmp.ne.s32.totalorder %s50, %s52
      %p59 = scmp.eq.s32.totalorder %s21, 1
      %p60 = por %p58, %p59
      %p61 = scmp.ne.s32.totalorder %s52, %s53
      %p62 = scmp.eq.s32.totalorder %s21, 0
      %p63 = por %p61, %p62
      %p64 = scmp.ne.s32.totalorder %s52, %s53
      %p65 = scmp.eq.s32.totalorder %s22, 1
      %p66 = por %p64, %p65
      %p68 = scmp.ne.s32.totalorder %s53, %s67
      %p69 = scmp.eq.s32.totalorder %s22, 0
      %p70 = por %p68, %p69
      %s72 = sadd.s32 %s71, 1
      %p75 = scmp.eq.s32.totalorder %s16, 1
      %p76 = scmp.ne.s32.totalorder %s71, %s73
      %p77 = scmp.eq.s32.totalorder %s16, 0
      %p78 = por %p76, %p77
      %p79 = scmp.ne.s32.totalorder %s71, %s73
      %p80 = scmp.eq.s32.totalorder %s21, 1
      %p81 = por %p79, %p80
      %p82 = scmp.ne.s32.totalorder %s73, %s74
      %p83 = scmp.eq.s32.totalorder %s21, 0
      %p84 = por %p82, %p83
      %p85 = scmp.ne.s32.totalorder %s73, %s74
      %p86 = scmp.eq.s32.totalorder %s22, 1
      %p87 = por %p85, %p86
      %p89 = scmp.ne.s32.totalorder %s74, %s88
      %p90 = scmp.eq.s32.totalorder %s22, 0
      %p91 = por %p89, %p90
      %s92 = ssub.s32 %s16, %s23
      %p93 = scmp.eq.s32.totalorder %s92, 0
      %s95 = sadd.s32 %s94, 1
      %s96 = scalar_select %p93, %s94, %s95
      %p99 = pneg %p93
      %p100 = scmp.eq.s32.totalorder %s16, 1
      %p101 = por %p99, %p100
      %p102 = scmp.ne.s32.totalorder %s94, %s97
      %p103 = scmp.eq.s32.totalorder %s16, 0
      %p104 = por %p102, %p103
      %p105 = scmp.ne.s32.totalorder %s94, %s97
      %p106 = scmp.eq.s32.totalorder %s21, 1
      %p107 = por %p105, %p106
      %p108 = scmp.ne.s32.totalorder %s97, %s98
      %p109 = scmp.eq.s32.totalorder %s21, 0
      %p110 = por %p108, %p109
      %p111 = scmp.ne.s32.totalorder %s97, %s98
      %p112 = scmp.eq.s32.totalorder %s22, 1
      %p113 = por %p111, %p112
      %p115 = scmp.ne.s32.totalorder %s98, %s114
      %p116 = scmp.eq.s32.totalorder %s22, 0
      %p117 = por %p115, %p116
      %p118 = scmp.le.s32.totalorder 1, %s16
      %p119 = scmp.lt.s32.totalorder %s16, 3
      %p120 = pnand %p118, %p119
      %p121 = pneg %p120
      // Predicated region
      $region9: #{tpu_custom_call.1} parent=5 // pred_check
        _
      $region10: #{tpu_custom_call.1} parent=5 // pred_check_branch
        %123 = sbr.rel (%p120) target = $region12
      $region11: #{tpu_custom_call.1} parent=5 // pred_region
        %s124 = ssub.s32 %s16, 1
        // Predicated region
        $region13: #{tpu_custom_call.1} parent=11 // pred_check
          %p125 = pneg %p63
        $region14: #{tpu_custom_call.1} parent=11 // pred_check_branch
          %127 = sbr.rel (%p125) target = $region16
        $region15: #{tpu_custom_call.1} parent=11 // pred_region
          %s129 = ssub.s32 2048, 2048
          %130 = vsyncadd [#allocation6], %s129
          %s131 = sshll.u32 [#allocation5], 4
          %s132 = int_to_ptr.vmem [resolvable:$true] %s131
          %137 = dma.hbm_to_vmem [thread:$0]  %s1, 2048, %s132, [#allocation6], 128, 128, 8
        $region16: #{tpu_custom_call.1} parent=11 // pred_fallthru
          _
        // Predicated region
        $region17: #{tpu_custom_call.1} parent=11 // pred_check
          %p138 = pneg %p84
        $region18: #{tpu_custom_call.1} parent=11 // pred_check_branch
          %140 = sbr.rel (%p138) target = $region20
        $region19: #{tpu_custom_call.1} parent=11 // pred_region
          _
        $region20: #{tpu_custom_call.1} parent=11 // pred_fallthru
          _
      $region12: #{tpu_custom_call.1} parent=5 // pred_fallthru
        _
      %p141 = scmp.lt.s32.totalorder %s16, 2
      // Predicated region
      $region21: #{tpu_custom_call.1} parent=5 // pred_check
        %p142 = pneg %p141
      $region22: #{tpu_custom_call.1} parent=5 // pred_check_branch
        %144 = sbr.rel (%p142) target = $region24
      $region23: #{tpu_custom_call.1} parent=5 // pred_region
        // Predicated region
        $region25: #{tpu_custom_call.1} parent=23 // pred_check
          %p145 = pneg %p36
        $region26: #{tpu_custom_call.1} parent=23 // pred_check_branch
          %147 = sbr.rel (%p145) target = $region28
        $region27: #{tpu_custom_call.1} parent=23 // pred_region
          %s148 = sand.u32 %s26, 1
          %s149 = scalar_lea.sflag [#allocation3], %s148
          %s150 = sand.u32 %s26, 1
          %s151 = smul.addr %s150, 8
          %s152 = scalar_lea.vmem [#allocation2], %s151
          %s154 = ssub.s32 128, 128
          %155 = vsyncadd %s149, %s154
          %s156 = smul.addr %s16, 128
          %s157 = scalar_lea.hbm %s0, %s156
          %s159 = sshll.u32 %s152, 4
          %s160 = int_to_ptr.vmem [resolvable:$true] %s159
          %162 = dma.hbm_to_vmem [thread:$0]  %s157, 128, %s160, %s149
        $region28: #{tpu_custom_call.1} parent=23 // pred_fallthru
          _
      $region24: #{tpu_custom_call.1} parent=5 // pred_fallthru
        _
      %p163 = scmp.le.s32.totalorder 1, %s16
      %p164 = scmp.lt.s32.totalorder %s16, 3
      %p165 = pnand %p163, %p164
      %p166 = pneg %p165
      // Predicated region
      $region29: #{tpu_custom_call.1} parent=5 // pred_check
        _
      $region30: #{tpu_custom_call.1} parent=5 // pred_check_branch
        %168 = sbr.rel (%p165) target = $region32
      $region31: #{tpu_custom_call.1} parent=5 // pred_region
        %s169 = ssub.s32 %s16, 1
        %s170 = sand.u32 %s29, 1
        %s171 = scalar_lea.sflag [#allocation3], %s170
        %s172 = sand.u32 %s29, 1
        %s173 = smul.addr %s172, 8
        %s174 = scalar_lea.vmem [#allocation2], %s173
        // Predicated region
        $region33: #{tpu_custom_call.1} parent=31 // pred_check
          %p175 = pneg %p42
        $region34: #{tpu_custom_call.1} parent=31 // pred_check_branch
          %177 = sbr.rel (%p175) target = $region36
        $region35: #{tpu_custom_call.1} parent=31 // pred_region
          %178 = dma.done %s171, 128
        $region36: #{tpu_custom_call.1} parent=31 // pred_fallthru
          _
        // Predicated region
        $region37: #{tpu_custom_call.1} parent=31 // pred_check
          %p179 = pneg %p63
        $region38: #{tpu_custom_call.1} parent=31 // pred_check_branch
          %181 = sbr.rel (%p179) target = $region40
        $region39: #{tpu_custom_call.1} parent=31 // pred_region
          %182 = dma.done [#allocation6], 2048
        $region40: #{tpu_custom_call.1} parent=31 // pred_fallthru
          _
        %s183 = sand.u32 %s29, 1
        %s184 = scalar_lea.sflag [#allocation3], %s183
        %s185 = sand.u32 %s29, 1
        %s186 = smul.addr %s185, 8
        %s187 = scalar_lea.vmem [#allocation2], %s186
        %p188 = pneg %p42
        %p189 = pneg %p39
        %p190 = pneg %p63
        %p191 = pneg %p60
        %p192 = pneg %p84
        %p193 = pneg %p81
        %p194 = pneg %p110
        %p195 = pneg %p107
        %s196 = sand.u32 %s97, 1
        %s197 = scalar_lea.sflag [#allocation4], %s196
        %s198 = sand.u32 %s97, 1
        %s199 = smul.addr %s198, 8
        %s200 = scalar_lea.vmem [#allocation7], %s199
        %v201 = vld [vmem:[%s174] sm:$0xff]
        %v202 = vld [vmem:[#allocation5] sm:$0xff]
        %v203 = vld [vmem:[#allocation5 + $0x8] sm:$0xff]
        %v204 = vld [vmem:[#allocation5 + $0x10] sm:$0xff]
        %v205 = vld [vmem:[#allocation5 + $0x18] sm:$0xff]
        %v206 = vld [vmem:[#allocation5 + $0x20] sm:$0xff]
        %v207 = vld [vmem:[#allocation5 + $0x28] sm:$0xff]
        %v208 = vld [vmem:[#allocation5 + $0x30] sm:$0xff]
        %v209 = vld [vmem:[#allocation5 + $0x38] sm:$0xff]
        %v210 = vld [vmem:[#allocation5 + $0x40] sm:$0xff]
        %v211 = vld [vmem:[#allocation5 + $0x48] sm:$0xff]
        %v212 = vld [vmem:[#allocation5 + $0x50] sm:$0xff]
        %v213 = vld [vmem:[#allocation5 + $0x58] sm:$0xff]
        %v214 = vld [vmem:[#allocation5 + $0x60] sm:$0xff]
        %v215 = vld [vmem:[#allocation5 + $0x68] sm:$0xff]
        %v216 = vld [vmem:[#allocation5 + $0x70] sm:$0xff]
        %v217 = vld [vmem:[#allocation5 + $0x78] sm:$0xff]
        %v218 = vld [vmem:[%s2] sm:$0x1]
        %v220 = vlaneseq
        %v221 = vshrl.u32 %v220, 7
        %v222 = vsub.s32 0, %v221
        %v223 = vrot.slane %v218, %v222
        %225 = vmatprep.subr.mxu0 0.0
        %226 = vmatpush1.msra.mxu0 %v217
        %227 = vmatprep.subr.mxu0 0.0
        %228 = vmatpush1.msra.mxu0 %v216
        %229 = vmatprep.subr.mxu0 0.0
        %230 = vmatpush1.msra.mxu0 %v215
        %231 = vmatprep.subr.mxu0 0.0
        %232 = vmatpush1.msra.mxu0 %v214
        %233 = vmatprep.subr.mxu0 0.0
        %234 = vmatpush1.msra.mxu0 %v213
        %235 = vmatprep.subr.mxu0 0.0
        %236 = vmatpush1.msra.mxu0 %v212
        %237 = vmatprep.subr.mxu0 0.0
        %238 = vmatpush1.msra.mxu0 %v211
        %239 = vmatprep.subr.mxu0 0.0
        %240 = vmatpush1.msra.mxu0 %v210
        %241 = vmatprep.subr.mxu0 0.0
        %242 = vmatpush1.msra.mxu0 %v209
        %243 = vmatprep.subr.mxu0 0.0
        %244 = vmatpush1.msra.mxu0 %v208
        %245 = vmatprep.subr.mxu0 0.0
        %246 = vmatpush1.msra.mxu0 %v207
        %247 = vmatprep.subr.mxu0 0.0
        %248 = vmatpush1.msra.mxu0 %v206
        %249 = vmatprep.subr.mxu0 0.0
        %250 = vmatpush1.msra.mxu0 %v205
        %251 = vmatprep.subr.mxu0 0.0
        %252 = vmatpush1.msra.mxu0 %v204
        %253 = vmatprep.subr.mxu0 0.0
        %254 = vmatpush1.msra.mxu0 %v203
        %255 = vmatprep.subr.mxu0 0.0
        %256 = vmatpush1.msra.mxu0 %v202
        %257 = vmatprep.subr.mxu0 0.0
        %258 = vmatpush2.msra.mxu0 0.0
        %259 = vmatprep.subr.mxu0 0.0
        %260 = vmatpush2.msra.mxu0 0.0
        %261 = vmatprep.subr.mxu0 0.0
        %262 = vmatpush2.msra.mxu0 0.0
        %263 = vmatprep.subr.mxu0 0.0
        %264 = vmatpush2.msra.mxu0 0.0
        %265 = vmatprep.subr.mxu0 0.0
        %266 = vmatpush2.msra.mxu0 0.0
        %267 = vmatprep.subr.mxu0 0.0
        %268 = vmatpush2.msra.mxu0 0.0
        %269 = vmatprep.subr.mxu0 0.0
        %270 = vmatpush2.msra.mxu0 0.0
        %271 = vmatprep.subr.mxu0 0.0
        %272 = vmatpush2.msra.mxu0 0.0
        %273 = vmatprep.subr.mxu0 0.0
        %274 = vmatpush2.msra.mxu0 0.0
        %275 = vmatprep.subr.mxu0 0.0
        %276 = vmatpush2.msra.mxu0 0.0
        %277 = vmatprep.subr.mxu0 0.0
        %278 = vmatpush2.msra.mxu0 0.0
        %279 = vmatprep.subr.mxu0 0.0
        %280 = vmatpush2.msra.mxu0 0.0
        %281 = vmatprep.subr.mxu0 0.0
        %282 = vmatpush2.msra.mxu0 0.0
        %283 = vmatprep.subr.mxu0 0.0
        %284 = vmatpush2.msra.mxu0 0.0
        %285 = vmatprep.subr.mxu0 0.0
        %286 = vmatpush2.msra.mxu0 0.0
        %287 = vmatprep.subr.mxu0 0.0
        %288 = vmatpush2.msra.mxu0 0.0
        %289 = vmatprep.mubr.f32.mxu0 0.0
        %290 = vmatmul.mubr.f32.gmra.mxu0 %v201
        %v291 = vpop.f32.mrf.mxu0
        %v292 = vadd.f32 %v223, %v291
        %v293 = vpop.f32.mrf.mxu0
        %294 = vdwg.mxu0
        %v295 = vmax.f32 %v292, 0.0
        %296 = vst [vmem:[%s200] sm:$0xff] %v295
        %s297 = sand.u32 %s97, 1
        %s298 = scalar_lea.sflag [#allocation4], %s297
        %s299 = sand.u32 %s97, 1
        %s300 = smul.addr %s299, 8
        %s301 = scalar_lea.vmem [#allocation7], %s300
        // Predicated region
        $region41: #{tpu_custom_call.1} parent=31 // pred_check
          %p302 = pneg %p107
        $region42: #{tpu_custom_call.1} parent=31 // pred_check_branch
          %304 = sbr.rel (%p302) target = $region44
        $region43: #{tpu_custom_call.1} parent=31 // pred_region
          %s306 = ssub.s32 128, 128
          %307 = vsyncadd %s298, %s306
          %s308 = smul.addr %s21, 128
          %s309 = scalar_lea.hbm %s3, %s308
          %s311 = sshll.u32 %s301, 4
          %s312 = int_to_ptr.vmem [resolvable:$true] %s311
          %314 = dma.vmem_to_hbm [thread:$0]  %s312, 128, %s309, %s298
        $region44: #{tpu_custom_call.1} parent=31 // pred_fallthru
          _
      $region32: #{tpu_custom_call.1} parent=5 // pred_fallthru
        _
      %p315 = scmp.le.s32.totalorder 2, %s16
      // Predicated region
      $region45: #{tpu_custom_call.1} parent=5 // pred_check
        %p316 = pneg %p315
      $region46: #{tpu_custom_call.1} parent=5 // pred_check_branch
        %318 = sbr.rel (%p316) target = $region48
      $region47: #{tpu_custom_call.1} parent=5 // pred_region
        %s319 = ssub.s32 %s16, 2
        // Predicated region
        $region49: #{tpu_custom_call.1} parent=47 // pred_check
          %p320 = pneg %p113
        $region50: #{tpu_custom_call.1} parent=47 // pred_check_branch
          %322 = sbr.rel (%p320) target = $region52
        $region51: #{tpu_custom_call.1} parent=47 // pred_region
          %s323 = sand.u32 %s98, 1
          %s324 = scalar_lea.sflag [#allocation4], %s323
          %s325 = sand.u32 %s98, 1
          %s326 = smul.addr %s325, 8
          %s327 = scalar_lea.vmem [#allocation7], %s326
          %328 = dma.done %s324, 128
        $region52: #{tpu_custom_call.1} parent=47 // pred_fallthru
          _
      $region48: #{tpu_custom_call.1} parent=5 // pred_fallthru
        _
    $region6: #{tpu_custom_call.1} parent=1 // loop_footer
      %s20 = sadd.s32 1, %s16
    $region7: #{tpu_custom_call.1} parent=1 // loop_footer_branch
      %15 = sbr.rel target = $region3
    $region8: #{tpu_custom_call.1} parent=1 // loop_exit
      _
    %329 = vsyncpa [#allocation3], 1
    %s330 = scalar_lea.sflag [#allocation3], 1
    %331 = vsyncpa %s330, 1
    %332 = vsyncpa [#allocation6], 1
    %333 = vsyncpa [#allocation4], 1
    %s334 = scalar_lea.sflag [#allocation4], 1
    %335 = vsyncpa %s334, 1

// kernel: tpu_custom_call.1
$region0: #{tpu_custom_call.1}
  #allocation0 [shape = 'u32[]', space=smem, size = 0x4, offset = 0x4, fixed_abs, tag = 'smem constant byte address 0x4 - core index']
  #allocation1 [shape = 'u32[144,128]{1,0:T(1,128)}', space=vmem, size = 0x12000, scoped, tag = 'internal scratch']
  %s0 = inlined_call_operand.hbm [shape: f32[16,128], index: 0, kind: input, shape index: {}]
  %s1 = inlined_call_operand.hbm [shape: f32[128,128], index: 1, kind: input, shape index: {}]
  %s2 = inlined_call_operand.vmem [shape: f32[1,128], index: 2, kind: input, shape index: {}]
  %s3 = inlined_call_operand.hbm [shape: f32[16,128], index: 3, kind: output, shape index: {}]
  %s4 = sld [smem:[#allocation0]]
  $region53: #{tpu_custom_call.1} parent=0
    _
  %s6 = ssub.s32 1, %s4
  %s7 = scalar_select 0, %s6, %s4
  $region1: #{tpu_custom_call.1} parent=0
    #allocation2 [shape = 'u8[8192]{0}', space=vmem, size = 0x2000, scoped, tag = 'input window, operand 0']
    #allocation3 [shape = 's32[2]{0}', space=sflag, size = 0x8, scoped, tag = 'scoped memory for tpu_custom_call.1']
    #allocation4 [shape = 's32[2]{0}', space=sflag, size = 0x8, scoped, tag = 'scoped memory for tpu_custom_call.1']
    #allocation5 [shape = 'u8[65536]{0}', space=vmem, size = 0x10000, scoped, tag = 'input window, operand 1, single buffered']
    #allocation6 [shape = 's32[1]{0}', space=sflag, size = 0x4, scoped, tag = 'scoped memory for tpu_custom_call.1']
    #allocation7 [shape = 'u8[8192]{0}', space=vmem, size = 0x2000, scoped, tag = 'output window, operand 0']
    %8 = vsyncpa [#allocation3], 0
    %s9 = scalar_lea.sflag [#allocation3], 1
    %10 = vsyncpa %s9, 0
    %11 = vsyncpa [#allocation6], 0
    %12 = vsyncpa [#allocation4], 0
    %s13 = scalar_lea.sflag [#allocation4], 1
    %14 = vsyncpa %s13, 0
    loop: start=0, step=1, limit=4
    $region2: #{tpu_custom_call.1} parent=1 // loop_pre_header
      _
    $region3: #{tpu_custom_call.1} parent=1 // loop_header
      %s16 = sphi 0, %s20
      %p17 = scmp.ge.s32.totalorder %s16, 4
      %s26 = sphi 0, %s28
      %s29 = sphi 0, %s26
      %s30 = sphi 0, %s29
      %s46 = sphi 0, %s30
      %s50 = sphi 0, %s50
      %s52 = sphi 0, %s50
      %s53 = sphi 0, %s52
      %s67 = sphi 0, %s53
      %s71 = sphi 0, %s71
      %s73 = sphi 0, %s71
      %s74 = sphi 0, %s73
      %s88 = sphi 0, %s74
      %s94 = sphi 0, %s96
      %s97 = sphi 0, %s94
      %s98 = sphi 0, %s97
      %s114 = sphi 0, %s98
    $region4: #{tpu_custom_call.1} parent=1 // loop_header_branch
      %19 = sbr.rel (%p17) target = $region8
    $region5: #{tpu_custom_call.1} parent=1 // loop_body
      %s21 = ssub.s32 %s16, 1
      %s22 = ssub.s32 %s16, 2
      %s23 = sadd.s32 %s16, 1
      %s24 = ssub.s32 %s16, %s23
      %p25 = scmp.eq.s32.totalorder %s24, 0
      %s27 = sadd.s32 %s26, 1
      %s28 = scalar_select %p25, %s26, %s27
      %p31 = pneg %p25
      %p32 = scmp.eq.s32.totalorder %s16, 1
      %p33 = por %p31, %p32
      %p34 = scmp.ne.s32.totalorder %s26, %s29
      %p35 = scmp.eq.s32.totalorder %s16, 0
      %p36 = por %p34, %p35
      %p37 = scmp.ne.s32.totalorder %s26, %s29
      %p38 = scmp.eq.s32.totalorder %s21, 1
      %p39 = por %p37, %p38
      %p40 = scmp.ne.s32.totalorder %s29, %s30
      %p41 = scmp.eq.s32.totalorder %s21, 0
      %p42 = por %p40, %p41
      %p43 = scmp.ne.s32.totalorder %s29, %s30
      %p44 = scmp.eq.s32.totalorder %s22, 1
      %p45 = por %p43, %p44
      %p47 = scmp.ne.s32.totalorder %s30, %s46
      %p48 = scmp.eq.s32.totalorder %s22, 0
      %p49 = por %p47, %p48
      %s51 = sadd.s32 %s50, 1
      %p54 = scmp.eq.s32.totalorder %s16, 1
      %p55 = scmp.ne.s32.totalorder %s50, %s52
      %p56 = scmp.eq.s32.totalorder %s16, 0
      %p57 = por %p55, %p56
      %p58 = scmp.ne.s32.totalorder %s50, %s52
      %p59 = scmp.eq.s32.totalorder %s21, 1
      %p60 = por %p58, %p59
      %p61 = scmp.ne.s32.totalorder %s52, %s53
      %p62 = scmp.eq.s32.totalorder %s21, 0
      %p63 = por %p61, %p62
      %p64 = scmp.ne.s32.totalorder %s52, %s53
      %p65 = scmp.eq.s32.totalorder %s22, 1
      %p66 = por %p64, %p65
      %p68 = scmp.ne.s32.totalorder %s53, %s67
      %p69 = scmp.eq.s32.totalorder %s22, 0
      %p70 = por %p68, %p69
      %s72 = sadd.s32 %s71, 1
      %p75 = scmp.eq.s32.totalorder %s16, 1
      %p76 = scmp.ne.s32.totalorder %s71, %s73
      %p77 = scmp.eq.s32.totalorder %s16, 0
      %p78 = por %p76, %p77
      %p79 = scmp.ne.s32.totalorder %s71, %s73
      %p80 = scmp.eq.s32.totalorder %s21, 1
      %p81 = por %p79, %p80
      %p82 = scmp.ne.s32.totalorder %s73, %s74
      %p83 = scmp.eq.s32.totalorder %s21, 0
      %p84 = por %p82, %p83
      %p85 = scmp.ne.s32.totalorder %s73, %s74
      %p86 = scmp.eq.s32.totalorder %s22, 1
      %p87 = por %p85, %p86
      %p89 = scmp.ne.s32.totalorder %s74, %s88
      %p90 = scmp.eq.s32.totalorder %s22, 0
      %p91 = por %p89, %p90
      %s92 = ssub.s32 %s16, %s23
      %p93 = scmp.eq.s32.totalorder %s92, 0
      %s95 = sadd.s32 %s94, 1
      %s96 = scalar_select %p93, %s94, %s95
      %p99 = pneg %p93
      %p100 = scmp.eq.s32.totalorder %s16, 1
      %p101 = por %p99, %p100
      %p102 = scmp.ne.s32.totalorder %s94, %s97
      %p103 = scmp.eq.s32.totalorder %s16, 0
      %p104 = por %p102, %p103
      %p105 = scmp.ne.s32.totalorder %s94, %s97
      %p106 = scmp.eq.s32.totalorder %s21, 1
      %p107 = por %p105, %p106
      %p108 = scmp.ne.s32.totalorder %s97, %s98
      %p109 = scmp.eq.s32.totalorder %s21, 0
      %p110 = por %p108, %p109
      %p111 = scmp.ne.s32.totalorder %s97, %s98
      %p112 = scmp.eq.s32.totalorder %s22, 1
      %p113 = por %p111, %p112
      %p115 = scmp.ne.s32.totalorder %s98, %s114
      %p116 = scmp.eq.s32.totalorder %s22, 0
      %p117 = por %p115, %p116
      %p118 = scmp.le.s32.totalorder 1, %s16
      %p119 = scmp.lt.s32.totalorder %s16, 3
      %p120 = pnand %p118, %p119
      %p121 = pneg %p120
      // Predicated region
      $region9: #{tpu_custom_call.1} parent=5 // pred_check
        _
      $region10: #{tpu_custom_call.1} parent=5 // pred_check_branch
        %123 = sbr.rel (%p120) target = $region12
      $region11: #{tpu_custom_call.1} parent=5 // pred_region
        %s124 = ssub.s32 %s16, 1
        // Predicated region
        $region13: #{tpu_custom_call.1} parent=11 // pred_check
          %p125 = pneg %p63
        $region14: #{tpu_custom_call.1} parent=11 // pred_check_branch
          %127 = sbr.rel (%p125) target = $region16
        $region15: #{tpu_custom_call.1} parent=11 // pred_region
          %s129 = ssub.s32 2048, 2048
          %130 = vsyncadd [#allocation6], %s129
          %s131 = sshll.u32 [#allocation5], 4
          %s132 = int_to_ptr.vmem [resolvable:$true] %s131
          %137 = dma.hbm_to_vmem [thread:$0]  %s1, 2048, %s132, [#allocation6], 128, 128, 8
        $region16: #{tpu_custom_call.1} parent=11 // pred_fallthru
          _
        // Predicated region
        $region17: #{tpu_custom_call.1} parent=11 // pred_check
          %p138 = pneg %p84
        $region18: #{tpu_custom_call.1} parent=11 // pred_check_branch
          %140 = sbr.rel (%p138) target = $region20
        $region19: #{tpu_custom_call.1} parent=11 // pred_region
          _
        $region20: #{tpu_custom_call.1} parent=11 // pred_fallthru
          _
      $region12: #{tpu_custom_call.1} parent=5 // pred_fallthru
        _
      %p141 = scmp.lt.s32.totalorder %s16, 2
      // Predicated region
      $region21: #{tpu_custom_call.1} parent=5 // pred_check
        %p142 = pneg %p141
      $region22: #{tpu_custom_call.1} parent=5 // pred_check_branch
        %144 = sbr.rel (%p142) target = $region24
      $region23: #{tpu_custom_call.1} parent=5 // pred_region
        // Predicated region
        $region25: #{tpu_custom_call.1} parent=23 // pred_check
          %p145 = pneg %p36
        $region26: #{tpu_custom_call.1} parent=23 // pred_check_branch
          %147 = sbr.rel (%p145) target = $region28
        $region27: #{tpu_custom_call.1} parent=23 // pred_region
          %s148 = sand.u32 %s26, 1
          %s149 = scalar_lea.sflag [#allocation3], %s148
          %s150 = sand.u32 %s26, 1
          %s151 = smul.addr %s150, 8
          %s152 = scalar_lea.vmem [#allocation2], %s151
          %s154 = ssub.s32 128, 128
          %155 = vsyncadd %s149, %s154
          %s156 = smul.addr %s16, 128
          %s157 = scalar_lea.hbm %s0, %s156
          %s159 = sshll.u32 %s152, 4
          %s160 = int_to_ptr.vmem [resolvable:$true] %s159
          %162 = dma.hbm_to_vmem [thread:$0]  %s157, 128, %s160, %s149
        $region28: #{tpu_custom_call.1} parent=23 // pred_fallthru
          _
      $region24: #{tpu_custom_call.1} parent=5 // pred_fallthru
        _
      %p163 = scmp.le.s32.totalorder 1, %s16
      %p164 = scmp.lt.s32.totalorder %s16, 3
      %p165 = pnand %p163, %p164
      %p166 = pneg %p165
      // Predicated region
      $region29: #{tpu_custom_call.1} parent=5 // pred_check
        _
      $region30: #{tpu_custom_call.1} parent=5 // pred_check_branch
        %168 = sbr.rel (%p165) target = $region32
      $region31: #{tpu_custom_call.1} parent=5 // pred_region
        %s169 = ssub.s32 %s16, 1
        %s170 = sand.u32 %s29, 1
        %s171 = scalar_lea.sflag [#allocation3], %s170
        %s172 = sand.u32 %s29, 1
        %s173 = smul.addr %s172, 8
        %s174 = scalar_lea.vmem [#allocation2], %s173
        // Predicated region
        $region33: #{tpu_custom_call.1} parent=31 // pred_check
          %p175 = pneg %p42
        $region34: #{tpu_custom_call.1} parent=31 // pred_check_branch
          %177 = sbr.rel (%p175) target = $region36
        $region35: #{tpu_custom_call.1} parent=31 // pred_region
          %178 = dma.done %s171, 128
        $region36: #{tpu_custom_call.1} parent=31 // pred_fallthru
          _
        // Predicated region
        $region37: #{tpu_custom_call.1} parent=31 // pred_check
          %p179 = pneg %p63
        $region38: #{tpu_custom_call.1} parent=31 // pred_check_branch
          %181 = sbr.rel (%p179) target = $region40
        $region39: #{tpu_custom_call.1} parent=31 // pred_region
          %182 = dma.done [#allocation6], 2048
        $region40: #{tpu_custom_call.1} parent=31 // pred_fallthru
          _
        %s183 = sand.u32 %s29, 1
        %s184 = scalar_lea.sflag [#allocation3], %s183
        %s185 = sand.u32 %s29, 1
        %s186 = smul.addr %s185, 8
        %s187 = scalar_lea.vmem [#allocation2], %s186
        %p188 = pneg %p42
        %p189 = pneg %p39
        %p190 = pneg %p63
        %p191 = pneg %p60
        %p192 = pneg %p84
        %p193 = pneg %p81
        %p194 = pneg %p110
        %p195 = pneg %p107
        %s196 = sand.u32 %s97, 1
        %s197 = scalar_lea.sflag [#allocation4], %s196
        %s198 = sand.u32 %s97, 1
        %s199 = smul.addr %s198, 8
        %s200 = scalar_lea.vmem [#allocation7], %s199
        %v201 = vld [vmem:[%s174] sm:$0xff]
        %v202 = vld [vmem:[#allocation5] sm:$0xff]
        %v203 = vld [vmem:[#allocation5 + $0x8] sm:$0xff]
        %v204 = vld [vmem:[#allocation5 + $0x10] sm:$0xff]
        %v205 = vld [vmem:[#allocation5 + $0x18] sm:$0xff]
        %v206 = vld [vmem:[#allocation5 + $0x20] sm:$0xff]
        %v207 = vld [vmem:[#allocation5 + $0x28] sm:$0xff]
        %v208 = vld [vmem:[#allocation5 + $0x30] sm:$0xff]
        %v209 = vld [vmem:[#allocation5 + $0x38] sm:$0xff]
        %v210 = vld [vmem:[#allocation5 + $0x40] sm:$0xff]
        %v211 = vld [vmem:[#allocation5 + $0x48] sm:$0xff]
        %v212 = vld [vmem:[#allocation5 + $0x50] sm:$0xff]
        %v213 = vld [vmem:[#allocation5 + $0x58] sm:$0xff]
        %v214 = vld [vmem:[#allocation5 + $0x60] sm:$0xff]
        %v215 = vld [vmem:[#allocation5 + $0x68] sm:$0xff]
        %v216 = vld [vmem:[#allocation5 + $0x70] sm:$0xff]
        %v217 = vld [vmem:[#allocation5 + $0x78] sm:$0xff]
        %v218 = vld [vmem:[%s2] sm:$0x1]
        %v220 = vlaneseq
        %v221 = vshrl.u32 %v220, 7
        %v222 = vsub.s32 0, %v221
        %v223 = vrot.slane %v218, %v222
        %225 = vmatprep.subr.mxu0 0.0
        %226 = vmatpush1.msra.mxu0 %v217
        %227 = vmatprep.subr.mxu0 0.0
        %228 = vmatpush1.msra.mxu0 %v216
        %229 = vmatprep.subr.mxu0 0.0
        %230 = vmatpush1.msra.mxu0 %v215
        %231 = vmatprep.subr.mxu0 0.0
        %232 = vmatpush1.msra.mxu0 %v214
        %233 = vmatprep.subr.mxu0 0.0
        %234 = vmatpush1.msra.mxu0 %v213
        %235 = vmatprep.subr.mxu0 0.0
        %236 = vmatpush1.msra.mxu0 %v212
        %237 = vmatprep.subr.mxu0 0.0
        %238 = vmatpush1.msra.mxu0 %v211
        %239 = vmatprep.subr.mxu0 0.0
        %240 = vmatpush1.msra.mxu0 %v210
        %241 = vmatprep.subr.mxu0 0.0
        %242 = vmatpush1.msra.mxu0 %v209
        %243 = vmatprep.subr.mxu0 0.0
        %244 = vmatpush1.msra.mxu0 %v208
        %245 = vmatprep.subr.mxu0 0.0
        %246 = vmatpush1.msra.mxu0 %v207
        %247 = vmatprep.subr.mxu0 0.0
        %248 = vmatpush1.msra.mxu0 %v206
        %249 = vmatprep.subr.mxu0 0.0
        %250 = vmatpush1.msra.mxu0 %v205
        %251 = vmatprep.subr.mxu0 0.0
        %252 = vmatpush1.msra.mxu0 %v204
        %253 = vmatprep.subr.mxu0 0.0
        %254 = vmatpush1.msra.mxu0 %v203
        %255 = vmatprep.subr.mxu0 0.0
        %256 = vmatpush1.msra.mxu0 %v202
        %257 = vmatprep.subr.mxu0 0.0
        %258 = vmatpush2.msra.mxu0 0.0
        %259 = vmatprep.subr.mxu0 0.0
        %260 = vmatpush2.msra.mxu0 0.0
        %261 = vmatprep.subr.mxu0 0.0
        %262 = vmatpush2.msra.mxu0 0.0
        %263 = vmatprep.subr.mxu0 0.0
        %264 = vmatpush2.msra.mxu0 0.0
        %265 = vmatprep.subr.mxu0 0.0
        %266 = vmatpush2.msra.mxu0 0.0
        %267 = vmatprep.subr.mxu0 0.0
        %268 = vmatpush2.msra.mxu0 0.0
        %269 = vmatprep.subr.mxu0 0.0
        %270 = vmatpush2.msra.mxu0 0.0
        %271 = vmatprep.subr.mxu0 0.0
        %272 = vmatpush2.msra.mxu0 0.0
        %273 = vmatprep.subr.mxu0 0.0
        %274 = vmatpush2.msra.mxu0 0.0
        %275 = vmatprep.subr.mxu0 0.0
        %276 = vmatpush2.msra.mxu0 0.0
        %277 = vmatprep.subr.mxu0 0.0
        %278 = vmatpush2.msra.mxu0 0.0
        %279 = vmatprep.subr.mxu0 0.0
        %280 = vmatpush2.msra.mxu0 0.0
        %281 = vmatprep.subr.mxu0 0.0
        %282 = vmatpush2.msra.mxu0 0.0
        %283 = vmatprep.subr.mxu0 0.0
        %284 = vmatpush2.msra.mxu0 0.0
        %285 = vmatprep.subr.mxu0 0.0
        %286 = vmatpush2.msra.mxu0 0.0
        %287 = vmatprep.subr.mxu0 0.0
        %288 = vmatpush2.msra.mxu0 0.0
        %289 = vmatprep.mubr.f32.mxu0 0.0
        %290 = vmatmul.mubr.f32.gmra.mxu0 %v201
        %v291 = vpop.f32.mrf.mxu0
        %v292 = vadd.f32 %v223, %v291
        %v293 = vpop.f32.mrf.mxu0
        %294 = vdwg.mxu0
        %v295 = vmax.f32 %v292, 0.0
        %296 = vst [vmem:[%s200] sm:$0xff] %v295
        %s297 = sand.u32 %s97, 1
        %s298 = scalar_lea.sflag [#allocation4], %s297
        %s299 = sand.u32 %s97, 1
        %s300 = smul.addr %s299, 8
        %s301 = scalar_lea.vmem [#allocation7], %s300
        // Predicated region
        $region41: #{tpu_custom_call.1} parent=31 // pred_check
          %p302 = pneg %p107
        $region42: #{tpu_custom_call.1} parent=31 // pred_check_branch
          %304 = sbr.rel (%p302) target = $region44
        $region43: #{tpu_custom_call.1} parent=31 // pred_region
          %s306 = ssub.s32 128, 128
          %307 = vsyncadd %s298, %s306
          %s308 = smul.addr %s21, 128
          %s309 = scalar_lea.hbm %s3, %s308
          %s311 = sshll.u32 %s301, 4
          %s312 = int_to_ptr.vmem [resolvable:$true] %s311
          %314 = dma.vmem_to_hbm [thread:$0]  %s312, 128, %s309, %s298
        $region44: #{tpu_custom_call.1} parent=31 // pred_fallthru
          _
      $region32: #{tpu_custom_call.1} parent=5 // pred_fallthru
        _
      %p315 = scmp.le.s32.totalorder 2, %s16
      // Predicated region
      $region45: #{tpu_custom_call.1} parent=5 // pred_check
        %p316 = pneg %p315
      $region46: #{tpu_custom_call.1} parent=5 // pred_check_branch
        %318 = sbr.rel (%p316) target = $region48
      $region47: #{tpu_custom_call.1} parent=5 // pred_region
        %s319 = ssub.s32 %s16, 2
        // Predicated region
        $region49: #{tpu_custom_call.1} parent=47 // pred_check
          %p320 = pneg %p113
        $region50: #{tpu_custom_call.1} parent=47 // pred_check_branch
          %322 = sbr.rel (%p320) target = $region52
        $region51: #{tpu_custom_call.1} parent=47 // pred_region
          %s323 = sand.u32 %s98, 1
          %s324 = scalar_lea.sflag [#allocation4], %s323
          %s325 = sand.u32 %s98, 1
          %s326 = smul.addr %s325, 8
          %s327 = scalar_lea.vmem [#allocation7], %s326
          %328 = dma.done %s324, 128
        $region52: #{tpu_custom_call.1} parent=47 // pred_fallthru
          _
      $region48: #{tpu_custom_call.1} parent=5 // pred_fallthru
        _
    $region6: #{tpu_custom_call.1} parent=1 // loop_footer
      %s20 = sadd.s32 1, %s16
    $region7: #{tpu_custom_call.1} parent=1 // loop_footer_branch
      %15 = sbr.rel target = $region3
    $region8: #{tpu_custom_call.1} parent=1 // loop_exit
      _
    %329 = vsyncpa [#allocation3], 1
    %s330 = scalar_lea.sflag [#allocation3], 1
    %331 = vsyncpa %s330, 1
    %332 = vsyncpa [#allocation6], 1
    %333 = vsyncpa [#allocation4], 1
    %s334 = scalar_lea.sflag [#allocation4], 1
    %335 = vsyncpa %s334, 1

// kernel: tpu_custom_call.1
$region0: #{tpu_custom_call.1}
  #allocation0 [shape = 'u32[]', space=smem, size = 0x4, offset = 0x4, fixed_abs, tag = 'smem constant byte address 0x4 - core index']
  #allocation1 [shape = 'u32[144,128]{1,0:T(1,128)}', space=vmem, size = 0x12000, scoped, tag = 'internal scratch']
  %s0 = inlined_call_operand.hbm [shape: f32[16,128], index: 0, kind: input, shape index: {}]
  %s1 = inlined_call_operand.hbm [shape: f32[128,128], index: 1, kind: input, shape index: {}]
  %s2 = inlined_call_operand.vmem [shape: f32[1,128], index: 2, kind: input, shape index: {}]
  %s3 = inlined_call_operand.hbm [shape: f32[16,128], index: 3, kind: output, shape index: {}]
  %s4 = sld [smem:[#allocation0]]
  $region61: #{tpu_custom_call.1} parent=0
    _
  %s6 = ssub.s32 1, %s4
  %s7 = scalar_select 0, %s6, %s4
  $region1: #{tpu_custom_call.1} parent=0
    #allocation2 [shape = 'u8[8192]{0}', space=vmem, size = 0x2000, scoped, tag = 'input window, operand 0']
    #allocation3 [shape = 's32[2]{0}', space=sflag, size = 0x8, scoped, tag = 'scoped memory for tpu_custom_call.1']
    #allocation4 [shape = 's32[2]{0}', space=sflag, size = 0x8, scoped, tag = 'scoped memory for tpu_custom_call.1']
    #allocation5 [shape = 'u8[65536]{0}', space=vmem, size = 0x10000, scoped, tag = 'input window, operand 1, single buffered']
    #allocation6 [shape = 's32[1]{0}', space=sflag, size = 0x4, scoped, tag = 'scoped memory for tpu_custom_call.1']
    #allocation7 [shape = 'u8[8192]{0}', space=vmem, size = 0x2000, scoped, tag = 'output window, operand 0']
    %8 = vsyncpa [#allocation3], 0
    %s9 = scalar_lea.sflag [#allocation3], 1
    %10 = vsyncpa %s9, 0
    %11 = vsyncpa [#allocation6], 0
    %12 = vsyncpa [#allocation4], 0
    %s13 = scalar_lea.sflag [#allocation4], 1
    %14 = vsyncpa %s13, 0
    loop: start=0, step=1, limit=4
    $region2: #{tpu_custom_call.1} parent=1 // loop_pre_header
      _
    $region3: #{tpu_custom_call.1} parent=1 // loop_header
      %s16 = sphi 0, %s20
      %p17 = scmp.ge.s32.totalorder %s16, 4
      %s23 = sphi 0, %s42
      %s24 = sphi 0, %s38
      %s25 = sphi 0, %s34
      %s26 = sphi 0, %s23
      %s27 = sphi 0, %s24
      %s28 = sphi 0, %s25
      %s29 = sphi 0, %s26
      %s30 = sphi 0, %s27
      %s31 = sphi 0, %s28
      %s47 = sphi 0, %s49
      %s50 = sphi 0, %s47
      %s51 = sphi 0, %s50
      %s67 = sphi 0, %s51
      %s75 = sphi 0, %s77
      %s78 = sphi 0, %s75
      %s79 = sphi 0, %s78
      %s95 = sphi 0, %s79
      %s101 = sphi 0, %s103
      %s104 = sphi 0, %s101
      %s105 = sphi 0, %s104
      %s121 = sphi 0, %s105
      %s129 = sphi 0, %s131
      %s132 = sphi 0, %s129
      %s133 = sphi 0, %s132
      %s149 = sphi 0, %s133
    $region4: #{tpu_custom_call.1} parent=1 // loop_header_branch
      %19 = sbr.rel (%p17) target = $region8
    $region5: #{tpu_custom_call.1} parent=1 // loop_body
      %s21 = ssub.s32 %s16, 1
      %s22 = ssub.s32 %s16, 2
      %s32 = sadd.s32 1, %s25
      %p33 = scmp.ge.s32.totalorder %s32, 1
      %s34 = scalar_select %p33, 0, %s32
      %s35 = sadd.s32 1, %s24
      %s36 = scalar_select %p33, %s35, %s24
      %p37 = scmp.ge.s32.totalorder %s36, 1
      %s38 = scalar_select %p37, 0, %s36
      %s39 = sadd.s32 1, %s23
      %s40 = scalar_select %p37, %s39, %s23
      %p41 = scmp.ge.s32.totalorder %s40, 2
      %s42 = scalar_select %p41, 0, %s40
      %s43 = ssub.s32 %s23, %s42
      %s44 = ssub.s32 %s25, %s34
      %s45 = sor.u32 %s43, %s44
      %p46 = scmp.eq.s32.totalorder %s45, 0
      %s48 = sadd.s32 %s47, 1
      %s49 = scalar_select %p46, %s47, %s48
      %p52 = pneg %p46
      %p53 = scmp.eq.s32.totalorder %s16, 1
      %p54 = por %p52, %p53
      %p55 = scmp.ne.s32.totalorder %s47, %s50
      %p56 = scmp.eq.s32.totalorder %s16, 0
      %p57 = por %p55, %p56
      %p58 = scmp.ne.s32.totalorder %s47, %s50
      %p59 = scmp.eq.s32.totalorder %s21, 1
      %p60 = por %p58, %p59
      %p61 = scmp.ne.s32.totalorder %s50, %s51
      %p62 = scmp.eq.s32.totalorder %s21, 0
      %p63 = por %p61, %p62
      %p64 = scmp.ne.s32.totalorder %s50, %s51
      %p65 = scmp.eq.s32.totalorder %s22, 1
      %p66 = por %p64, %p65
      %p68 = scmp.ne.s32.totalorder %s51, %s67
      %p69 = scmp.eq.s32.totalorder %s22, 0
      %p70 = por %p68, %p69
      %s71 = ssub.s32 %s25, %s34
      %s72 = ssub.s32 %s24, %s38
      %s73 = sor.u32 %s71, %s72
      %p74 = scmp.eq.s32.totalorder %s73, 0
      %s76 = sadd.s32 %s75, 1
      %s77 = scalar_select %p74, %s75, %s76
      %p80 = pneg %p74
      %p81 = scmp.eq.s32.totalorder %s16, 1
      %p82 = por %p80, %p81
      %p83 = scmp.ne.s32.totalorder %s75, %s78
      %p84 = scmp.eq.s32.totalorder %s16, 0
      %p85 = por %p83, %p84
      %p86 = scmp.ne.s32.totalorder %s75, %s78
      %p87 = scmp.eq.s32.totalorder %s21, 1
      %p88 = por %p86, %p87
      %p89 = scmp.ne.s32.totalorder %s78, %s79
      %p90 = scmp.eq.s32.totalorder %s21, 0
      %p91 = por %p89, %p90
      %p92 = scmp.ne.s32.totalorder %s78, %s79
      %p93 = scmp.eq.s32.totalorder %s22, 1
      %p94 = por %p92, %p93
      %p96 = scmp.ne.s32.totalorder %s79, %s95
      %p97 = scmp.eq.s32.totalorder %s22, 0
      %p98 = por %p96, %p97
      %s99 = ssub.s32 %s24, %s38
      %p100 = scmp.eq.s32.totalorder %s99, 0
      %s102 = sadd.s32 %s101, 1
      %s103 = scalar_select %p100, %s101, %s102
      %p106 = pneg %p100
      %p107 = scmp.eq.s32.totalorder %s16, 1
      %p108 = por %p106, %p107
      %p109 = scmp.ne.s32.totalorder %s101, %s104
      %p110 = scmp.eq.s32.totalorder %s16, 0
      %p111 = por %p109, %p110
      %p112 = scmp.ne.s32.totalorder %s101, %s104
      %p113 = scmp.eq.s32.totalorder %s21, 1
      %p114 = por %p112, %p113
      %p115 = scmp.ne.s32.totalorder %s104, %s105
      %p116 = scmp.eq.s32.totalorder %s21, 0
      %p117 = por %p115, %p116
      %p118 = scmp.ne.s32.totalorder %s104, %s105
      %p119 = scmp.eq.s32.totalorder %s22, 1
      %p120 = por %p118, %p119
      %p122 = scmp.ne.s32.totalorder %s105, %s121
      %p123 = scmp.eq.s32.totalorder %s22, 0
      %p124 = por %p122, %p123
      %s125 = ssub.s32 %s23, %s42
      %s126 = ssub.s32 %s24, %s38
      %s127 = sor.u32 %s125, %s126
      %p128 = scmp.eq.s32.totalorder %s127, 0
      %s130 = sadd.s32 %s129, 1
      %s131 = scalar_select %p128, %s129, %s130
      %p134 = pneg %p128
      %p135 = scmp.eq.s32.totalorder %s16, 1
      %p136 = por %p134, %p135
      %p137 = scmp.ne.s32.totalorder %s129, %s132
      %p138 = scmp.eq.s32.totalorder %s16, 0
      %p139 = por %p137, %p138
      %p140 = scmp.ne.s32.totalorder %s129, %s132
      %p141 = scmp.eq.s32.totalorder %s21, 1
      %p142 = por %p140, %p141
      %p143 = scmp.ne.s32.totalorder %s132, %s133
      %p144 = scmp.eq.s32.totalorder %s21, 0
      %p145 = por %p143, %p144
      %p146 = scmp.ne.s32.totalorder %s132, %s133
      %p147 = scmp.eq.s32.totalorder %s22, 1
      %p148 = por %p146, %p147
      %p150 = scmp.ne.s32.totalorder %s133, %s149
      %p151 = scmp.eq.s32.totalorder %s22, 0
      %p152 = por %p150, %p151
      %p153 = scmp.le.s32.totalorder 1, %s16
      %p154 = scmp.lt.s32.totalorder %s16, 3
      %p155 = pnand %p153, %p154
      %p156 = pneg %p155
      // Predicated region
      $region9: #{tpu_custom_call.1} parent=5 // pred_check
        _
      $region10: #{tpu_custom_call.1} parent=5 // pred_check_branch
        %158 = sbr.rel (%p155) target = $region12
      $region11: #{tpu_custom_call.1} parent=5 // pred_region
        %s159 = ssub.s32 %s16, 1
        // Predicated region
        $region13: #{tpu_custom_call.1} parent=11 // pred_check
          %p160 = pneg %p91
        $region14: #{tpu_custom_call.1} parent=11 // pred_check_branch
          %162 = sbr.rel (%p160) target = $region16
        $region15: #{tpu_custom_call.1} parent=11 // pred_region
          %s163 = smul.u32 16, %s28
          %s165 = ssub.s32 2048, 2048
          %166 = vsyncadd [#allocation6], %s165
          %s167 = sadd.s32 %s27, %s163
          %s168 = smul.addr %s167, 128
          %s169 = scalar_lea.hbm %s1, %s168
          %s170 = sshll.u32 [#allocation5], 4
          %s171 = int_to_ptr.vmem [resolvable:$true] %s170
          %176 = dma.hbm_to_vmem [thread:$0]  %s169, 2048, %s171, [#allocation6], 128, 128, 8
        $region16: #{tpu_custom_call.1} parent=11 // pred_fallthru
          _
        // Predicated region
        $region17: #{tpu_custom_call.1} parent=11 // pred_check
          %p177 = pneg %p117
        $region18: #{tpu_custom_call.1} parent=11 // pred_check_branch
          %179 = sbr.rel (%p177) target = $region20
        $region19: #{tpu_custom_call.1} parent=11 // pred_region
          %p180 = scmp.lt.s32.totalorder %s27, 0
          %s181 = scalar_select %p180, %s27, 0
          %s182 = scalar_lea.vmem %s2, %s181
        $region20: #{tpu_custom_call.1} parent=11 // pred_fallthru
          _
      $region12: #{tpu_custom_call.1} parent=5 // pred_fallthru
        _
      %p183 = scmp.lt.s32.totalorder %s16, 2
      // Predicated region
      $region21: #{tpu_custom_call.1} parent=5 // pred_check
        %p184 = pneg %p183
      $region22: #{tpu_custom_call.1} parent=5 // pred_check_branch
        %186 = sbr.rel (%p184) target = $region24
      $region23: #{tpu_custom_call.1} parent=5 // pred_region
        // Predicated region
        $region25: #{tpu_custom_call.1} parent=23 // pred_check
          %p187 = pneg %p57
        $region26: #{tpu_custom_call.1} parent=23 // pred_check_branch
          %189 = sbr.rel (%p187) target = $region28
        $region27: #{tpu_custom_call.1} parent=23 // pred_region
          %s190 = sand.u32 %s47, 1
          %s191 = scalar_lea.sflag [#allocation3], %s190
          %s192 = sand.u32 %s47, 1
          %s193 = smul.addr %s192, 8
          %s194 = scalar_lea.vmem [#allocation2], %s193
          %s196 = ssub.s32 128, 128
          %197 = vsyncadd %s191, %s196
          %s198 = sadd.s32 %s25, %s23
          %s199 = smul.addr %s198, 128
          %s200 = scalar_lea.hbm %s0, %s199
          %s202 = sshll.u32 %s194, 4
          %s203 = int_to_ptr.vmem [resolvable:$true] %s202
          %205 = dma.hbm_to_vmem [thread:$0]  %s200, 128, %s203, %s191
        $region28: #{tpu_custom_call.1} parent=23 // pred_fallthru
          _
      $region24: #{tpu_custom_call.1} parent=5 // pred_fallthru
        _
      %p206 = scmp.le.s32.totalorder 1, %s16
      %p207 = scmp.lt.s32.totalorder %s16, 3
      %p208 = pnand %p206, %p207
      %p209 = pneg %p208
      // Predicated region
      $region29: #{tpu_custom_call.1} parent=5 // pred_check
        _
      $region30: #{tpu_custom_call.1} parent=5 // pred_check_branch
        %211 = sbr.rel (%p208) target = $region32
      $region31: #{tpu_custom_call.1} parent=5 // pred_region
        %s212 = ssub.s32 %s16, 1
        %s213 = sand.u32 %s50, 1
        %s214 = scalar_lea.sflag [#allocation3], %s213
        %s215 = sand.u32 %s50, 1
        %s216 = smul.addr %s215, 8
        %s217 = scalar_lea.vmem [#allocation2], %s216
        // Predicated region
        $region33: #{tpu_custom_call.1} parent=31 // pred_check
          %p218 = pneg %p63
        $region34: #{tpu_custom_call.1} parent=31 // pred_check_branch
          %220 = sbr.rel (%p218) target = $region36
        $region35: #{tpu_custom_call.1} parent=31 // pred_region
          %221 = dma.done %s214, 128
        $region36: #{tpu_custom_call.1} parent=31 // pred_fallthru
          _
        // Predicated region
        $region37: #{tpu_custom_call.1} parent=31 // pred_check
          %p222 = pneg %p91
        $region38: #{tpu_custom_call.1} parent=31 // pred_check_branch
          %224 = sbr.rel (%p222) target = $region40
        $region39: #{tpu_custom_call.1} parent=31 // pred_region
          %225 = dma.done [#allocation6], 2048
        $region40: #{tpu_custom_call.1} parent=31 // pred_fallthru
          _
        %s226 = sand.u32 %s50, 1
        %s227 = scalar_lea.sflag [#allocation3], %s226
        %s228 = sand.u32 %s50, 1
        %s229 = smul.addr %s228, 8
        %s230 = scalar_lea.vmem [#allocation2], %s229
        %p231 = pneg %p63
        %p232 = pneg %p60
        %p233 = pneg %p91
        %p234 = pneg %p88
        %p235 = scmp.lt.s32.totalorder %s27, 0
        %s236 = scalar_select %p235, %s27, 0
        %s237 = scalar_lea.vmem %s2, %s236
        %p238 = pneg %p117
        %p239 = pneg %p114
        %p240 = pneg %p145
        %p241 = pneg %p142
        %s242 = sand.u32 %s132, 1
        %s243 = scalar_lea.sflag [#allocation4], %s242
        %s244 = sand.u32 %s132, 1
        %s245 = smul.addr %s244, 8
        %s246 = scalar_lea.vmem [#allocation7], %s245
        %s247 = smul.u32 16, %s28
        %p248 = scmp.lt.s32.totalorder %s27, 0
        %s249 = scalar_select %p248, %s27, 0
        %s250 = scalar_lea.vmem %s2, %s249
        %p251 = scmp.eq.s32.totalorder %s28, 0
        // Predicated region
        $region41: #{tpu_custom_call.1} parent=31 // pred_check
          %p252 = pneg %p251
        $region42: #{tpu_custom_call.1} parent=31 // pred_check_branch
          %254 = sbr.rel (%p252) target = $region44
        $region43: #{tpu_custom_call.1} parent=31 // pred_region
          %255 = vst [vmem:[%s246] sm:$0xff] 0.0
        $region44: #{tpu_custom_call.1} parent=31 // pred_fallthru
          _
        %v256 = vld [vmem:[%s246] sm:$0xff]
        %v257 = vld [vmem:[%s217] sm:$0xff]
        %v258 = vld [vmem:[#allocation5] sm:$0xff]
        %v259 = vld [vmem:[#allocation5 + $0x8] sm:$0xff]
        %v260 = vld [vmem:[#allocation5 + $0x10] sm:$0xff]
        %v261 = vld [vmem:[#allocation5 + $0x18] sm:$0xff]
        %v262 = vld [vmem:[#allocation5 + $0x20] sm:$0xff]
        %v263 = vld [vmem:[#allocation5 + $0x28] sm:$0xff]
        %v264 = vld [vmem:[#allocation5 + $0x30] sm:$0xff]
        %v265 = vld [vmem:[#allocation5 + $0x38] sm:$0xff]
        %v266 = vld [vmem:[#allocation5 + $0x40] sm:$0xff]
        %v267 = vld [vmem:[#allocation5 + $0x48] sm:$0xff]
        %v268 = vld [vmem:[#allocation5 + $0x50] sm:$0xff]
        %v269 = vld [vmem:[#allocation5 + $0x58] sm:$0xff]
        %v270 = vld [vmem:[#allocation5 + $0x60] sm:$0xff]
        %v271 = vld [vmem:[#allocation5 + $0x68] sm:$0xff]
        %v272 = vld [vmem:[#allocation5 + $0x70] sm:$0xff]
        %v273 = vld [vmem:[#allocation5 + $0x78] sm:$0xff]
        %274 = vmatprep.subr.mxu0 0.0
        %275 = vmatpush1.msra.mxu0 %v273
        %276 = vmatprep.subr.mxu0 0.0
        %277 = vmatpush1.msra.mxu0 %v272
        %278 = vmatprep.subr.mxu0 0.0
        %279 = vmatpush1.msra.mxu0 %v271
        %280 = vmatprep.subr.mxu0 0.0
        %281 = vmatpush1.msra.mxu0 %v270
        %282 = vmatprep.subr.mxu0 0.0
        %283 = vmatpush1.msra.mxu0 %v269
        %284 = vmatprep.subr.mxu0 0.0
        %285 = vmatpush1.msra.mxu0 %v268
        %286 = vmatprep.subr.mxu0 0.0
        %287 = vmatpush1.msra.mxu0 %v267
        %288 = vmatprep.subr.mxu0 0.0
        %289 = vmatpush1.msra.mxu0 %v266
        %290 = vmatprep.subr.mxu0 0.0
        %291 = vmatpush1.msra.mxu0 %v265
        %292 = vmatprep.subr.mxu0 0.0
        %293 = vmatpush1.msra.mxu0 %v264
        %294 = vmatprep.subr.mxu0 0.0
        %295 = vmatpush1.msra.mxu0 %v263
        %296 = vmatprep.subr.mxu0 0.0
        %297 = vmatpush1.msra.mxu0 %v262
        %298 = vmatprep.subr.mxu0 0.0
        %299 = vmatpush1.msra.mxu0 %v261
        %300 = vmatprep.subr.mxu0 0.0
        %301 = vmatpush1.msra.mxu0 %v260
        %302 = vmatprep.subr.mxu0 0.0
        %303 = vmatpush1.msra.mxu0 %v259
        %304 = vmatprep.subr.mxu0 0.0
        %305 = vmatpush1.msra.mxu0 %v258
        %306 = vmatprep.subr.mxu0 0.0
        %307 = vmatpush2.msra.mxu0 0.0
        %308 = vmatprep.subr.mxu0 0.0
        %309 = vmatpush2.msra.mxu0 0.0
        %310 = vmatprep.subr.mxu0 0.0
        %311 = vmatpush2.msra.mxu0 0.0
        %312 = vmatprep.subr.mxu0 0.0
        %313 = vmatpush2.msra.mxu0 0.0
        %314 = vmatprep.subr.mxu0 0.0
        %315 = vmatpush2.msra.mxu0 0.0
        %316 = vmatprep.subr.mxu0 0.0
        %317 = vmatpush2.msra.mxu0 0.0
        %318 = vmatprep.subr.mxu0 0.0
        %319 = vmatpush2.msra.mxu0 0.0
        %320 = vmatprep.subr.mxu0 0.0
        %321 = vmatpush2.msra.mxu0 0.0
        %322 = vmatprep.subr.mxu0 0.0
        %323 = vmatpush2.msra.mxu0 0.0
        %324 = vmatprep.subr.mxu0 0.0
        %325 = vmatpush2.msra.mxu0 0.0
        %326 = vmatprep.subr.mxu0 0.0
        %327 = vmatpush2.msra.mxu0 0.0
        %328 = vmatprep.subr.mxu0 0.0
        %329 = vmatpush2.msra.mxu0 0.0
        %330 = vmatprep.subr.mxu0 0.0
        %331 = vmatpush2.msra.mxu0 0.0
        %332 = vmatprep.subr.mxu0 0.0
        %333 = vmatpush2.msra.mxu0 0.0
        %334 = vmatprep.subr.mxu0 0.0
        %335 = vmatpush2.msra.mxu0 0.0
        %336 = vmatprep.subr.mxu0 0.0
        %337 = vmatpush2.msra.mxu0 0.0
        %338 = vmatprep.mubr.f32.mxu0 0.0
        %339 = vmatmul.mubr.f32.gmra.mxu0 %v257
        %v340 = vpop.f32.mrf.mxu0
        %v341 = vadd.f32 0.0, %v340
        %v342 = vpop.f32.mrf.mxu0
        %343 = vdwg.mxu0
        %v344 = vadd.f32 %v256, %v341
        %345 = vst [vmem:[%s246] sm:$0xff] %v344
        // Predicated region
        $region45: #{tpu_custom_call.1} parent=31 // pred_check
          %p346 = pneg %p251
        $region46: #{tpu_custom_call.1} parent=31 // pred_check_branch
          %348 = sbr.rel (%p346) target = $region48
        $region47: #{tpu_custom_call.1} parent=31 // pred_region
          %v349 = vld [vmem:[%s246] sm:$0xff]
          %v350 = vld [vmem:[%s250] sm:$0x1]
          %v352 = vlaneseq
          %v353 = vshrl.u32 %v352, 7
          %v354 = vsub.s32 0, %v353
          %v355 = vrot.slane %v350, %v354
          %v357 = vadd.f32 %v349, %v355
          %v358 = vmax.f32 %v357, 0.0
          %359 = vst [vmem:[%s246] sm:$0xff] %v358
        $region48: #{tpu_custom_call.1} parent=31 // pred_fallthru
          _
        %s360 = sand.u32 %s132, 1
        %s361 = scalar_lea.sflag [#allocation4], %s360
        %s362 = sand.u32 %s132, 1
        %s363 = smul.addr %s362, 8
        %s364 = scalar_lea.vmem [#allocation7], %s363
        // Predicated region
        $region49: #{tpu_custom_call.1} parent=31 // pred_check
          %p365 = pneg %p142
        $region50: #{tpu_custom_call.1} parent=31 // pred_check_branch
          %367 = sbr.rel (%p365) target = $region52
        $region51: #{tpu_custom_call.1} parent=31 // pred_region
          %s369 = ssub.s32 128, 128
          %370 = vsyncadd %s361, %s369
          %s371 = sadd.s32 %s27, %s26
          %s372 = smul.addr %s371, 128
          %s373 = scalar_lea.hbm %s3, %s372
          %s375 = sshll.u32 %s364, 4
          %s376 = int_to_ptr.vmem [resolvable:$true] %s375
          %378 = dma.vmem_to_hbm [thread:$0]  %s376, 128, %s373, %s361
        $region52: #{tpu_custom_call.1} parent=31 // pred_fallthru
          _
      $region32: #{tpu_custom_call.1} parent=5 // pred_fallthru
        _
      %p379 = scmp.le.s32.totalorder 2, %s16
      // Predicated region
      $region53: #{tpu_custom_call.1} parent=5 // pred_check
        %p380 = pneg %p379
      $region54: #{tpu_custom_call.1} parent=5 // pred_check_branch
        %382 = sbr.rel (%p380) target = $region56
      $region55: #{tpu_custom_call.1} parent=5 // pred_region
        %s383 = ssub.s32 %s16, 2
        // Predicated region
        $region57: #{tpu_custom_call.1} parent=55 // pred_check
          %p384 = pneg %p148
        $region58: #{tpu_custom_call.1} parent=55 // pred_check_branch
          %386 = sbr.rel (%p384) target = $region60
        $region59: #{tpu_custom_call.1} parent=55 // pred_region
          %s387 = sand.u32 %s133, 1
          %s388 = scalar_lea.sflag [#allocation4], %s387
          %s389 = sand.u32 %s133, 1
          %s390 = smul.addr %s389, 8
          %s391 = scalar_lea.vmem [#allocation7], %s390
          %392 = dma.done %s388, 128
        $region60: #{tpu_custom_call.1} parent=55 // pred_fallthru
          _
      $region56: #{tpu_custom_call.1} parent=5 // pred_fallthru
        _
    $region6: #{tpu_custom_call.1} parent=1 // loop_footer
      %s20 = sadd.s32 1, %s16
    $region7: #{tpu_custom_call.1} parent=1 // loop_footer_branch
      %15 = sbr.rel target = $region3
    $region8: #{tpu_custom_call.1} parent=1 // loop_exit
      _
    %393 = vsyncpa [#allocation3], 1
    %s394 = scalar_lea.sflag [#allocation3], 1
    %395 = vsyncpa %s394, 1
    %396 = vsyncpa [#allocation6], 1
    %397 = vsyncpa [#allocation4], 1
    %s398 = scalar_lea.sflag [#allocation4], 1
    %399 = vsyncpa %s398, 1

</llo_original>
